<compile_context>
chip_gen: v6e
topology: v6e:2x2x1
jax: 0.10.0
libtpu: 0.0.40
codegen_flags: <defaults>
</compile_context>

<pallas_src>
from functools import partial

import numpy as np
import jax
import jax.numpy as jnp
from jax import lax
from jax.experimental import pallas as pl
from jax.experimental.pallas import tpu as pltpu


def _largest_divisor_leq(n, cap):
    cap = int(max(1, min(n, cap)))
    for d in range(cap, 0, -1):
        if n % d == 0:
            return d
    return 1


def _pick_row_block(r_total, C, num_heads, ws2, attn_esize):
    """Windows per grid step, bounded by a conservative VMEM budget."""
    lane = lambda n: ((n + 127) // 128) * 128
    sub = lambda n: ((n + 7) // 8) * 8
    per_win = (
        2 * num_heads * sub(ws2) * lane(ws2) * attn_esize   # attn out (double buffered)
        + 2 * sub(ws2) * lane(C) * 4                        # x in (double buffered)
        + 2 * sub(ws2) * lane(2 * C) * 4                    # qk + channel-major copy
        + 4 * num_heads * sub(ws2) * lane(ws2) * 4          # dots / exp / attn f32 temps
    )
    budget = 8 * 1024 * 1024   # headroom under the 32 MiB scoped VMEM limit
    cap = max(1, budget // per_win)
    return _largest_divisor_leq(r_total, cap)


def pre_attention_kernel(x_ref, w_ref, b_ref, relb_ref, attn_ref, avg_ref,
                         *, ws, num_heads, head_dim, scale):
    """One block of `row_blk` windows per grid step.

    x_ref    : (RB, ws, ws, C)          RB whole windows, channel-last
    w_ref    : (C, 2C)                  folded conv1x1 + BN weight
    b_ref    : (1, 2C)                  folded BN bias
    relb_ref : (num_heads, ws2, ws2)    relative position bias
    attn_ref : (RB, 1, num_heads, ws2, ws2)
    avg_ref  : (RB, 1, 1, ws2)
    """
    RB = x_ref.shape[0]
    C = num_heads * head_dim
    ws2 = ws * ws

    # Window pixels are already contiguous (row-major inside the window), so
    # this is a pure flatten -- no transpose needed.
    x = x_ref[...].reshape(RB * ws2, C)

    # Fused 1x1 Conv + folded BatchNorm + ReLU for every pixel of every
    # window in the block: one large MXU matmul.
    qk = jnp.dot(x, w_ref[...], preferred_element_type=jnp.float32)
    qk = jnp.maximum(qk + b_ref[...], 0.0)                 # (RB*ws2, 2C)

    # Channel order is (qkv, head, head_dim).  Go channel-major per window so
    # the (qkv, head) split happens along the sublane axis (tile aligned when
    # head_dim % 8 == 0) while ws2 stays on lanes.
    qk = jnp.swapaxes(qk.reshape(RB, ws2, 2 * C), 1, 2)    # (RB, 2C, ws2)
    qk = qk.reshape(RB, 2, num_heads, head_dim, ws2)
    q = jnp.swapaxes(qk[:, 0], 2, 3).reshape(RB * num_heads, ws2, head_dim)
    k = qk[:, 1].reshape(RB * num_heads, head_dim, ws2)

    # Batched per-(window, head) q @ k^T on the MXU (canonical batched form).
    dots = lax.dot_general(q, k, (((2,), (1,)), ((0,), (0,))),
                           preferred_element_type=jnp.float32)
    dots = dots.reshape(RB, num_heads, ws2, ws2) * scale
    dots = dots + relb_ref[...][None]                      # + rel. pos. bias

    # AvgPool2d((1, num_heads)) then AvgPool2d((ws*ws, 1)) on the raw dots:
    # mean over heads, then mean over queries -> one value per key position.
    avg = dots.sum(axis=1).sum(axis=1) * (1.0 / (num_heads * ws2))   # (RB, ws2)
    avg_ref[...] = avg.reshape(avg_ref.shape).astype(avg_ref.dtype)

    # Softmax over keys (single vectorised epilogue + single block store).
    m = jnp.max(dots, axis=-1, keepdims=True)
    e = jnp.exp(dots - m)
    s = jnp.sum(e, axis=-1, keepdims=True)
    attn = e * pl.reciprocal(s, approx=True)
    attn_ref[...] = attn.reshape(attn_ref.shape).astype(attn_ref.dtype)


def pre_attention(x_nchw, w_eff, b_eff, rel_bias, *, ws, num_heads,
                  attn_dtype=jnp.float32):
    """Returns (attn, avgdots_normal) matching the PyTorch module.

    attn           : (B*nH*nW, num_heads, ws*ws, ws*ws)  [attn_dtype]
    avgdots_normal : (B*nH*nW, ws*ws, 1)                 [float32]
    """
    B, C, H, W = x_nchw.shape
    head_dim = C // num_heads
    scale = head_dim ** (-0.5)
    ws2 = ws * ws

    # NCHW -> NHWC, reflect pad right then bottom (same order as PyTorch pad()).
    x = jnp.transpose(x_nchw, (0, 2, 3, 1))
    if W % ws != 0:
        x = jnp.pad(x, ((0, 0), (0, 0), (0, ws - W % ws), (0, 0)), mode="reflect")
    if H % ws != 0:
        x = jnp.pad(x, ((0, 0), (0, ws - H % ws), (0, 0), (0, 0)), mode="reflect")
    Hp, Wp = x.shape[1], x.shape[2]
    nH, nW = Hp // ws, Wp // ws

    # Free reshape only: (B, Hp, Wp, C) -> (B*nH, ws, Wp, C).  The window
    # partition itself is expressed by the BlockSpec index_map (no windowed
    # copy of the feature map is materialized in HBM).
    r_total = B * nH
    xr = x.reshape(r_total, ws, Wp, C)

    attn_esize = jnp.dtype(attn_dtype).itemsize
    row_blk = _pick_row_block(r_total, C, num_heads, ws2, attn_esize)

    b2 = b_eff.reshape(1, 2 * C)
    kernel = partial(pre_attention_kernel, ws=ws, num_heads=num_heads,
                     head_dim=head_dim, scale=scale)

    attn, avg = pl.pallas_call(
        kernel,
        out_shape=(
            jax.ShapeDtypeStruct((r_total, nW, num_heads, ws2, ws2), attn_dtype),
            jax.ShapeDtypeStruct((r_total, nW, 1, ws2), jnp.float32),
        ),
        grid_spec=pltpu.PrefetchScalarGridSpec(
            num_scalar_prefetch=0,
            grid=(r_total // row_blk, nW),
            in_specs=[
                pl.BlockSpec((row_blk, ws, ws, C), lambda r, j: (r, 0, j, 0)),
                # Constant operands (constant index_map -> fetched once).
                pl.BlockSpec((C, 2 * C), lambda r, j: (0, 0)),
                pl.BlockSpec((1, 2 * C), lambda r, j: (0, 0)),
                pl.BlockSpec((num_heads, ws2, ws2), lambda r, j: (0, 0, 0)),
            ],
            out_specs=(
                pl.BlockSpec((row_blk, 1, num_heads, ws2, ws2),
                             lambda r, j: (r, j, 0, 0, 0)),
                pl.BlockSpec((row_blk, 1, 1, ws2),
                             lambda r, j: (r, j, 0, 0)),
            ),
        ),
        compiler_params=pltpu.CompilerParams(
            dimension_semantics=("parallel", "parallel"),
            vmem_limit_bytes=32 * 1024 * 1024),
    )(xr, w_eff, b2, rel_bias)

    # Pure reshapes (window order is (b, hh, ww), matching the reference).
    attn = attn.reshape(B * nH * nW, num_heads, ws2, ws2)
    avgdots_normal = avg.reshape(B * nH * nW, ws2, 1)
    return attn, avgdots_normal


def pre_attention_reference(x_nchw, w_eff, b_eff, rel_bias, *, ws, num_heads):
    """Pure-JAX reference (mirrors the PyTorch forward, eval-mode BN folded)."""
    B, C, H, W = x_nchw.shape
    head_dim = C // num_heads
    scale = head_dim ** (-0.5)
    x = jnp.transpose(x_nchw, (0, 2, 3, 1))
    if W % ws != 0:
        x = jnp.pad(x, ((0, 0), (0, 0), (0, ws - W % ws), (0, 0)), mode="reflect")
    if H % ws != 0:
        x = jnp.pad(x, ((0, 0), (0, ws - H % ws), (0, 0), (0, 0)), mode="reflect")
    Hp, Wp = x.shape[1], x.shape[2]
    nH, nW = Hp // ws, Wp // ws
    qk = jnp.maximum(jnp.einsum("bhwc,cd->bhwd", x, w_eff) + b_eff, 0.0)
    qk = qk.reshape(B, nH, ws, nW, ws, 2, num_heads, head_dim)
    qk = jnp.transpose(qk, (5, 0, 1, 3, 6, 2, 4, 7))
    qk = qk.reshape(2, B * nH * nW, num_heads, ws * ws, head_dim)
    q, k = qk[0], qk[1]
    dots = jnp.einsum("whqd,whkd->whqk", q, k) * scale + rel_bias[None]
    avg = dots.mean(axis=1).mean(axis=1)[..., None]   # over heads, then queries
    attn = jax.nn.softmax(dots, axis=-1)
    return attn, avg


def build_relative_position_bias(table, ws, num_heads):
    """table: ((2*ws-1)^2, num_heads) -> (num_heads, ws*ws, ws*ws)."""
    coords = np.stack(np.meshgrid(np.arange(ws), np.arange(ws), indexing="ij"))
    cf = coords.reshape(2, -1)
    rc = cf[:, :, None] - cf[:, None, :]
    rc = rc.transpose(1, 2, 0).astype(np.int64)
    rc[:, :, 0] += ws - 1
    rc[:, :, 1] += ws - 1
    rc[:, :, 0] *= 2 * ws - 1
    rel_idx = rc.sum(-1)                                   # (ws*ws, ws*ws)
    bias = table[jnp.asarray(rel_idx.reshape(-1))]
    bias = bias.reshape(ws * ws, ws * ws, num_heads)
    return jnp.transpose(bias, (2, 0, 1))                  # (h, ws2, ws2)


if __name__ == "__main__":
    B, dim, H, W = 2, 32, 16, 16
    num_heads, ws = 4, 8

    key = jax.random.PRNGKey(0)
    k1, k2, k3, k4, k5 = jax.random.split(key, 5)

    x = jax.random.normal(k1, (B, dim, H, W), jnp.float32)

    # deterministic parameter init
    conv_w = jax.random.normal(k2, (2 * dim, dim), jnp.float32) * 0.05  # 1x1 conv, no bias
    gamma = 1.0 + 0.1 * jax.random.normal(k3, (2 * dim,), jnp.float32)
    beta = 0.1 * jax.random.normal(k4, (2 * dim,), jnp.float32)
    run_mean = jnp.zeros((2 * dim,), jnp.float32)
    run_var = jnp.ones((2 * dim,), jnp.float32)
    eps = 1e-5

    # fold BN (inference) into the 1x1 conv: y = relu(x @ w_eff + b_eff)
    inv_std = gamma / jnp.sqrt(run_var + eps)
    w_eff = (conv_w * inv_std[:, None]).T                  # (dim, 2*dim)
    b_eff = beta - run_mean * inv_std                      # (2*dim,)

    # relative position bias table (trunc_normal std=0.02)
    table = 0.02 * jax.random.truncated_normal(
        k5, -2.0, 2.0, ((2 * ws - 1) * (2 * ws - 1), num_heads), jnp.float32)
    rel_bias = build_relative_position_bias(table, ws, num_heads)

    # f32 attention writeback (reference-faithful); bf16 available via attn_dtype.
    fn = jax.jit(partial(pre_attention, ws=ws, num_heads=num_heads))
    attn, avgdots = fn(x, w_eff, b_eff, rel_bias)
    jax.block_until_ready((attn, avgdots))

    ref_attn, ref_avg = pre_attention_reference(
        x, w_eff, b_eff, rel_bias, ws=ws, num_heads=num_heads)

    nH, nW = H // ws, W // ws
    assert attn.shape == (B * nH * nW, num_heads, ws * ws, ws * ws)
    assert avgdots.shape == (B * nH * nW, ws * ws, 1)
    # softmax rows sum to 1 (approx-reciprocal tolerance)
    assert bool(jnp.allclose(jnp.sum(attn, axis=-1), 1.0, atol=1e-2))
    assert bool(jnp.allclose(attn, ref_attn, atol=1e-2))
    assert bool(jnp.allclose(avgdots, ref_avg, atol=1e-3, rtol=1e-3))

    print("KERNEL_OK")
</pallas_src>

<mosaic_0001>
module attributes {stable_mosaic.version = 11 : i64} {
  func.func @pre_attention_kernel(%arg0: i32, %arg1: i32, %arg2: memref<4x8x8x32xf32, #tpu.memory_space<vmem>>, %arg3: memref<32x64xf32, #tpu.memory_space<vmem>>, %arg4: memref<1x64xf32, #tpu.memory_space<vmem>>, %arg5: memref<4x64x64xf32, #tpu.memory_space<vmem>>, %arg6: memref<4x1x4x64x64xf32, #tpu.memory_space<vmem>>, %arg7: memref<4x1x1x64xf32, #tpu.memory_space<vmem>>) attributes {dimension_semantics = [#tpu.dimension_semantics<parallel>, #tpu.dimension_semantics<parallel>], iteration_bounds = array<i64: 1, 2>, scalar_prefetch = 0 : i64, scratch_operands = 0 : i64, tpu.core_type = #tpu.core_type<tc>, window_params = [{transform_indices = @transform_0, window_bounds = array<i64: 4, 8, 8, 32>}, {pipeline_mode = #tpu.pipeline_mode<synchronous>, transform_indices = @transform_1, window_bounds = array<i64: 32, 64>}, {pipeline_mode = #tpu.pipeline_mode<synchronous>, transform_indices = @transform_2, window_bounds = array<i64: 1, 64>}, {pipeline_mode = #tpu.pipeline_mode<synchronous>, transform_indices = @transform_3, window_bounds = array<i64: 4, 64, 64>}, {transform_indices = @transform_4, window_bounds = array<i64: 4, 1, 4, 64, 64>}, {transform_indices = @transform_5, window_bounds = array<i64: 4, 1, 1, 64>}]} {
    %c0 = arith.constant 0 : index
    %c0_0 = arith.constant 0 : index
    %c0_1 = arith.constant 0 : index
    %c0_2 = arith.constant 0 : index
    %0 = vector.load %arg2[%c0, %c0_0, %c0_1, %c0_2] : memref<4x8x8x32xf32, #tpu.memory_space<vmem>>, vector<4x8x8x32xf32>
    %1 = vector.shape_cast %0 : vector<4x8x8x32xf32> to vector<256x32xf32>
    %c0_3 = arith.constant 0 : index
    %c0_4 = arith.constant 0 : index
    %2 = vector.load %arg3[%c0_3, %c0_4] : memref<32x64xf32, #tpu.memory_space<vmem>>, vector<32x64xf32>
    %cst = arith.constant dense<0.000000e+00> : vector<256x64xf32>
    %3 = tpu.matmul %1, %2, %cst {dimension_numbers = #tpu.dot_dimension_numbers<[1], [0], [0], [1], [0, 0, 1, 1], [], []>} : vector<256x32xf32>, vector<32x64xf32>, vector<256x64xf32> -> vector<256x64xf32>
    %c0_5 = arith.constant 0 : index
    %c0_6 = arith.constant 0 : index
    %4 = vector.load %arg4[%c0_5, %c0_6] : memref<1x64xf32, #tpu.memory_space<vmem>>, vector<1x64xf32>
    %5 = vector.broadcast %4 : vector<1x64xf32> to vector<256x64xf32>
    %6 = arith.addf %3, %5 : vector<256x64xf32>
    %cst_7 = arith.constant 0.000000e+00 : f32
    %7 = vector.broadcast %cst_7 : f32 to vector<256x64xf32>
    %8 = arith.maximumf %6, %7 : vector<256x64xf32>
    %9 = vector.shape_cast %8 : vector<256x64xf32> to vector<4x64x64xf32>
    %10 = tpu.transpose %9, [0, 2, 1] : vector<4x64x64xf32> -> vector<4x64x64xf32>
    %11 = vector.shape_cast %10 : vector<4x64x64xf32> to vector<4x2x4x8x64xf32>
    %12 = vector.extract_strided_slice %11 {offsets = [0, 0, 0, 0, 0], sizes = [4, 1, 4, 8, 64], strides = [1, 1, 1, 1, 1]} : vector<4x2x4x8x64xf32> to vector<4x1x4x8x64xf32>
    %13 = vector.shape_cast %12 : vector<4x1x4x8x64xf32> to vector<4x4x8x64xf32>
    %14 = tpu.transpose %13, [0, 1, 3, 2] : vector<4x4x8x64xf32> -> vector<4x4x64x8xf32>
    %15 = vector.shape_cast %14 : vector<4x4x64x8xf32> to vector<16x64x8xf32>
    %16 = vector.extract_strided_slice %11 {offsets = [0, 1, 0, 0, 0], sizes = [4, 1, 4, 8, 64], strides = [1, 1, 1, 1, 1]} : vector<4x2x4x8x64xf32> to vector<4x1x4x8x64xf32>
    %17 = vector.shape_cast %16 : vector<4x1x4x8x64xf32> to vector<4x4x8x64xf32>
    %18 = vector.shape_cast %17 : vector<4x4x8x64xf32> to vector<16x8x64xf32>
    %cst_8 = arith.constant dense<0.000000e+00> : vector<16x64x64xf32>
    %19 = tpu.matmul %15, %18, %cst_8 {dimension_numbers = #tpu.dot_dimension_numbers<[2], [1], [1], [2], [0, 0, 0, 1, 1, 2], [0], [0]>} : vector<16x64x8xf32>, vector<16x8x64xf32>, vector<16x64x64xf32> -> vector<16x64x64xf32>
    %20 = vector.shape_cast %19 : vector<16x64x64xf32> to vector<4x4x64x64xf32>
    %cst_9 = arith.constant 0.353553385 : f32
    %21 = vector.broadcast %cst_9 : f32 to vector<4x4x64x64xf32>
    %22 = arith.mulf %20, %21 : vector<4x4x64x64xf32>
    %c0_10 = arith.constant 0 : index
    %c0_11 = arith.constant 0 : index
    %c0_12 = arith.constant 0 : index
    %23 = vector.load %arg5[%c0_10, %c0_11, %c0_12] : memref<4x64x64xf32, #tpu.memory_space<vmem>>, vector<4x64x64xf32>
    %24 = vector.shape_cast %23 : vector<4x64x64xf32> to vector<1x4x64x64xf32>
    %25 = vector.broadcast %24 : vector<1x4x64x64xf32> to vector<4x4x64x64xf32>
    %26 = arith.addf %22, %25 : vector<4x4x64x64xf32>
    %cst_13 = arith.constant dense<0.000000e+00> : vector<4x64x64xf32>
    %27 = vector.multi_reduction <add>, %26, %cst_13 [1] : vector<4x4x64x64xf32> to vector<4x64x64xf32>
    %cst_14 = arith.constant dense<0.000000e+00> : vector<4x64xf32>
    %28 = vector.multi_reduction <add>, %27, %cst_14 [1] : vector<4x64x64xf32> to vector<4x64xf32>
    %cst_15 = arith.constant 3.906250e-03 : f32
    %29 = vector.broadcast %cst_15 : f32 to vector<4x64xf32>
    %30 = arith.mulf %28, %29 : vector<4x64xf32>
    %31 = vector.shape_cast %30 : vector<4x64xf32> to vector<4x1x1x64xf32>
    %c0_16 = arith.constant 0 : index
    %c0_17 = arith.constant 0 : index
    %c0_18 = arith.constant 0 : index
    %c0_19 = arith.constant 0 : index
    %32 = vector.load %arg7[%c0_16, %c0_17, %c0_18, %c0_19] : memref<4x1x1x64xf32, #tpu.memory_space<vmem>>, vector<4x1x1x64xf32>
    tpu.vector_store %arg7[%c0_16, %c0_17, %c0_18, %c0_19], %31 {strides = array<i32>} : memref<4x1x1x64xf32, #tpu.memory_space<vmem>>, vector<4x1x1x64xf32>,
    %cst_20 = arith.constant dense<0xFF800000> : vector<4x4x64xf32>
    %33 = vector.multi_reduction <maximumf>, %26, %cst_20 [3] : vector<4x4x64x64xf32> to vector<4x4x64xf32>
    %34 = vector.shape_cast %33 : vector<4x4x64xf32> to vector<4x4x64x1xf32>
    %35 = vector.broadcast %34 : vector<4x4x64x1xf32> to vector<4x4x64x64xf32>
    %36 = arith.subf %26, %35 : vector<4x4x64x64xf32>
    %37 = math.exp %36 : vector<4x4x64x64xf32>
    %cst_21 = arith.constant dense<0.000000e+00> : vector<4x4x64xf32>
    %38 = vector.multi_reduction <add>, %37, %cst_21 [3] : vector<4x4x64x64xf32> to vector<4x4x64xf32>
    %39 = vector.shape_cast %38 : vector<4x4x64xf32> to vector<4x4x64x1xf32>
    %40 = tpu.reciprocal %39 {approx = true} : vector<4x4x64x1xf32> -> vector<4x4x64x1xf32>
    %41 = vector.broadcast %40 : vector<4x4x64x1xf32> to vector<4x4x64x64xf32>
    %42 = arith.mulf %37, %41 : vector<4x4x64x64xf32>
    %43 = vector.shape_cast %42 : vector<4x4x64x64xf32> to vector<4x1x4x64x64xf32>
    %c0_22 = arith.constant 0 : index
    %c0_23 = arith.constant 0 : index
    %c0_24 = arith.constant 0 : index
    %c0_25 = arith.constant 0 : index
    %c0_26 = arith.constant 0 : index
    %44 = vector.load %arg6[%c0_22, %c0_23, %c0_24, %c0_25, %c0_26] : memref<4x1x4x64x64xf32, #tpu.memory_space<vmem>>, vector<4x1x4x64x64xf32>
    tpu.vector_store %arg6[%c0_22, %c0_23, %c0_24, %c0_25, %c0_26], %43 {strides = array<i32>} : memref<4x1x4x64x64xf32, #tpu.memory_space<vmem>>, vector<4x1x4x64x64xf32>,
    return
  }
  func.func @transform_0(%arg0: i32, %arg1: i32) -> (i32, i32, i32, i32) {
    %c0_i32 = arith.constant 0 : i32
    %c0_i32_0 = arith.constant 0 : i32
    %c0_i32_1 = arith.constant 0 : i32
    return %arg0, %c0_i32, %arg1, %c0_i32_0 : i32, i32, i32, i32
  }
  func.func @transform_1(%arg0: i32, %arg1: i32) -> (i32, i32) {
    %c0_i32 = arith.constant 0 : i32
    %c0_i32_0 = arith.constant 0 : i32
    %c0_i32_1 = arith.constant 0 : i32
    return %c0_i32, %c0_i32_0 : i32, i32
  }
  func.func @transform_2(%arg0: i32, %arg1: i32) -> (i32, i32) {
    %c0_i32 = arith.constant 0 : i32
    %c0_i32_0 = arith.constant 0 : i32
    %c0_i32_1 = arith.constant 0 : i32
    return %c0_i32, %c0_i32_0 : i32, i32
  }
  func.func @transform_3(%arg0: i32, %arg1: i32) -> (i32, i32, i32) {
    %c0_i32 = arith.constant 0 : i32
    %c0_i32_0 = arith.constant 0 : i32
    %c0_i32_1 = arith.constant 0 : i32
    %c0_i32_2 = arith.constant 0 : i32
    return %c0_i32, %c0_i32_0, %c0_i32_1 : i32, i32, i32
  }
  func.func @transform_4(%arg0: i32, %arg1: i32) -> (i32, i32, i32, i32, i32) {
    %c0_i32 = arith.constant 0 : i32
    %c0_i32_0 = arith.constant 0 : i32
    %c0_i32_1 = arith.constant 0 : i32
    %c0_i32_2 = arith.constant 0 : i32
    return %arg0, %arg1, %c0_i32, %c0_i32_0, %c0_i32_1 : i32, i32, i32, i32, i32
  }
  func.func @transform_5(%arg0: i32, %arg1: i32) -> (i32, i32, i32, i32) {
    %c0_i32 = arith.constant 0 : i32
    %c0_i32_0 = arith.constant 0 : i32
    %c0_i32_1 = arith.constant 0 : i32
    return %arg0, %arg1, %c0_i32, %c0_i32_0 : i32, i32, i32, i32
  }
}

</mosaic_0001>

<llo_original>
// kernel: pre_attention.1
$region0: #{pre_attention.1}
  #allocation0 [shape = 'u32[]', space=smem, size = 0x4, offset = 0x4, fixed_abs, tag = 'smem constant byte address 0x4 - core index']
  #allocation1 [shape = 'u32[144,128]{1,0:T(1,128)}', space=vmem, size = 0x12000, scoped, tag = 'internal scratch']
  #allocation11 [shape = 's32[]', space=sflag, size = 0x4, offset = 0, fixed_abs, tag = 'sflag constant byte address 0x0 - dummy sync flag']
  %s0 = inlined_call_operand.hbm [shape: f32[4,8,16,32], index: 0, kind: input, shape index: {}]
  %s1 = inlined_call_operand.hbm [shape: f32[32,64], index: 1, kind: input, shape index: {}]
  %s2 = inlined_call_operand.vmem [shape: f32[1,64], index: 2, kind: input, shape index: {}]
  %s3 = inlined_call_operand.hbm [shape: f32[4,64,64], index: 3, kind: input, shape index: {}]
  %s4 = inlined_call_operand.hbm [shape: f32[4,2,4,64,64], index: 4, kind: output, shape index: {0}]
  %s5 = inlined_call_operand.hbm [shape: f32[4,2,1,64], index: 5, kind: output, shape index: {1}]
  %6 = xla_tuple %s4, %s5
  %s7 = sld [smem:[#allocation0]]
  $region69: #{pre_attention.1} parent=0
    _
  %s9 = ssub.s32 1, %s7
  %s10 = scalar_select 0, %s9, %s7
  $region1: #{pre_attention.1} parent=0
    #allocation2 [shape = 'u8[262144]{0}', space=vmem, size = 0x40000, scoped, tag = 'input window, operand 0']
    #allocation3 [shape = 's32[2]{0}', space=sflag, size = 0x8, scoped, tag = 'scoped memory for pre_attention.1']
    #allocation4 [shape = 's32[2]{0}', space=sflag, size = 0x8, scoped, tag = 'scoped memory for pre_attention.1']
    #allocation5 [shape = 'u8[16384]{0}', space=vmem, size = 0x4000, scoped, tag = 'input window, operand 1, single buffered']
    #allocation6 [shape = 's32[1]{0}', space=sflag, size = 0x4, scoped, tag = 'scoped memory for pre_attention.1']
    #allocation7 [shape = 'u8[131072]{0}', space=vmem, size = 0x20000, scoped, tag = 'input window, operand 3, single buffered']
    #allocation8 [shape = 'u8[1048576]{0}', space=vmem, size = 0x100000, scoped, tag = 'output window, operand 0']
    #allocation9 [shape = 'u8[4096]{0}', space=vmem, size = 0x1000, scoped, tag = 'output window, operand 1']
    #allocation10 [shape = 's32[2]{0}', space=sflag, size = 0x8, scoped, tag = 'scoped memory for pre_attention.1']
    %11 = vsyncpa [#allocation3], 0
    %s12 = scalar_lea.sflag [#allocation3], 1
    %13 = vsyncpa %s12, 0
    %14 = vsyncpa [#allocation6], 0
    %15 = vsyncpa [#allocation4], 0
    %s16 = scalar_lea.sflag [#allocation4], 1
    %17 = vsyncpa %s16, 0
    %18 = vsyncpa [#allocation10], 0
    %s19 = scalar_lea.sflag [#allocation10], 1
    %20 = vsyncpa %s19, 0
    loop: start=0, step=1, limit=4
    $region2: #{pre_attention.1} parent=1 // loop_pre_header
      _
    $region3: #{pre_attention.1} parent=1 // loop_header
      %s22 = sphi 0, %s26
      %p23 = scmp.ge.s32.totalorder %s22, 4
      %s29 = sphi 0, %s41
      %s30 = sphi 0, %s37
      %s31 = sphi 0, %s29
      %s32 = sphi 0, %s30
      %s33 = sphi 0, %s31
      %s34 = sphi 0, %s32
      %s46 = sphi 0, %s48
      %s49 = sphi 0, %s46
      %s50 = sphi 0, %s49
      %s66 = sphi 0, %s50
      %s70 = sphi 0, %s70
      %s72 = sphi 0, %s70
      %s73 = sphi 0, %s72
      %s87 = sphi 0, %s73
      %s91 = sphi 0, %s91
      %s93 = sphi 0, %s91
      %s94 = sphi 0, %s93
      %s108 = sphi 0, %s94
      %s112 = sphi 0, %s112
      %s114 = sphi 0, %s112
      %s115 = sphi 0, %s114
      %s129 = sphi 0, %s115
      %s137 = sphi 0, %s139
      %s140 = sphi 0, %s137
      %s141 = sphi 0, %s140
      %s157 = sphi 0, %s141
      %s165 = sphi 0, %s167
      %s168 = sphi 0, %s165
      %s169 = sphi 0, %s168
      %s185 = sphi 0, %s169
    $region4: #{pre_attention.1} parent=1 // loop_header_branch
      %25 = sbr.rel (%p23) target = $region8
    $region5: #{pre_attention.1} parent=1 // loop_body
      %s27 = ssub.s32 %s22, 1
      %s28 = ssub.s32 %s22, 2
      %s35 = sadd.s32 1, %s30
      %p36 = scmp.ge.s32.totalorder %s35, 2
      %s37 = scalar_select %p36, 0, %s35
      %s38 = sadd.s32 1, %s29
      %s39 = scalar_select %p36, %s38, %s29
      %p40 = scmp.ge.s32.totalorder %s39, 1
      %s41 = scalar_select %p40, 0, %s39
      %s42 = ssub.s32 %s29, %s41
      %s43 = ssub.s32 %s30, %s37
      %s44 = sor.u32 %s42, %s43
      %p45 = scmp.eq.s32.totalorder %s44, 0
      %s47 = sadd.s32 %s46, 1
      %s48 = scalar_select %p45, %s46, %s47
      %p51 = pneg %p45
      %p52 = scmp.eq.s32.totalorder %s22, 1
      %p53 = por %p51, %p52
      %p54 = scmp.ne.s32.totalorder %s46, %s49
      %p55 = scmp.eq.s32.totalorder %s22, 0
      %p56 = por %p54, %p55
      %p57 = scmp.ne.s32.totalorder %s46, %s49
      %p58 = scmp.eq.s32.totalorder %s27, 1
      %p59 = por %p57, %p58
      %p60 = scmp.ne.s32.totalorder %s49, %s50
      %p61 = scmp.eq.s32.totalorder %s27, 0
      %p62 = por %p60, %p61
      %p63 = scmp.ne.s32.totalorder %s49, %s50
      %p64 = scmp.eq.s32.totalorder %s28, 1
      %p65 = por %p63, %p64
      %p67 = scmp.ne.s32.totalorder %s50, %s66
      %p68 = scmp.eq.s32.totalorder %s28, 0
      %p69 = por %p67, %p68
      %s71 = sadd.s32 %s70, 1
      %p74 = scmp.eq.s32.totalorder %s22, 1
      %p75 = scmp.ne.s32.totalorder %s70, %s72
      %p76 = scmp.eq.s32.totalorder %s22, 0
      %p77 = por %p75, %p76
      %p78 = scmp.ne.s32.totalorder %s70, %s72
      %p79 = scmp.eq.s32.totalorder %s27, 1
      %p80 = por %p78, %p79
      %p81 = scmp.ne.s32.totalorder %s72, %s73
      %p82 = scmp.eq.s32.totalorder %s27, 0
      %p83 = por %p81, %p82
      %p84 = scmp.ne.s32.totalorder %s72, %s73
      %p85 = scmp.eq.s32.totalorder %s28, 1
      %p86 = por %p84, %p85
      %p88 = scmp.ne.s32.totalorder %s73, %s87
      %p89 = scmp.eq.s32.totalorder %s28, 0
      %p90 = por %p88, %p89
      %s92 = sadd.s32 %s91, 1
      %p95 = scmp.eq.s32.totalorder %s22, 1
      %p96 = scmp.ne.s32.totalorder %s91, %s93
      %p97 = scmp.eq.s32.totalorder %s22, 0
      %p98 = por %p96, %p97
      %p99 = scmp.ne.s32.totalorder %s91, %s93
      %p100 = scmp.eq.s32.totalorder %s27, 1
      %p101 = por %p99, %p100
      %p102 = scmp.ne.s32.totalorder %s93, %s94
      %p103 = scmp.eq.s32.totalorder %s27, 0
      %p104 = por %p102, %p103
      %p105 = scmp.ne.s32.totalorder %s93, %s94
      %p106 = scmp.eq.s32.totalorder %s28, 1
      %p107 = por %p105, %p106
      %p109 = scmp.ne.s32.totalorder %s94, %s108
      %p110 = scmp.eq.s32.totalorder %s28, 0
      %p111 = por %p109, %p110
      %s113 = sadd.s32 %s112, 1
      %p116 = scmp.eq.s32.totalorder %s22, 1
      %p117 = scmp.ne.s32.totalorder %s112, %s114
      %p118 = scmp.eq.s32.totalorder %s22, 0
      %p119 = por %p117, %p118
      %p120 = scmp.ne.s32.totalorder %s112, %s114
      %p121 = scmp.eq.s32.totalorder %s27, 1
      %p122 = por %p120, %p121
      %p123 = scmp.ne.s32.totalorder %s114, %s115
      %p124 = scmp.eq.s32.totalorder %s27, 0
      %p125 = por %p123, %p124
      %p126 = scmp.ne.s32.totalorder %s114, %s115
      %p127 = scmp.eq.s32.totalorder %s28, 1
      %p128 = por %p126, %p127
      %p130 = scmp.ne.s32.totalorder %s115, %s129
      %p131 = scmp.eq.s32.totalorder %s28, 0
      %p132 = por %p130, %p131
      %s133 = ssub.s32 %s29, %s41
      %s134 = ssub.s32 %s30, %s37
      %s135 = sor.u32 %s133, %s134
      %p136 = scmp.eq.s32.totalorder %s135, 0
      %s138 = sadd.s32 %s137, 1
      %s139 = scalar_select %p136, %s137, %s138
      %p142 = pneg %p136
      %p143 = scmp.eq.s32.totalorder %s22, 1
      %p144 = por %p142, %p143
      %p145 = scmp.ne.s32.totalorder %s137, %s140
      %p146 = scmp.eq.s32.totalorder %s22, 0
      %p147 = por %p145, %p146
      %p148 = scmp.ne.s32.totalorder %s137, %s140
      %p149 = scmp.eq.s32.totalorder %s27, 1
      %p150 = por %p148, %p149
      %p151 = scmp.ne.s32.totalorder %s140, %s141
      %p152 = scmp.eq.s32.totalorder %s27, 0
      %p153 = por %p151, %p152
      %p154 = scmp.ne.s32.totalorder %s140, %s141
      %p155 = scmp.eq.s32.totalorder %s28, 1
      %p156 = por %p154, %p155
      %p158 = scmp.ne.s32.totalorder %s141, %s157
      %p159 = scmp.eq.s32.totalorder %s28, 0
      %p160 = por %p158, %p159
      %s161 = ssub.s32 %s29, %s41
      %s162 = ssub.s32 %s30, %s37
      %s163 = sor.u32 %s161, %s162
      %p164 = scmp.eq.s32.totalorder %s163, 0
      %s166 = sadd.s32 %s165, 1
      %s167 = scalar_select %p164, %s165, %s166
      %p170 = pneg %p164
      %p171 = scmp.eq.s32.totalorder %s22, 1
      %p172 = por %p170, %p171
      %p173 = scmp.ne.s32.totalorder %s165, %s168
      %p174 = scmp.eq.s32.totalorder %s22, 0
      %p175 = por %p173, %p174
      %p176 = scmp.ne.s32.totalorder %s165, %s168
      %p177 = scmp.eq.s32.totalorder %s27, 1
      %p178 = por %p176, %p177
      %p179 = scmp.ne.s32.totalorder %s168, %s169
      %p180 = scmp.eq.s32.totalorder %s27, 0
      %p181 = por %p179, %p180
      %p182 = scmp.ne.s32.totalorder %s168, %s169
      %p183 = scmp.eq.s32.totalorder %s28, 1
      %p184 = por %p182, %p183
      %p186 = scmp.ne.s32.totalorder %s169, %s185
      %p187 = scmp.eq.s32.totalorder %s28, 0
      %p188 = por %p186, %p187
      %p189 = scmp.le.s32.totalorder 1, %s22
      %p190 = scmp.lt.s32.totalorder %s22, 3
      %p191 = pnand %p189, %p190
      %p192 = pneg %p191
      // Predicated region
      $region9: #{pre_attention.1} parent=5 // pred_check
        _
      $region10: #{pre_attention.1} parent=5 // pred_check_branch
        %194 = sbr.rel (%p191) target = $region12
      $region11: #{pre_attention.1} parent=5 // pred_region
        %s195 = ssub.s32 %s22, 1
        // Predicated region
        $region13: #{pre_attention.1} parent=11 // pred_check
          %p196 = pneg %p83
        $region14: #{pre_attention.1} parent=11 // pred_check_branch
          %198 = sbr.rel (%p196) target = $region16
        $region15: #{pre_attention.1} parent=11 // pred_region
          %s200 = ssub.s32 512, 512
          %201 = vsyncadd [#allocation6], %s200
          %s202 = sshll.u32 [#allocation5], 4
          %s203 = int_to_ptr.vmem [resolvable:$true] %s202
          %208 = dma.hbm_to_vmem [thread:$0]  %s1, 512, %s203, [#allocation6], 128, 128, 8
        $region16: #{pre_attention.1} parent=11 // pred_fallthru
          _
        // Predicated region
        $region17: #{pre_attention.1} parent=11 // pred_check
          %p209 = pneg %p104
        $region18: #{pre_attention.1} parent=11 // pred_check_branch
          %211 = sbr.rel (%p209) target = $region20
        $region19: #{pre_attention.1} parent=11 // pred_region
          _
        $region20: #{pre_attention.1} parent=11 // pred_fallthru
          _
        // Predicated region
        $region21: #{pre_attention.1} parent=11 // pred_check
          %p212 = pneg %p125
        $region22: #{pre_attention.1} parent=11 // pred_check_branch
          %214 = sbr.rel (%p212) target = $region24
        $region23: #{pre_attention.1} parent=11 // pred_region
          %s216 = ssub.s32 4096, 4096
          %217 = vsyncadd [#allocation6], %s216
          %s218 = sshll.u32 [#allocation7], 4
          %s219 = int_to_ptr.vmem [resolvable:$true] %s218
          %224 = dma.hbm_to_vmem [thread:$0]  %s3, 4096, %s219, [#allocation6], 128, 128, 8
        $region24: #{pre_attention.1} parent=11 // pred_fallthru
          _
      $region12: #{pre_attention.1} parent=5 // pred_fallthru
        _
      %p225 = scmp.lt.s32.totalorder %s22, 2
      // Predicated region
      $region25: #{pre_attention.1} parent=5 // pred_check
        %p226 = pneg %p225
      $region26: #{pre_attention.1} parent=5 // pred_check_branch
        %228 = sbr.rel (%p226) target = $region28
      $region27: #{pre_attention.1} parent=5 // pred_region
        // Predicated region
        $region29: #{pre_attention.1} parent=27 // pred_check
          %p229 = pneg %p56
        $region30: #{pre_attention.1} parent=27 // pred_check_branch
          %231 = sbr.rel (%p229) target = $region32
        $region31: #{pre_attention.1} parent=27 // pred_region
          %s232 = sand.u32 %s46, 1
          %s233 = scalar_lea.sflag [#allocation3], %s232
          %s234 = sand.u32 %s46, 1
          %s235 = smul.addr %s234, 256
          %s236 = scalar_lea.vmem [#allocation2], %s235
          %s237 = smul.u32 4, %s29
          %s239 = ssub.s32 4096, 4096
          %240 = vsyncadd %s233, %s239
          %s241 = smul.addr %s237, 16
          %s242 = sadd.s32 %s30, %s241
          %s243 = smul.addr %s242, 128
          %s244 = scalar_lea.hbm %s0, %s243
          %s245 = sshll.u32 %s236, 4
          %s246 = int_to_ptr.vmem [resolvable:$true] %s245
          %251 = dma.hbm_to_vmem [thread:$0]  %s244, 4096, %s246, %s233, 256, 128, 8
        $region32: #{pre_attention.1} parent=27 // pred_fallthru
          _
      $region28: #{pre_attention.1} parent=5 // pred_fallthru
        _
      %p252 = scmp.le.s32.totalorder 1, %s22
      %p253 = scmp.lt.s32.totalorder %s22, 3
      %p254 = pnand %p252, %p253
      %p255 = pneg %p254
      // Predicated region
      $region33: #{pre_attention.1} parent=5 // pred_check
        _
      $region34: #{pre_attention.1} parent=5 // pred_check_branch
        %257 = sbr.rel (%p254) target = $region36
      $region35: #{pre_attention.1} parent=5 // pred_region
        %s258 = ssub.s32 %s22, 1
        %s259 = sand.u32 %s49, 1
        %s260 = scalar_lea.sflag [#allocation3], %s259
        %s261 = sand.u32 %s49, 1
        %s262 = smul.addr %s261, 256
        %s263 = scalar_lea.vmem [#allocation2], %s262
        // Predicated region
        $region37: #{pre_attention.1} parent=35 // pred_check
          %p264 = pneg %p62
        $region38: #{pre_attention.1} parent=35 // pred_check_branch
          %266 = sbr.rel (%p264) target = $region40
        $region39: #{pre_attention.1} parent=35 // pred_region
          %267 = dma.done %s260, 4096
        $region40: #{pre_attention.1} parent=35 // pred_fallthru
          _
        // Predicated region
        $region41: #{pre_attention.1} parent=35 // pred_check
          %p268 = pneg %p83
        $region42: #{pre_attention.1} parent=35 // pred_check_branch
          %270 = sbr.rel (%p268) target = $region44
        $region43: #{pre_attention.1} parent=35 // pred_region
          %271 = dma.done [#allocation6], 512
        $region44: #{pre_attention.1} parent=35 // pred_fallthru
          _
        // Predicated region
        $region45: #{pre_attention.1} parent=35 // pred_check
          %p272 = pneg %p125
        $region46: #{pre_attention.1} parent=35 // pred_check_branch
          %274 = sbr.rel (%p272) target = $region48
        $region47: #{pre_attention.1} parent=35 // pred_region
          %275 = dma.done [#allocation6], 4096
        $region48: #{pre_attention.1} parent=35 // pred_fallthru
          _
        %s276 = sand.u32 %s49, 1
        %s277 = scalar_lea.sflag [#allocation3], %s276
        %s278 = sand.u32 %s49, 1
        %s279 = smul.addr %s278, 256
        %s280 = scalar_lea.vmem [#allocation2], %s279
        %p281 = pneg %p62
        %p282 = pneg %p59
        %p283 = pneg %p83
        %p284 = pneg %p80
        %p285 = pneg %p104
        %p286 = pneg %p101
        %p287 = pneg %p125
        %p288 = pneg %p122
        %p289 = pneg %p153
        %p290 = pneg %p150
        %s291 = sand.u32 %s140, 1
        %s292 = scalar_lea.sflag [#allocation4], %s291
        %s293 = sand.u32 %s140, 1
        %s294 = smul.addr %s293, 1024
        %s295 = scalar_lea.vmem [#allocation8], %s294
        %p296 = pneg %p181
        %p297 = pneg %p178
        %s298 = sand.u32 %s168, 1
        %s299 = scalar_lea.sflag [#allocation10], %s298
        %s300 = sand.u32 %s168, 1
        %s301 = smul.addr %s300, 4
        %s302 = scalar_lea.vmem [#allocation9], %s301
        %s303 = smul.u32 4, %s31
        %s304 = smul.u32 4, %s31
        %s305 = smul.u32 4, %s31
        %v306 = vld [vmem:[%s263] sm:$0xff]
        %v307 = vld [vmem:[%s263 + $0x8] sm:$0xff]
        %v308 = vld [vmem:[%s263 + $0x10] sm:$0xff]
        %v309 = vld [vmem:[%s263 + $0x18] sm:$0xff]
        %v310 = vld [vmem:[%s263 + $0x20] sm:$0xff]
        %v311 = vld [vmem:[%s263 + $0x28] sm:$0xff]
        %v312 = vld [vmem:[%s263 + $0x30] sm:$0xff]
        %v313 = vld [vmem:[%s263 + $0x38] sm:$0xff]
        %v314 = vld [vmem:[%s263 + $0x40] sm:$0xff]
        %v315 = vld [vmem:[%s263 + $0x48] sm:$0xff]
        %v316 = vld [vmem:[%s263 + $0x50] sm:$0xff]
        %v317 = vld [vmem:[%s263 + $0x58] sm:$0xff]
        %v318 = vld [vmem:[%s263 + $0x60] sm:$0xff]
        %v319 = vld [vmem:[%s263 + $0x68] sm:$0xff]
        %v320 = vld [vmem:[%s263 + $0x70] sm:$0xff]
        %v321 = vld [vmem:[%s263 + $0x78] sm:$0xff]
        %v322 = vld [vmem:[%s263 + $0x80] sm:$0xff]
        %v323 = vld [vmem:[%s263 + $0x88] sm:$0xff]
        %v324 = vld [vmem:[%s263 + $0x90] sm:$0xff]
        %v325 = vld [vmem:[%s263 + $0x98] sm:$0xff]
        %v326 = vld [vmem:[%s263 + $0xa0] sm:$0xff]
        %v327 = vld [vmem:[%s263 + $0xa8] sm:$0xff]
        %v328 = vld [vmem:[%s263 + $0xb0] sm:$0xff]
        %v329 = vld [vmem:[%s263 + $0xb8] sm:$0xff]
        %v330 = vld [vmem:[%s263 + $0xc0] sm:$0xff]
        %v331 = vld [vmem:[%s263 + $0xc8] sm:$0xff]
        %v332 = vld [vmem:[%s263 + $0xd0] sm:$0xff]
        %v333 = vld [vmem:[%s263 + $0xd8] sm:$0xff]
        %v334 = vld [vmem:[%s263 + $0xe0] sm:$0xff]
        %v335 = vld [vmem:[%s263 + $0xe8] sm:$0xff]
        %v336 = vld [vmem:[%s263 + $0xf0] sm:$0xff]
        %v337 = vld [vmem:[%s263 + $0xf8] sm:$0xff]
        %v338 = vld [vmem:[#allocation5] sm:$0xff]
        %v339 = vld [vmem:[#allocation5 + $0x8] sm:$0xff]
        %v340 = vld [vmem:[#allocation5 + $0x10] sm:$0xff]
        %v341 = vld [vmem:[#allocation5 + $0x18] sm:$0xff]
        %v342 = vld [vmem:[%s2] sm:$0x1]
        %v344 = vlaneseq
        %v345 = vshrl.u32 %v344, 7
        %v346 = vsub.s32 0, %v345
        %v347 = vrot.slane %v342, %v346
        %vm349 = vcmask 261120
        %v351 = vsel %vm349, %v306, 0
        %v354 = vsel %vm349, %v307, 0
        %v357 = vsel %vm349, %v308, 0
        %v360 = vsel %vm349, %v309, 0
        %v363 = vsel %vm349, %v310, 0
        %v366 = vsel %vm349, %v311, 0
        %v369 = vsel %vm349, %v312, 0
        %v372 = vsel %vm349, %v313, 0
        %v375 = vsel %vm349, %v314, 0
        %v378 = vsel %vm349, %v315, 0
        %v381 = vsel %vm349, %v316, 0
        %v384 = vsel %vm349, %v317, 0
        %v387 = vsel %vm349, %v318, 0
        %v390 = vsel %vm349, %v319, 0
        %v393 = vsel %vm349, %v320, 0
        %v396 = vsel %vm349, %v321, 0
        %v399 = vsel %vm349, %v322, 0
        %v402 = vsel %vm349, %v323, 0
        %v405 = vsel %vm349, %v324, 0
        %v408 = vsel %vm349, %v325, 0
        %v411 = vsel %vm349, %v326, 0
        %v414 = vsel %vm349, %v327, 0
        %v417 = vsel %vm349, %v328, 0
        %v420 = vsel %vm349, %v329, 0
        %v423 = vsel %vm349, %v330, 0
        %v426 = vsel %vm349, %v331, 0
        %v429 = vsel %vm349, %v332, 0
        %v432 = vsel %vm349, %v333, 0
        %v435 = vsel %vm349, %v334, 0
        %v438 = vsel %vm349, %v335, 0
        %v441 = vsel %vm349, %v336, 0
        %v444 = vsel %vm349, %v337, 0
        %446 = vmatprep.subr.mxu0 0.0
        %447 = vmatpush1.msra.mxu0 0.0
        %448 = vmatprep.subr.mxu0 0.0
        %449 = vmatpush1.msra.mxu0 0.0
        %450 = vmatprep.subr.mxu0 0.0
        %451 = vmatpush1.msra.mxu0 0.0
        %452 = vmatprep.subr.mxu0 0.0
        %453 = vmatpush1.msra.mxu0 0.0
        %454 = vmatprep.subr.mxu0 0.0
        %455 = vmatpush1.msra.mxu0 0.0
        %456 = vmatprep.subr.mxu0 0.0
        %457 = vmatpush1.msra.mxu0 0.0
        %458 = vmatprep.subr.mxu0 0.0
        %459 = vmatpush1.msra.mxu0 0.0
        %460 = vmatprep.subr.mxu0 0.0
        %461 = vmatpush1.msra.mxu0 0.0
        %462 = vmatprep.subr.mxu0 0.0
        %463 = vmatpush1.msra.mxu0 0.0
        %464 = vmatprep.subr.mxu0 0.0
        %465 = vmatpush1.msra.mxu0 0.0
        %466 = vmatprep.subr.mxu0 0.0
        %467 = vmatpush1.msra.mxu0 0.0
        %468 = vmatprep.subr.mxu0 0.0
        %469 = vmatpush1.msra.mxu0 0.0
        %470 = vmatprep.subr.mxu0 0.0
        %471 = vmatpush1.msra.mxu0 %v341
        %472 = vmatprep.subr.mxu0 0.0
        %473 = vmatpush1.msra.mxu0 %v340
        %474 = vmatprep.subr.mxu0 0.0
        %475 = vmatpush1.msra.mxu0 %v339
        %476 = vmatprep.subr.mxu0 0.0
        %477 = vmatpush1.msra.mxu0 %v338
        %478 = vmatprep.subr.mxu0 0.0
        %479 = vmatpush2.msra.mxu0 0.0
        %480 = vmatprep.subr.mxu0 0.0
        %481 = vmatpush2.msra.mxu0 0.0
        %482 = vmatprep.subr.mxu0 0.0
        %483 = vmatpush2.msra.mxu0 0.0
        %484 = vmatprep.subr.mxu0 0.0
        %485 = vmatpush2.msra.mxu0 0.0
        %486 = vmatprep.subr.mxu0 0.0
        %487 = vmatpush2.msra.mxu0 0.0
        %488 = vmatprep.subr.mxu0 0.0
        %489 = vmatpush2.msra.mxu0 0.0
        %490 = vmatprep.subr.mxu0 0.0
        %491 = vmatpush2.msra.mxu0 0.0
        %492 = vmatprep.subr.mxu0 0.0
        %493 = vmatpush2.msra.mxu0 0.0
        %494 = vmatprep.subr.mxu0 0.0
        %495 = vmatpush2.msra.mxu0 0.0
        %496 = vmatprep.subr.mxu0 0.0
        %497 = vmatpush2.msra.mxu0 0.0
        %498 = vmatprep.subr.mxu0 0.0
        %499 = vmatpush2.msra.mxu0 0.0
        %500 = vmatprep.subr.mxu0 0.0
        %501 = vmatpush2.msra.mxu0 0.0
        %502 = vmatprep.subr.mxu0 0.0
        %503 = vmatpush2.msra.mxu0 0.0
        %504 = vmatprep.subr.mxu0 0.0
        %505 = vmatpush2.msra.mxu0 0.0
        %506 = vmatprep.subr.mxu0 0.0
        %507 = vmatpush2.msra.mxu0 0.0
        %508 = vmatprep.subr.mxu0 0.0
        %509 = vmatpush2.msra.mxu0 0.0
        %510 = vmatprep.mubr.f32.mxu0 0.0
        %511 = vmatmul.mubr.f32.gmra.mxu0 %v351
        %v512 = vpop.f32.mrf.mxu0
        %v513 = vadd.f32 %v347, %v512
        %v514 = vpop.f32.mrf.mxu0
        %515 = vmatprep.mubr.f32.mxu0 0.0
        %516 = vmatmul.mubr.f32.gmra.mxu0 %v354
        %v517 = vpop.f32.mrf.mxu0
        %v518 = vadd.f32 %v347, %v517
        %v519 = vpop.f32.mrf.mxu0
        %520 = vmatprep.mubr.f32.mxu0 0.0
        %521 = vmatmul.mubr.f32.gmra.mxu0 %v357
        %v522 = vpop.f32.mrf.mxu0
        %v523 = vadd.f32 %v347, %v522
        %v524 = vpop.f32.mrf.mxu0
        %525 = vmatprep.mubr.f32.mxu0 0.0
        %526 = vmatmul.mubr.f32.gmra.mxu0 %v360
        %v527 = vpop.f32.mrf.mxu0
        %v528 = vadd.f32 %v347, %v527
        %v529 = vpop.f32.mrf.mxu0
        %530 = vmatprep.mubr.f32.mxu0 0.0
        %531 = vmatmul.mubr.f32.gmra.mxu0 %v363
        %v532 = vpop.f32.mrf.mxu0
        %v533 = vadd.f32 %v347, %v532
        %v534 = vpop.f32.mrf.mxu0
        %535 = vmatprep.mubr.f32.mxu0 0.0
        %536 = vmatmul.mubr.f32.gmra.mxu0 %v366
        %v537 = vpop.f32.mrf.mxu0
        %v538 = vadd.f32 %v347, %v537
        %v539 = vpop.f32.mrf.mxu0
        %540 = vmatprep.mubr.f32.mxu0 0.0
        %541 = vmatmul.mubr.f32.gmra.mxu0 %v369
        %v542 = vpop.f32.mrf.mxu0
        %v543 = vadd.f32 %v347, %v542
        %v544 = vpop.f32.mrf.mxu0
        %545 = vmatprep.mubr.f32.mxu0 0.0
        %546 = vmatmul.mubr.f32.gmra.mxu0 %v372
        %v547 = vpop.f32.mrf.mxu0
        %v548 = vadd.f32 %v347, %v547
        %v549 = vpop.f32.mrf.mxu0
        %550 = vmatprep.mubr.f32.mxu0 0.0
        %551 = vmatmul.mubr.f32.gmra.mxu0 %v375
        %v552 = vpop.f32.mrf.mxu0
        %v553 = vadd.f32 %v347, %v552
        %v554 = vpop.f32.mrf.mxu0
        %555 = vmatprep.mubr.f32.mxu0 0.0
        %556 = vmatmul.mubr.f32.gmra.mxu0 %v378
        %v557 = vpop.f32.mrf.mxu0
        %v558 = vadd.f32 %v347, %v557
        %v559 = vpop.f32.mrf.mxu0
        %560 = vmatprep.mubr.f32.mxu0 0.0
        %561 = vmatmul.mubr.f32.gmra.mxu0 %v381
        %v562 = vpop.f32.mrf.mxu0
        %v563 = vadd.f32 %v347, %v562
        %v564 = vpop.f32.mrf.mxu0
        %565 = vmatprep.mubr.f32.mxu0 0.0
        %566 = vmatmul.mubr.f32.gmra.mxu0 %v384
        %v567 = vpop.f32.mrf.mxu0
        %v568 = vadd.f32 %v347, %v567
        %v569 = vpop.f32.mrf.mxu0
        %570 = vmatprep.mubr.f32.mxu0 0.0
        %571 = vmatmul.mubr.f32.gmra.mxu0 %v387
        %v572 = vpop.f32.mrf.mxu0
        %v573 = vadd.f32 %v347, %v572
        %v574 = vpop.f32.mrf.mxu0
        %575 = vmatprep.mubr.f32.mxu0 0.0
        %576 = vmatmul.mubr.f32.gmra.mxu0 %v390
        %v577 = vpop.f32.mrf.mxu0
        %v578 = vadd.f32 %v347, %v577
        %v579 = vpop.f32.mrf.mxu0
        %580 = vmatprep.mubr.f32.mxu0 0.0
        %581 = vmatmul.mubr.f32.gmra.mxu0 %v393
        %v582 = vpop.f32.mrf.mxu0
        %v583 = vadd.f32 %v347, %v582
        %v584 = vpop.f32.mrf.mxu0
        %585 = vmatprep.mubr.f32.mxu0 0.0
        %586 = vmatmul.mubr.f32.gmra.mxu0 %v396
        %v587 = vpop.f32.mrf.mxu0
        %v588 = vadd.f32 %v347, %v587
        %v589 = vpop.f32.mrf.mxu0
        %590 = vmatprep.mubr.f32.mxu0 0.0
        %591 = vmatmul.mubr.f32.gmra.mxu0 %v399
        %v592 = vpop.f32.mrf.mxu0
        %v593 = vadd.f32 %v347, %v592
        %v594 = vpop.f32.mrf.mxu0
        %595 = vmatprep.mubr.f32.mxu0 0.0
        %596 = vmatmul.mubr.f32.gmra.mxu0 %v402
        %v597 = vpop.f32.mrf.mxu0
        %v598 = vadd.f32 %v347, %v597
        %v599 = vpop.f32.mrf.mxu0
        %600 = vmatprep.mubr.f32.mxu0 0.0
        %601 = vmatmul.mubr.f32.gmra.mxu0 %v405
        %v602 = vpop.f32.mrf.mxu0
        %v603 = vadd.f32 %v347, %v602
        %v604 = vpop.f32.mrf.mxu0
        %605 = vmatprep.mubr.f32.mxu0 0.0
        %606 = vmatmul.mubr.f32.gmra.mxu0 %v408
        %v607 = vpop.f32.mrf.mxu0
        %v608 = vadd.f32 %v347, %v607
        %v609 = vpop.f32.mrf.mxu0
        %610 = vmatprep.mubr.f32.mxu0 0.0
        %611 = vmatmul.mubr.f32.gmra.mxu0 %v411
        %v612 = vpop.f32.mrf.mxu0
        %v613 = vadd.f32 %v347, %v612
        %v614 = vpop.f32.mrf.mxu0
        %615 = vmatprep.mubr.f32.mxu0 0.0
        %616 = vmatmul.mubr.f32.gmra.mxu0 %v414
        %v617 = vpop.f32.mrf.mxu0
        %v618 = vadd.f32 %v347, %v617
        %v619 = vpop.f32.mrf.mxu0
        %620 = vmatprep.mubr.f32.mxu0 0.0
        %621 = vmatmul.mubr.f32.gmra.mxu0 %v417
        %v622 = vpop.f32.mrf.mxu0
        %v623 = vadd.f32 %v347, %v622
        %v624 = vpop.f32.mrf.mxu0
        %625 = vmatprep.mubr.f32.mxu0 0.0
        %626 = vmatmul.mubr.f32.gmra.mxu0 %v420
        %v627 = vpop.f32.mrf.mxu0
        %v628 = vadd.f32 %v347, %v627
        %v629 = vpop.f32.mrf.mxu0
        %630 = vmatprep.mubr.f32.mxu0 0.0
        %631 = vmatmul.mubr.f32.gmra.mxu0 %v423
        %v632 = vpop.f32.mrf.mxu0
        %v633 = vadd.f32 %v347, %v632
        %v634 = vpop.f32.mrf.mxu0
        %635 = vmatprep.mubr.f32.mxu0 0.0
        %636 = vmatmul.mubr.f32.gmra.mxu0 %v426
        %v637 = vpop.f32.mrf.mxu0
        %v638 = vadd.f32 %v347, %v637
        %v639 = vpop.f32.mrf.mxu0
        %640 = vmatprep.mubr.f32.mxu0 0.0
        %641 = vmatmul.mubr.f32.gmra.mxu0 %v429
        %v642 = vpop.f32.mrf.mxu0
        %v643 = vadd.f32 %v347, %v642
        %v644 = vpop.f32.mrf.mxu0
        %645 = vmatprep.mubr.f32.mxu0 0.0
        %646 = vmatmul.mubr.f32.gmra.mxu0 %v432
        %v647 = vpop.f32.mrf.mxu0
        %v648 = vadd.f32 %v347, %v647
        %v649 = vpop.f32.mrf.mxu0
        %650 = vmatprep.mubr.f32.mxu0 0.0
        %651 = vmatmul.mubr.f32.gmra.mxu0 %v435
        %v652 = vpop.f32.mrf.mxu0
        %v653 = vadd.f32 %v347, %v652
        %v654 = vpop.f32.mrf.mxu0
        %655 = vmatprep.mubr.f32.mxu0 0.0
        %656 = vmatmul.mubr.f32.gmra.mxu0 %v438
        %v657 = vpop.f32.mrf.mxu0
        %v658 = vadd.f32 %v347, %v657
        %v659 = vpop.f32.mrf.mxu0
        %660 = vmatprep.mubr.f32.mxu0 0.0
        %661 = vmatmul.mubr.f32.gmra.mxu0 %v441
        %v662 = vpop.f32.mrf.mxu0
        %v663 = vadd.f32 %v347, %v662
        %v664 = vpop.f32.mrf.mxu0
        %665 = vmatprep.mubr.f32.mxu0 0.0
        %666 = vmatmul.mubr.f32.gmra.mxu0 %v444
        %v667 = vpop.f32.mrf.mxu0
        %v668 = vadd.f32 %v347, %v667
        %v669 = vpop.f32.mrf.mxu0
        %670 = vdwg.mxu0
        %v671 = vmax.f32 %v513, 0.0
        %v672 = vmax.f32 %v518, 0.0
        %v673 = vmax.f32 %v523, 0.0
        %v674 = vmax.f32 %v528, 0.0
        %v675 = vmax.f32 %v533, 0.0
        %v676 = vmax.f32 %v538, 0.0
        %v677 = vmax.f32 %v543, 0.0
        %v678 = vmax.f32 %v548, 0.0
        %v679 = vmax.f32 %v553, 0.0
        %v680 = vmax.f32 %v558, 0.0
        %v681 = vmax.f32 %v563, 0.0
        %v682 = vmax.f32 %v568, 0.0
        %v683 = vmax.f32 %v573, 0.0
        %v684 = vmax.f32 %v578, 0.0
        %v685 = vmax.f32 %v583, 0.0
        %v686 = vmax.f32 %v588, 0.0
        %v687 = vmax.f32 %v593, 0.0
        %v688 = vmax.f32 %v598, 0.0
        %v689 = vmax.f32 %v603, 0.0
        %v690 = vmax.f32 %v608, 0.0
        %v691 = vmax.f32 %v613, 0.0
        %v692 = vmax.f32 %v618, 0.0
        %v693 = vmax.f32 %v623, 0.0
        %v694 = vmax.f32 %v628, 0.0
        %v695 = vmax.f32 %v633, 0.0
        %v696 = vmax.f32 %v638, 0.0
        %v697 = vmax.f32 %v643, 0.0
        %v698 = vmax.f32 %v648, 0.0
        %v699 = vmax.f32 %v653, 0.0
        %v700 = vmax.f32 %v658, 0.0
        %v701 = vmax.f32 %v663, 0.0
        %v702 = vmax.f32 %v668, 0.0
        %703 = vxpose.xlu0.b32.start [1/16] %v671, 128
        %704 = vxpose.xlu0.b32.cont [2/16] %v672, 128
        %705 = vxpose.xlu0.b32.cont [3/16] %v673, 128
        %706 = vxpose.xlu0.b32.cont [4/16] %v674, 128
        %707 = vxpose.xlu0.b32.cont [5/16] %v675, 128
        %708 = vxpose.xlu0.b32.cont [6/16] %v676, 128
        %709 = vxpose.xlu0.b32.cont [7/16] %v677, 128
        %710 = vxpose.xlu0.b32.cont [8/16] %v678, 128
        %711 = vxpose.xlu0.b32.cont [9/16] 0.0, 128
        %712 = vxpose.xlu0.b32.cont [10/16] 0.0, 128
        %713 = vxpose.xlu0.b32.cont [11/16] 0.0, 128
        %714 = vxpose.xlu0.b32.cont [12/16] 0.0, 128
        %715 = vxpose.xlu0.b32.cont [13/16] 0.0, 128
        %716 = vxpose.xlu0.b32.cont [14/16] 0.0, 128
        %717 = vxpose.xlu0.b32.cont [15/16] 0.0, 128
        %718 = vxpose.xlu0.b32.end [16/16] 0.0, 128
        %v719 = vpop.trf.xlu0
        %v720 = vpop.trf.xlu0
        %v721 = vpop.trf.xlu0
        %v722 = vpop.trf.xlu0
        %v723 = vpop.trf.xlu0
        %v724 = vpop.trf.xlu0
        %v725 = vpop.trf.xlu0
        %v726 = vpop.trf.xlu0
        %v727 = vpop.trf.xlu0
        %v728 = vpop.trf.xlu0
        %v729 = vpop.trf.xlu0
        %v730 = vpop.trf.xlu0
        %v731 = vpop.trf.xlu0
        %v732 = vpop.trf.xlu0
        %v733 = vpop.trf.xlu0
        %v734 = vpop.trf.xlu0
        %735 = vxpose.xlu0.b32.start [1/16] %v679, 128
        %736 = vxpose.xlu0.b32.cont [2/16] %v680, 128
        %737 = vxpose.xlu0.b32.cont [3/16] %v681, 128
        %738 = vxpose.xlu0.b32.cont [4/16] %v682, 128
        %739 = vxpose.xlu0.b32.cont [5/16] %v683, 128
        %740 = vxpose.xlu0.b32.cont [6/16] %v684, 128
        %741 = vxpose.xlu0.b32.cont [7/16] %v685, 128
        %742 = vxpose.xlu0.b32.cont [8/16] %v686, 128
        %743 = vxpose.xlu0.b32.cont [9/16] 0.0, 128
        %744 = vxpose.xlu0.b32.cont [10/16] 0.0, 128
        %745 = vxpose.xlu0.b32.cont [11/16] 0.0, 128
        %746 = vxpose.xlu0.b32.cont [12/16] 0.0, 128
        %747 = vxpose.xlu0.b32.cont [13/16] 0.0, 128
        %748 = vxpose.xlu0.b32.cont [14/16] 0.0, 128
        %749 = vxpose.xlu0.b32.cont [15/16] 0.0, 128
        %750 = vxpose.xlu0.b32.end [16/16] 0.0, 128
        %v751 = vpop.trf.xlu0
        %v752 = vpop.trf.xlu0
        %v753 = vpop.trf.xlu0
        %v754 = vpop.trf.xlu0
        %v755 = vpop.trf.xlu0
        %v756 = vpop.trf.xlu0
        %v757 = vpop.trf.xlu0
        %v758 = vpop.trf.xlu0
        %v759 = vpop.trf.xlu0
        %v760 = vpop.trf.xlu0
        %v761 = vpop.trf.xlu0
        %v762 = vpop.trf.xlu0
        %v763 = vpop.trf.xlu0
        %v764 = vpop.trf.xlu0
        %v765 = vpop.trf.xlu0
        %v766 = vpop.trf.xlu0
        %767 = vxpose.xlu0.b32.start [1/16] %v687, 128
        %768 = vxpose.xlu0.b32.cont [2/16] %v688, 128
        %769 = vxpose.xlu0.b32.cont [3/16] %v689, 128
        %770 = vxpose.xlu0.b32.cont [4/16] %v690, 128
        %771 = vxpose.xlu0.b32.cont [5/16] %v691, 128
        %772 = vxpose.xlu0.b32.cont [6/16] %v692, 128
        %773 = vxpose.xlu0.b32.cont [7/16] %v693, 128
        %774 = vxpose.xlu0.b32.cont [8/16] %v694, 128
        %775 = vxpose.xlu0.b32.cont [9/16] 0.0, 128
        %776 = vxpose.xlu0.b32.cont [10/16] 0.0, 128
        %777 = vxpose.xlu0.b32.cont [11/16] 0.0, 128
        %778 = vxpose.xlu0.b32.cont [12/16] 0.0, 128
        %779 = vxpose.xlu0.b32.cont [13/16] 0.0, 128
        %780 = vxpose.xlu0.b32.cont [14/16] 0.0, 128
        %781 = vxpose.xlu0.b32.cont [15/16] 0.0, 128
        %782 = vxpose.xlu0.b32.end [16/16] 0.0, 128
        %v783 = vpop.trf.xlu0
        %v784 = vpop.trf.xlu0
        %v785 = vpop.trf.xlu0
        %v786 = vpop.trf.xlu0
        %v787 = vpop.trf.xlu0
        %v788 = vpop.trf.xlu0
        %v789 = vpop.trf.xlu0
        %v790 = vpop.trf.xlu0
        %v791 = vpop.trf.xlu0
        %v792 = vpop.trf.xlu0
        %v793 = vpop.trf.xlu0
        %v794 = vpop.trf.xlu0
        %v795 = vpop.trf.xlu0
        %v796 = vpop.trf.xlu0
        %v797 = vpop.trf.xlu0
        %v798 = vpop.trf.xlu0
        %799 = vxpose.xlu0.b32.start [1/16] %v695, 128
        %800 = vxpose.xlu0.b32.cont [2/16] %v696, 128
        %801 = vxpose.xlu0.b32.cont [3/16] %v697, 128
        %802 = vxpose.xlu0.b32.cont [4/16] %v698, 128
        %803 = vxpose.xlu0.b32.cont [5/16] %v699, 128
        %804 = vxpose.xlu0.b32.cont [6/16] %v700, 128
        %805 = vxpose.xlu0.b32.cont [7/16] %v701, 128
        %806 = vxpose.xlu0.b32.cont [8/16] %v702, 128
        %807 = vxpose.xlu0.b32.cont [9/16] 0.0, 128
        %808 = vxpose.xlu0.b32.cont [10/16] 0.0, 128
        %809 = vxpose.xlu0.b32.cont [11/16] 0.0, 128
        %810 = vxpose.xlu0.b32.cont [12/16] 0.0, 128
        %811 = vxpose.xlu0.b32.cont [13/16] 0.0, 128
        %812 = vxpose.xlu0.b32.cont [14/16] 0.0, 128
        %813 = vxpose.xlu0.b32.cont [15/16] 0.0, 128
        %814 = vxpose.xlu0.b32.end [16/16] 0.0, 128
        %v815 = vpop.trf.xlu0
        %v816 = vpop.trf.xlu0
        %v817 = vpop.trf.xlu0
        %v818 = vpop.trf.xlu0
        %v819 = vpop.trf.xlu0
        %v820 = vpop.trf.xlu0
        %v821 = vpop.trf.xlu0
        %v822 = vpop.trf.xlu0
        %v823 = vpop.trf.xlu0
        %v824 = vpop.trf.xlu0
        %v825 = vpop.trf.xlu0
        %v826 = vpop.trf.xlu0
        %v827 = vpop.trf.xlu0
        %v828 = vpop.trf.xlu0
        %v829 = vpop.trf.xlu0
        %v830 = vpop.trf.xlu0
        %831 = vxpose.xlu0.b32.start [1/16] %v719, 128
        %832 = vxpose.xlu0.b32.cont [2/16] 0.0, 128
        %833 = vxpose.xlu0.b32.cont [3/16] 0.0, 128
        %834 = vxpose.xlu0.b32.cont [4/16] 0.0, 128
        %835 = vxpose.xlu0.b32.cont [5/16] 0.0, 128
        %836 = vxpose.xlu0.b32.cont [6/16] 0.0, 128
        %837 = vxpose.xlu0.b32.cont [7/16] 0.0, 128
        %838 = vxpose.xlu0.b32.cont [8/16] 0.0, 128
        %839 = vxpose.xlu0.b32.cont [9/16] 0.0, 128
        %840 = vxpose.xlu0.b32.cont [10/16] 0.0, 128
        %841 = vxpose.xlu0.b32.cont [11/16] 0.0, 128
        %842 = vxpose.xlu0.b32.cont [12/16] 0.0, 128
        %843 = vxpose.xlu0.b32.cont [13/16] 0.0, 128
        %844 = vxpose.xlu0.b32.cont [14/16] 0.0, 128
        %845 = vxpose.xlu0.b32.cont [15/16] 0.0, 128
        %846 = vxpose.xlu0.b32.end [16/16] 0.0, 128
        %v847 = vpop.trf.xlu0
        %v848 = vpop.trf.xlu0
        %v849 = vpop.trf.xlu0
        %v850 = vpop.trf.xlu0
        %v851 = vpop.trf.xlu0
        %v852 = vpop.trf.xlu0
        %v853 = vpop.trf.xlu0
        %v854 = vpop.trf.xlu0
        %v855 = vpop.trf.xlu0
        %v856 = vpop.trf.xlu0
        %v857 = vpop.trf.xlu0
        %v858 = vpop.trf.xlu0
        %v859 = vpop.trf.xlu0
        %v860 = vpop.trf.xlu0
        %v861 = vpop.trf.xlu0
        %v862 = vpop.trf.xlu0
        %863 = vxpose.xlu0.b32.start [1/16] %v720, 128
        %864 = vxpose.xlu0.b32.cont [2/16] 0.0, 128
        %865 = vxpose.xlu0.b32.cont [3/16] 0.0, 128
        %866 = vxpose.xlu0.b32.cont [4/16] 0.0, 128
        %867 = vxpose.xlu0.b32.cont [5/16] 0.0, 128
        %868 = vxpose.xlu0.b32.cont [6/16] 0.0, 128
        %869 = vxpose.xlu0.b32.cont [7/16] 0.0, 128
        %870 = vxpose.xlu0.b32.cont [8/16] 0.0, 128
        %871 = vxpose.xlu0.b32.cont [9/16] 0.0, 128
        %872 = vxpose.xlu0.b32.cont [10/16] 0.0, 128
        %873 = vxpose.xlu0.b32.cont [11/16] 0.0, 128
        %874 = vxpose.xlu0.b32.cont [12/16] 0.0, 128
        %875 = vxpose.xlu0.b32.cont [13/16] 0.0, 128
        %876 = vxpose.xlu0.b32.cont [14/16] 0.0, 128
        %877 = vxpose.xlu0.b32.cont [15/16] 0.0, 128
        %878 = vxpose.xlu0.b32.end [16/16] 0.0, 128
        %v879 = vpop.trf.xlu0
        %v880 = vpop.trf.xlu0
        %v881 = vpop.trf.xlu0
        %v882 = vpop.trf.xlu0
        %v883 = vpop.trf.xlu0
        %v884 = vpop.trf.xlu0
        %v885 = vpop.trf.xlu0
        %v886 = vpop.trf.xlu0
        %v887 = vpop.trf.xlu0
        %v888 = vpop.trf.xlu0
        %v889 = vpop.trf.xlu0
        %v890 = vpop.trf.xlu0
        %v891 = vpop.trf.xlu0
        %v892 = vpop.trf.xlu0
        %v893 = vpop.trf.xlu0
        %v894 = vpop.trf.xlu0
        %895 = vxpose.xlu0.b32.start [1/16] %v721, 128
        %896 = vxpose.xlu0.b32.cont [2/16] 0.0, 128
        %897 = vxpose.xlu0.b32.cont [3/16] 0.0, 128
        %898 = vxpose.xlu0.b32.cont [4/16] 0.0, 128
        %899 = vxpose.xlu0.b32.cont [5/16] 0.0, 128
        %900 = vxpose.xlu0.b32.cont [6/16] 0.0, 128
        %901 = vxpose.xlu0.b32.cont [7/16] 0.0, 128
        %902 = vxpose.xlu0.b32.cont [8/16] 0.0, 128
        %903 = vxpose.xlu0.b32.cont [9/16] 0.0, 128
        %904 = vxpose.xlu0.b32.cont [10/16] 0.0, 128
        %905 = vxpose.xlu0.b32.cont [11/16] 0.0, 128
        %906 = vxpose.xlu0.b32.cont [12/16] 0.0, 128
        %907 = vxpose.xlu0.b32.cont [13/16] 0.0, 128
        %908 = vxpose.xlu0.b32.cont [14/16] 0.0, 128
        %909 = vxpose.xlu0.b32.cont [15/16] 0.0, 128
        %910 = vxpose.xlu0.b32.end [16/16] 0.0, 128
        %v911 = vpop.trf.xlu0
        %v912 = vpop.trf.xlu0
        %v913 = vpop.trf.xlu0
        %v914 = vpop.trf.xlu0
        %v915 = vpop.trf.xlu0
        %v916 = vpop.trf.xlu0
        %v917 = vpop.trf.xlu0
        %v918 = vpop.trf.xlu0
        %v919 = vpop.trf.xlu0
        %v920 = vpop.trf.xlu0
        %v921 = vpop.trf.xlu0
        %v922 = vpop.trf.xlu0
        %v923 = vpop.trf.xlu0
        %v924 = vpop.trf.xlu0
        %v925 = vpop.trf.xlu0
        %v926 = vpop.trf.xlu0
        %927 = vxpose.xlu0.b32.start [1/16] %v722, 128
        %928 = vxpose.xlu0.b32.cont [2/16] 0.0, 128
        %929 = vxpose.xlu0.b32.cont [3/16] 0.0, 128
        %930 = vxpose.xlu0.b32.cont [4/16] 0.0, 128
        %931 = vxpose.xlu0.b32.cont [5/16] 0.0, 128
        %932 = vxpose.xlu0.b32.cont [6/16] 0.0, 128
        %933 = vxpose.xlu0.b32.cont [7/16] 0.0, 128
        %934 = vxpose.xlu0.b32.cont [8/16] 0.0, 128
        %935 = vxpose.xlu0.b32.cont [9/16] 0.0, 128
        %936 = vxpose.xlu0.b32.cont [10/16] 0.0, 128
        %937 = vxpose.xlu0.b32.cont [11/16] 0.0, 128
        %938 = vxpose.xlu0.b32.cont [12/16] 0.0, 128
        %939 = vxpose.xlu0.b32.cont [13/16] 0.0, 128
        %940 = vxpose.xlu0.b32.cont [14/16] 0.0, 128
        %941 = vxpose.xlu0.b32.cont [15/16] 0.0, 128
        %942 = vxpose.xlu0.b32.end [16/16] 0.0, 128
        %v943 = vpop.trf.xlu0
        %v944 = vpop.trf.xlu0
        %v945 = vpop.trf.xlu0
        %v946 = vpop.trf.xlu0
        %v947 = vpop.trf.xlu0
        %v948 = vpop.trf.xlu0
        %v949 = vpop.trf.xlu0
        %v950 = vpop.trf.xlu0
        %v951 = vpop.trf.xlu0
        %v952 = vpop.trf.xlu0
        %v953 = vpop.trf.xlu0
        %v954 = vpop.trf.xlu0
        %v955 = vpop.trf.xlu0
        %v956 = vpop.trf.xlu0
        %v957 = vpop.trf.xlu0
        %v958 = vpop.trf.xlu0
        %959 = vxpose.xlu0.b32.start [1/16] %v751, 128
        %960 = vxpose.xlu0.b32.cont [2/16] 0.0, 128
        %961 = vxpose.xlu0.b32.cont [3/16] 0.0, 128
        %962 = vxpose.xlu0.b32.cont [4/16] 0.0, 128
        %963 = vxpose.xlu0.b32.cont [5/16] 0.0, 128
        %964 = vxpose.xlu0.b32.cont [6/16] 0.0, 128
        %965 = vxpose.xlu0.b32.cont [7/16] 0.0, 128
        %966 = vxpose.xlu0.b32.cont [8/16] 0.0, 128
        %967 = vxpose.xlu0.b32.cont [9/16] 0.0, 128
        %968 = vxpose.xlu0.b32.cont [10/16] 0.0, 128
        %969 = vxpose.xlu0.b32.cont [11/16] 0.0, 128
        %970 = vxpose.xlu0.b32.cont [12/16] 0.0, 128
        %971 = vxpose.xlu0.b32.cont [13/16] 0.0, 128
        %972 = vxpose.xlu0.b32.cont [14/16] 0.0, 128
        %973 = vxpose.xlu0.b32.cont [15/16] 0.0, 128
        %974 = vxpose.xlu0.b32.end [16/16] 0.0, 128
        %v975 = vpop.trf.xlu0
        %v976 = vpop.trf.xlu0
        %v977 = vpop.trf.xlu0
        %v978 = vpop.trf.xlu0
        %v979 = vpop.trf.xlu0
        %v980 = vpop.trf.xlu0
        %v981 = vpop.trf.xlu0
        %v982 = vpop.trf.xlu0
        %v983 = vpop.trf.xlu0
        %v984 = vpop.trf.xlu0
        %v985 = vpop.trf.xlu0
        %v986 = vpop.trf.xlu0
        %v987 = vpop.trf.xlu0
        %v988 = vpop.trf.xlu0
        %v989 = vpop.trf.xlu0
        %v990 = vpop.trf.xlu0
        %991 = vxpose.xlu0.b32.start [1/16] %v752, 128
        %992 = vxpose.xlu0.b32.cont [2/16] 0.0, 128
        %993 = vxpose.xlu0.b32.cont [3/16] 0.0, 128
        %994 = vxpose.xlu0.b32.cont [4/16] 0.0, 128
        %995 = vxpose.xlu0.b32.cont [5/16] 0.0, 128
        %996 = vxpose.xlu0.b32.cont [6/16] 0.0, 128
        %997 = vxpose.xlu0.b32.cont [7/16] 0.0, 128
        %998 = vxpose.xlu0.b32.cont [8/16] 0.0, 128
        %999 = vxpose.xlu0.b32.cont [9/16] 0.0, 128
        %1000 = vxpose.xlu0.b32.cont [10/16] 0.0, 128
        %1001 = vxpose.xlu0.b32.cont [11/16] 0.0, 128
        %1002 = vxpose.xlu0.b32.cont [12/16] 0.0, 128
        %1003 = vxpose.xlu0.b32.cont [13/16] 0.0, 128
        %1004 = vxpose.xlu0.b32.cont [14/16] 0.0, 128
        %1005 = vxpose.xlu0.b32.cont [15/16] 0.0, 128
        %1006 = vxpose.xlu0.b32.end [16/16] 0.0, 128
        %v1007 = vpop.trf.xlu0
        %v1008 = vpop.trf.xlu0
        %v1009 = vpop.trf.xlu0
        %v1010 = vpop.trf.xlu0
        %v1011 = vpop.trf.xlu0
        %v1012 = vpop.trf.xlu0
        %v1013 = vpop.trf.xlu0
        %v1014 = vpop.trf.xlu0
        %v1015 = vpop.trf.xlu0
        %v1016 = vpop.trf.xlu0
        %v1017 = vpop.trf.xlu0
        %v1018 = vpop.trf.xlu0
        %v1019 = vpop.trf.xlu0
        %v1020 = vpop.trf.xlu0
        %v1021 = vpop.trf.xlu0
        %v1022 = vpop.trf.xlu0
        %1023 = vxpose.xlu0.b32.start [1/16] %v753, 128
        %1024 = vxpose.xlu0.b32.cont [2/16] 0.0, 128
        %1025 = vxpose.xlu0.b32.cont [3/16] 0.0, 128
        %1026 = vxpose.xlu0.b32.cont [4/16] 0.0, 128
        %1027 = vxpose.xlu0.b32.cont [5/16] 0.0, 128
        %1028 = vxpose.xlu0.b32.cont [6/16] 0.0, 128
        %1029 = vxpose.xlu0.b32.cont [7/16] 0.0, 128
        %1030 = vxpose.xlu0.b32.cont [8/16] 0.0, 128
        %1031 = vxpose.xlu0.b32.cont [9/16] 0.0, 128
        %1032 = vxpose.xlu0.b32.cont [10/16] 0.0, 128
        %1033 = vxpose.xlu0.b32.cont [11/16] 0.0, 128
        %1034 = vxpose.xlu0.b32.cont [12/16] 0.0, 128
        %1035 = vxpose.xlu0.b32.cont [13/16] 0.0, 128
        %1036 = vxpose.xlu0.b32.cont [14/16] 0.0, 128
        %1037 = vxpose.xlu0.b32.cont [15/16] 0.0, 128
        %1038 = vxpose.xlu0.b32.end [16/16] 0.0, 128
        %v1039 = vpop.trf.xlu0
        %v1040 = vpop.trf.xlu0
        %v1041 = vpop.trf.xlu0
        %v1042 = vpop.trf.xlu0
        %v1043 = vpop.trf.xlu0
        %v1044 = vpop.trf.xlu0
        %v1045 = vpop.trf.xlu0
        %v1046 = vpop.trf.xlu0
        %v1047 = vpop.trf.xlu0
        %v1048 = vpop.trf.xlu0
        %v1049 = vpop.trf.xlu0
        %v1050 = vpop.trf.xlu0
        %v1051 = vpop.trf.xlu0
        %v1052 = vpop.trf.xlu0
        %v1053 = vpop.trf.xlu0
        %v1054 = vpop.trf.xlu0
        %1055 = vxpose.xlu0.b32.start [1/16] %v754, 128
        %1056 = vxpose.xlu0.b32.cont [2/16] 0.0, 128
        %1057 = vxpose.xlu0.b32.cont [3/16] 0.0, 128
        %1058 = vxpose.xlu0.b32.cont [4/16] 0.0, 128
        %1059 = vxpose.xlu0.b32.cont [5/16] 0.0, 128
        %1060 = vxpose.xlu0.b32.cont [6/16] 0.0, 128
        %1061 = vxpose.xlu0.b32.cont [7/16] 0.0, 128
        %1062 = vxpose.xlu0.b32.cont [8/16] 0.0, 128
        %1063 = vxpose.xlu0.b32.cont [9/16] 0.0, 128
        %1064 = vxpose.xlu0.b32.cont [10/16] 0.0, 128
        %1065 = vxpose.xlu0.b32.cont [11/16] 0.0, 128
        %1066 = vxpose.xlu0.b32.cont [12/16] 0.0, 128
        %1067 = vxpose.xlu0.b32.cont [13/16] 0.0, 128
        %1068 = vxpose.xlu0.b32.cont [14/16] 0.0, 128
        %1069 = vxpose.xlu0.b32.cont [15/16] 0.0, 128
        %1070 = vxpose.xlu0.b32.end [16/16] 0.0, 128
        %v1071 = vpop.trf.xlu0
        %v1072 = vpop.trf.xlu0
        %v1073 = vpop.trf.xlu0
        %v1074 = vpop.trf.xlu0
        %v1075 = vpop.trf.xlu0
        %v1076 = vpop.trf.xlu0
        %v1077 = vpop.trf.xlu0
        %v1078 = vpop.trf.xlu0
        %v1079 = vpop.trf.xlu0
        %v1080 = vpop.trf.xlu0
        %v1081 = vpop.trf.xlu0
        %v1082 = vpop.trf.xlu0
        %v1083 = vpop.trf.xlu0
        %v1084 = vpop.trf.xlu0
        %v1085 = vpop.trf.xlu0
        %v1086 = vpop.trf.xlu0
        %1087 = vxpose.xlu0.b32.start [1/16] %v783, 128
        %1088 = vxpose.xlu0.b32.cont [2/16] 0.0, 128
        %1089 = vxpose.xlu0.b32.cont [3/16] 0.0, 128
        %1090 = vxpose.xlu0.b32.cont [4/16] 0.0, 128
        %1091 = vxpose.xlu0.b32.cont [5/16] 0.0, 128
        %1092 = vxpose.xlu0.b32.cont [6/16] 0.0, 128
        %1093 = vxpose.xlu0.b32.cont [7/16] 0.0, 128
        %1094 = vxpose.xlu0.b32.cont [8/16] 0.0, 128
        %1095 = vxpose.xlu0.b32.cont [9/16] 0.0, 128
        %1096 = vxpose.xlu0.b32.cont [10/16] 0.0, 128
        %1097 = vxpose.xlu0.b32.cont [11/16] 0.0, 128
        %1098 = vxpose.xlu0.b32.cont [12/16] 0.0, 128
        %1099 = vxpose.xlu0.b32.cont [13/16] 0.0, 128
        %1100 = vxpose.xlu0.b32.cont [14/16] 0.0, 128
        %1101 = vxpose.xlu0.b32.cont [15/16] 0.0, 128
        %1102 = vxpose.xlu0.b32.end [16/16] 0.0, 128
        %v1103 = vpop.trf.xlu0
        %v1104 = vpop.trf.xlu0
        %v1105 = vpop.trf.xlu0
        %v1106 = vpop.trf.xlu0
        %v1107 = vpop.trf.xlu0
        %v1108 = vpop.trf.xlu0
        %v1109 = vpop.trf.xlu0
        %v1110 = vpop.trf.xlu0
        %v1111 = vpop.trf.xlu0
        %v1112 = vpop.trf.xlu0
        %v1113 = vpop.trf.xlu0
        %v1114 = vpop.trf.xlu0
        %v1115 = vpop.trf.xlu0
        %v1116 = vpop.trf.xlu0
        %v1117 = vpop.trf.xlu0
        %v1118 = vpop.trf.xlu0
        %1119 = vxpose.xlu0.b32.start [1/16] %v784, 128
        %1120 = vxpose.xlu0.b32.cont [2/16] 0.0, 128
        %1121 = vxpose.xlu0.b32.cont [3/16] 0.0, 128
        %1122 = vxpose.xlu0.b32.cont [4/16] 0.0, 128
        %1123 = vxpose.xlu0.b32.cont [5/16] 0.0, 128
        %1124 = vxpose.xlu0.b32.cont [6/16] 0.0, 128
        %1125 = vxpose.xlu0.b32.cont [7/16] 0.0, 128
        %1126 = vxpose.xlu0.b32.cont [8/16] 0.0, 128
        %1127 = vxpose.xlu0.b32.cont [9/16] 0.0, 128
        %1128 = vxpose.xlu0.b32.cont [10/16] 0.0, 128
        %1129 = vxpose.xlu0.b32.cont [11/16] 0.0, 128
        %1130 = vxpose.xlu0.b32.cont [12/16] 0.0, 128
        %1131 = vxpose.xlu0.b32.cont [13/16] 0.0, 128
        %1132 = vxpose.xlu0.b32.cont [14/16] 0.0, 128
        %1133 = vxpose.xlu0.b32.cont [15/16] 0.0, 128
        %1134 = vxpose.xlu0.b32.end [16/16] 0.0, 128
        %v1135 = vpop.trf.xlu0
        %v1136 = vpop.trf.xlu0
        %v1137 = vpop.trf.xlu0
        %v1138 = vpop.trf.xlu0
        %v1139 = vpop.trf.xlu0
        %v1140 = vpop.trf.xlu0
        %v1141 = vpop.trf.xlu0
        %v1142 = vpop.trf.xlu0
        %v1143 = vpop.trf.xlu0
        %v1144 = vpop.trf.xlu0
        %v1145 = vpop.trf.xlu0
        %v1146 = vpop.trf.xlu0
        %v1147 = vpop.trf.xlu0
        %v1148 = vpop.trf.xlu0
        %v1149 = vpop.trf.xlu0
        %v1150 = vpop.trf.xlu0
        %1151 = vxpose.xlu0.b32.start [1/16] %v785, 128
        %1152 = vxpose.xlu0.b32.cont [2/16] 0.0, 128
        %1153 = vxpose.xlu0.b32.cont [3/16] 0.0, 128
        %1154 = vxpose.xlu0.b32.cont [4/16] 0.0, 128
        %1155 = vxpose.xlu0.b32.cont [5/16] 0.0, 128
        %1156 = vxpose.xlu0.b32.cont [6/16] 0.0, 128
        %1157 = vxpose.xlu0.b32.cont [7/16] 0.0, 128
        %1158 = vxpose.xlu0.b32.cont [8/16] 0.0, 128
        %1159 = vxpose.xlu0.b32.cont [9/16] 0.0, 128
        %1160 = vxpose.xlu0.b32.cont [10/16] 0.0, 128
        %1161 = vxpose.xlu0.b32.cont [11/16] 0.0, 128
        %1162 = vxpose.xlu0.b32.cont [12/16] 0.0, 128
        %1163 = vxpose.xlu0.b32.cont [13/16] 0.0, 128
        %1164 = vxpose.xlu0.b32.cont [14/16] 0.0, 128
        %1165 = vxpose.xlu0.b32.cont [15/16] 0.0, 128
        %1166 = vxpose.xlu0.b32.end [16/16] 0.0, 128
        %v1167 = vpop.trf.xlu0
        %v1168 = vpop.trf.xlu0
        %v1169 = vpop.trf.xlu0
        %v1170 = vpop.trf.xlu0
        %v1171 = vpop.trf.xlu0
        %v1172 = vpop.trf.xlu0
        %v1173 = vpop.trf.xlu0
        %v1174 = vpop.trf.xlu0
        %v1175 = vpop.trf.xlu0
        %v1176 = vpop.trf.xlu0
        %v1177 = vpop.trf.xlu0
        %v1178 = vpop.trf.xlu0
        %v1179 = vpop.trf.xlu0
        %v1180 = vpop.trf.xlu0
        %v1181 = vpop.trf.xlu0
        %v1182 = vpop.trf.xlu0
        %1183 = vxpose.xlu0.b32.start [1/16] %v786, 128
        %1184 = vxpose.xlu0.b32.cont [2/16] 0.0, 128
        %1185 = vxpose.xlu0.b32.cont [3/16] 0.0, 128
        %1186 = vxpose.xlu0.b32.cont [4/16] 0.0, 128
        %1187 = vxpose.xlu0.b32.cont [5/16] 0.0, 128
        %1188 = vxpose.xlu0.b32.cont [6/16] 0.0, 128
        %1189 = vxpose.xlu0.b32.cont [7/16] 0.0, 128
        %1190 = vxpose.xlu0.b32.cont [8/16] 0.0, 128
        %1191 = vxpose.xlu0.b32.cont [9/16] 0.0, 128
        %1192 = vxpose.xlu0.b32.cont [10/16] 0.0, 128
        %1193 = vxpose.xlu0.b32.cont [11/16] 0.0, 128
        %1194 = vxpose.xlu0.b32.cont [12/16] 0.0, 128
        %1195 = vxpose.xlu0.b32.cont [13/16] 0.0, 128
        %1196 = vxpose.xlu0.b32.cont [14/16] 0.0, 128
        %1197 = vxpose.xlu0.b32.cont [15/16] 0.0, 128
        %1198 = vxpose.xlu0.b32.end [16/16] 0.0, 128
        %v1199 = vpop.trf.xlu0
        %v1200 = vpop.trf.xlu0
        %v1201 = vpop.trf.xlu0
        %v1202 = vpop.trf.xlu0
        %v1203 = vpop.trf.xlu0
        %v1204 = vpop.trf.xlu0
        %v1205 = vpop.trf.xlu0
        %v1206 = vpop.trf.xlu0
        %v1207 = vpop.trf.xlu0
        %v1208 = vpop.trf.xlu0
        %v1209 = vpop.trf.xlu0
        %v1210 = vpop.trf.xlu0
        %v1211 = vpop.trf.xlu0
        %v1212 = vpop.trf.xlu0
        %v1213 = vpop.trf.xlu0
        %v1214 = vpop.trf.xlu0
        %1215 = vxpose.xlu0.b32.start [1/16] %v815, 128
        %1216 = vxpose.xlu0.b32.cont [2/16] 0.0, 128
        %1217 = vxpose.xlu0.b32.cont [3/16] 0.0, 128
        %1218 = vxpose.xlu0.b32.cont [4/16] 0.0, 128
        %1219 = vxpose.xlu0.b32.cont [5/16] 0.0, 128
        %1220 = vxpose.xlu0.b32.cont [6/16] 0.0, 128
        %1221 = vxpose.xlu0.b32.cont [7/16] 0.0, 128
        %1222 = vxpose.xlu0.b32.cont [8/16] 0.0, 128
        %1223 = vxpose.xlu0.b32.cont [9/16] 0.0, 128
        %1224 = vxpose.xlu0.b32.cont [10/16] 0.0, 128
        %1225 = vxpose.xlu0.b32.cont [11/16] 0.0, 128
        %1226 = vxpose.xlu0.b32.cont [12/16] 0.0, 128
        %1227 = vxpose.xlu0.b32.cont [13/16] 0.0, 128
        %1228 = vxpose.xlu0.b32.cont [14/16] 0.0, 128
        %1229 = vxpose.xlu0.b32.cont [15/16] 0.0, 128
        %1230 = vxpose.xlu0.b32.end [16/16] 0.0, 128
        %v1231 = vpop.trf.xlu0
        %v1232 = vpop.trf.xlu0
        %v1233 = vpop.trf.xlu0
        %v1234 = vpop.trf.xlu0
        %v1235 = vpop.trf.xlu0
        %v1236 = vpop.trf.xlu0
        %v1237 = vpop.trf.xlu0
        %v1238 = vpop.trf.xlu0
        %v1239 = vpop.trf.xlu0
        %v1240 = vpop.trf.xlu0
        %v1241 = vpop.trf.xlu0
        %v1242 = vpop.trf.xlu0
        %v1243 = vpop.trf.xlu0
        %v1244 = vpop.trf.xlu0
        %v1245 = vpop.trf.xlu0
        %v1246 = vpop.trf.xlu0
        %1247 = vxpose.xlu0.b32.start [1/16] %v816, 128
        %1248 = vxpose.xlu0.b32.cont [2/16] 0.0, 128
        %1249 = vxpose.xlu0.b32.cont [3/16] 0.0, 128
        %1250 = vxpose.xlu0.b32.cont [4/16] 0.0, 128
        %1251 = vxpose.xlu0.b32.cont [5/16] 0.0, 128
        %1252 = vxpose.xlu0.b32.cont [6/16] 0.0, 128
        %1253 = vxpose.xlu0.b32.cont [7/16] 0.0, 128
        %1254 = vxpose.xlu0.b32.cont [8/16] 0.0, 128
        %1255 = vxpose.xlu0.b32.cont [9/16] 0.0, 128
        %1256 = vxpose.xlu0.b32.cont [10/16] 0.0, 128
        %1257 = vxpose.xlu0.b32.cont [11/16] 0.0, 128
        %1258 = vxpose.xlu0.b32.cont [12/16] 0.0, 128
        %1259 = vxpose.xlu0.b32.cont [13/16] 0.0, 128
        %1260 = vxpose.xlu0.b32.cont [14/16] 0.0, 128
        %1261 = vxpose.xlu0.b32.cont [15/16] 0.0, 128
        %1262 = vxpose.xlu0.b32.end [16/16] 0.0, 128
        %v1263 = vpop.trf.xlu0
        %v1264 = vpop.trf.xlu0
        %v1265 = vpop.trf.xlu0
        %v1266 = vpop.trf.xlu0
        %v1267 = vpop.trf.xlu0
        %v1268 = vpop.trf.xlu0
        %v1269 = vpop.trf.xlu0
        %v1270 = vpop.trf.xlu0
        %v1271 = vpop.trf.xlu0
        %v1272 = vpop.trf.xlu0
        %v1273 = vpop.trf.xlu0
        %v1274 = vpop.trf.xlu0
        %v1275 = vpop.trf.xlu0
        %v1276 = vpop.trf.xlu0
        %v1277 = vpop.trf.xlu0
        %v1278 = vpop.trf.xlu0
        %1279 = vxpose.xlu0.b32.start [1/16] %v817, 128
        %1280 = vxpose.xlu0.b32.cont [2/16] 0.0, 128
        %1281 = vxpose.xlu0.b32.cont [3/16] 0.0, 128
        %1282 = vxpose.xlu0.b32.cont [4/16] 0.0, 128
        %1283 = vxpose.xlu0.b32.cont [5/16] 0.0, 128
        %1284 = vxpose.xlu0.b32.cont [6/16] 0.0, 128
        %1285 = vxpose.xlu0.b32.cont [7/16] 0.0, 128
        %1286 = vxpose.xlu0.b32.cont [8/16] 0.0, 128
        %1287 = vxpose.xlu0.b32.cont [9/16] 0.0, 128
        %1288 = vxpose.xlu0.b32.cont [10/16] 0.0, 128
        %1289 = vxpose.xlu0.b32.cont [11/16] 0.0, 128
        %1290 = vxpose.xlu0.b32.cont [12/16] 0.0, 128
        %1291 = vxpose.xlu0.b32.cont [13/16] 0.0, 128
        %1292 = vxpose.xlu0.b32.cont [14/16] 0.0, 128
        %1293 = vxpose.xlu0.b32.cont [15/16] 0.0, 128
        %1294 = vxpose.xlu0.b32.end [16/16] 0.0, 128
        %v1295 = vpop.trf.xlu0
        %v1296 = vpop.trf.xlu0
        %v1297 = vpop.trf.xlu0
        %v1298 = vpop.trf.xlu0
        %v1299 = vpop.trf.xlu0
        %v1300 = vpop.trf.xlu0
        %v1301 = vpop.trf.xlu0
        %v1302 = vpop.trf.xlu0
        %v1303 = vpop.trf.xlu0
        %v1304 = vpop.trf.xlu0
        %v1305 = vpop.trf.xlu0
        %v1306 = vpop.trf.xlu0
        %v1307 = vpop.trf.xlu0
        %v1308 = vpop.trf.xlu0
        %v1309 = vpop.trf.xlu0
        %v1310 = vpop.trf.xlu0
        %1311 = vxpose.xlu0.b32.start [1/16] %v818, 128
        %1312 = vxpose.xlu0.b32.cont [2/16] 0.0, 128
        %1313 = vxpose.xlu0.b32.cont [3/16] 0.0, 128
        %1314 = vxpose.xlu0.b32.cont [4/16] 0.0, 128
        %1315 = vxpose.xlu0.b32.cont [5/16] 0.0, 128
        %1316 = vxpose.xlu0.b32.cont [6/16] 0.0, 128
        %1317 = vxpose.xlu0.b32.cont [7/16] 0.0, 128
        %1318 = vxpose.xlu0.b32.cont [8/16] 0.0, 128
        %1319 = vxpose.xlu0.b32.cont [9/16] 0.0, 128
        %1320 = vxpose.xlu0.b32.cont [10/16] 0.0, 128
        %1321 = vxpose.xlu0.b32.cont [11/16] 0.0, 128
        %1322 = vxpose.xlu0.b32.cont [12/16] 0.0, 128
        %1323 = vxpose.xlu0.b32.cont [13/16] 0.0, 128
        %1324 = vxpose.xlu0.b32.cont [14/16] 0.0, 128
        %1325 = vxpose.xlu0.b32.cont [15/16] 0.0, 128
        %1326 = vxpose.xlu0.b32.end [16/16] 0.0, 128
        %v1327 = vpop.trf.xlu0
        %v1328 = vpop.trf.xlu0
        %v1329 = vpop.trf.xlu0
        %v1330 = vpop.trf.xlu0
        %v1331 = vpop.trf.xlu0
        %v1332 = vpop.trf.xlu0
        %v1333 = vpop.trf.xlu0
        %v1334 = vpop.trf.xlu0
        %v1335 = vpop.trf.xlu0
        %v1336 = vpop.trf.xlu0
        %v1337 = vpop.trf.xlu0
        %v1338 = vpop.trf.xlu0
        %v1339 = vpop.trf.xlu0
        %v1340 = vpop.trf.xlu0
        %v1341 = vpop.trf.xlu0
        %v1342 = vpop.trf.xlu0
        %vm1343 = vcmask 64512
        %v1345 = vsel %vm1343, %v847, 0
        %v1348 = vsel %vm1343, %v848, 0
        %v1351 = vsel %vm1343, %v849, 0
        %v1354 = vsel %vm1343, %v850, 0
        %v1357 = vsel %vm1343, %v851, 0
        %v1360 = vsel %vm1343, %v852, 0
        %v1363 = vsel %vm1343, %v853, 0
        %v1366 = vsel %vm1343, %v854, 0
        %1368 = vmatprep.subr.mxu0 0.0
        %1369 = vmatpush1.msra.mxu0 0.0
        %1370 = vmatprep.subr.mxu0 0.0
        %1371 = vmatpush1.msra.mxu0 0.0
        %1372 = vmatprep.subr.mxu0 0.0
        %1373 = vmatpush1.msra.mxu0 0.0
        %1374 = vmatprep.subr.mxu0 0.0
        %1375 = vmatpush1.msra.mxu0 0.0
        %1376 = vmatprep.subr.mxu0 0.0
        %1377 = vmatpush1.msra.mxu0 0.0
        %1378 = vmatprep.subr.mxu0 0.0
        %1379 = vmatpush1.msra.mxu0 0.0
        %1380 = vmatprep.subr.mxu0 0.0
        %1381 = vmatpush1.msra.mxu0 0.0
        %1382 = vmatprep.subr.mxu0 0.0
        %1383 = vmatpush1.msra.mxu0 0.0
        %1384 = vmatprep.subr.mxu0 0.0
        %1385 = vmatpush1.msra.mxu0 0.0
        %1386 = vmatprep.subr.mxu0 0.0
        %1387 = vmatpush1.msra.mxu0 0.0
        %1388 = vmatprep.subr.mxu0 0.0
        %1389 = vmatpush1.msra.mxu0 0.0
        %1390 = vmatprep.subr.mxu0 0.0
        %1391 = vmatpush1.msra.mxu0 0.0
        %1392 = vmatprep.subr.mxu0 0.0
        %1393 = vmatpush1.msra.mxu0 0.0
        %1394 = vmatprep.subr.mxu0 0.0
        %1395 = vmatpush1.msra.mxu0 0.0
        %1396 = vmatprep.subr.mxu0 0.0
        %1397 = vmatpush1.msra.mxu0 0.0
        %1398 = vmatprep.subr.mxu0 0.0
        %1399 = vmatpush1.msra.mxu0 %v723
        %1400 = vmatprep.subr.mxu0 0.0
        %1401 = vmatpush2.msra.mxu0 0.0
        %1402 = vmatprep.subr.mxu0 0.0
        %1403 = vmatpush2.msra.mxu0 0.0
        %1404 = vmatprep.subr.mxu0 0.0
        %1405 = vmatpush2.msra.mxu0 0.0
        %1406 = vmatprep.subr.mxu0 0.0
        %1407 = vmatpush2.msra.mxu0 0.0
        %1408 = vmatprep.subr.mxu0 0.0
        %1409 = vmatpush2.msra.mxu0 0.0
        %1410 = vmatprep.subr.mxu0 0.0
        %1411 = vmatpush2.msra.mxu0 0.0
        %1412 = vmatprep.subr.mxu0 0.0
        %1413 = vmatpush2.msra.mxu0 0.0
        %1414 = vmatprep.subr.mxu0 0.0
        %1415 = vmatpush2.msra.mxu0 0.0
        %1416 = vmatprep.subr.mxu0 0.0
        %1417 = vmatpush2.msra.mxu0 0.0
        %1418 = vmatprep.subr.mxu0 0.0
        %1419 = vmatpush2.msra.mxu0 0.0
        %1420 = vmatprep.subr.mxu0 0.0
        %1421 = vmatpush2.msra.mxu0 0.0
        %1422 = vmatprep.subr.mxu0 0.0
        %1423 = vmatpush2.msra.mxu0 0.0
        %1424 = vmatprep.subr.mxu0 0.0
        %1425 = vmatpush2.msra.mxu0 0.0
        %1426 = vmatprep.subr.mxu0 0.0
        %1427 = vmatpush2.msra.mxu0 0.0
        %1428 = vmatprep.subr.mxu0 0.0
        %1429 = vmatpush2.msra.mxu0 0.0
        %1430 = vmatprep.subr.mxu0 0.0
        %1431 = vmatpush2.msra.mxu0 0.0
        %1432 = vmatprep.mubr.f32.mxu0 0.0
        %1433 = vmatmul.mubr.f32.gmra.mxu0 %v1345
        %v1434 = vpop.f32.mrf.mxu0
        %v1435 = vadd.f32 0.0, %v1434
        %v1436 = vpop.f32.mrf.mxu0
        %1437 = vmatprep.mubr.f32.mxu0 0.0
        %1438 = vmatmul.mubr.f32.gmra.mxu0 %v1348
        %v1439 = vpop.f32.mrf.mxu0
        %v1440 = vadd.f32 0.0, %v1439
        %v1441 = vpop.f32.mrf.mxu0
        %1442 = vmatprep.mubr.f32.mxu0 0.0
        %1443 = vmatmul.mubr.f32.gmra.mxu0 %v1351
        %v1444 = vpop.f32.mrf.mxu0
        %v1445 = vadd.f32 0.0, %v1444
        %v1446 = vpop.f32.mrf.mxu0
        %1447 = vmatprep.mubr.f32.mxu0 0.0
        %1448 = vmatmul.mubr.f32.gmra.mxu0 %v1354
        %v1449 = vpop.f32.mrf.mxu0
        %v1450 = vadd.f32 0.0, %v1449
        %v1451 = vpop.f32.mrf.mxu0
        %1452 = vmatprep.mubr.f32.mxu0 0.0
        %1453 = vmatmul.mubr.f32.gmra.mxu0 %v1357
        %v1454 = vpop.f32.mrf.mxu0
        %v1455 = vadd.f32 0.0, %v1454
        %v1456 = vpop.f32.mrf.mxu0
        %1457 = vmatprep.mubr.f32.mxu0 0.0
        %1458 = vmatmul.mubr.f32.gmra.mxu0 %v1360
        %v1459 = vpop.f32.mrf.mxu0
        %v1460 = vadd.f32 0.0, %v1459
        %v1461 = vpop.f32.mrf.mxu0
        %1462 = vmatprep.mubr.f32.mxu0 0.0
        %1463 = vmatmul.mubr.f32.gmra.mxu0 %v1363
        %v1464 = vpop.f32.mrf.mxu0
        %v1465 = vadd.f32 0.0, %v1464
        %v1466 = vpop.f32.mrf.mxu0
        %1467 = vmatprep.mubr.f32.mxu0 0.0
        %1468 = vmatmul.mubr.f32.gmra.mxu0 %v1366
        %v1469 = vpop.f32.mrf.mxu0
        %v1470 = vadd.f32 0.0, %v1469
        %v1471 = vpop.f32.mrf.mxu0
        %1472 = vdwg.mxu0
        %v1474 = vsel %vm1343, %v879, 0
        %v1477 = vsel %vm1343, %v880, 0
        %v1480 = vsel %vm1343, %v881, 0
        %v1483 = vsel %vm1343, %v882, 0
        %v1486 = vsel %vm1343, %v883, 0
        %v1489 = vsel %vm1343, %v884, 0
        %v1492 = vsel %vm1343, %v885, 0
        %v1495 = vsel %vm1343, %v886, 0
        %1497 = vmatprep.subr.mxu0 0.0
        %1498 = vmatpush1.msra.mxu0 0.0
        %1499 = vmatprep.subr.mxu0 0.0
        %1500 = vmatpush1.msra.mxu0 0.0
        %1501 = vmatprep.subr.mxu0 0.0
        %1502 = vmatpush1.msra.mxu0 0.0
        %1503 = vmatprep.subr.mxu0 0.0
        %1504 = vmatpush1.msra.mxu0 0.0
        %1505 = vmatprep.subr.mxu0 0.0
        %1506 = vmatpush1.msra.mxu0 0.0
        %1507 = vmatprep.subr.mxu0 0.0
        %1508 = vmatpush1.msra.mxu0 0.0
        %1509 = vmatprep.subr.mxu0 0.0
        %1510 = vmatpush1.msra.mxu0 0.0
        %1511 = vmatprep.subr.mxu0 0.0
        %1512 = vmatpush1.msra.mxu0 0.0
        %1513 = vmatprep.subr.mxu0 0.0
        %1514 = vmatpush1.msra.mxu0 0.0
        %1515 = vmatprep.subr.mxu0 0.0
        %1516 = vmatpush1.msra.mxu0 0.0
        %1517 = vmatprep.subr.mxu0 0.0
        %1518 = vmatpush1.msra.mxu0 0.0
        %1519 = vmatprep.subr.mxu0 0.0
        %1520 = vmatpush1.msra.mxu0 0.0
        %1521 = vmatprep.subr.mxu0 0.0
        %1522 = vmatpush1.msra.mxu0 0.0
        %1523 = vmatprep.subr.mxu0 0.0
        %1524 = vmatpush1.msra.mxu0 0.0
        %1525 = vmatprep.subr.mxu0 0.0
        %1526 = vmatpush1.msra.mxu0 0.0
        %1527 = vmatprep.subr.mxu0 0.0
        %1528 = vmatpush1.msra.mxu0 %v724
        %1529 = vmatprep.subr.mxu0 0.0
        %1530 = vmatpush2.msra.mxu0 0.0
        %1531 = vmatprep.subr.mxu0 0.0
        %1532 = vmatpush2.msra.mxu0 0.0
        %1533 = vmatprep.subr.mxu0 0.0
        %1534 = vmatpush2.msra.mxu0 0.0
        %1535 = vmatprep.subr.mxu0 0.0
        %1536 = vmatpush2.msra.mxu0 0.0
        %1537 = vmatprep.subr.mxu0 0.0
        %1538 = vmatpush2.msra.mxu0 0.0
        %1539 = vmatprep.subr.mxu0 0.0
        %1540 = vmatpush2.msra.mxu0 0.0
        %1541 = vmatprep.subr.mxu0 0.0
        %1542 = vmatpush2.msra.mxu0 0.0
        %1543 = vmatprep.subr.mxu0 0.0
        %1544 = vmatpush2.msra.mxu0 0.0
        %1545 = vmatprep.subr.mxu0 0.0
        %1546 = vmatpush2.msra.mxu0 0.0
        %1547 = vmatprep.subr.mxu0 0.0
        %1548 = vmatpush2.msra.mxu0 0.0
        %1549 = vmatprep.subr.mxu0 0.0
        %1550 = vmatpush2.msra.mxu0 0.0
        %1551 = vmatprep.subr.mxu0 0.0
        %1552 = vmatpush2.msra.mxu0 0.0
        %1553 = vmatprep.subr.mxu0 0.0
        %1554 = vmatpush2.msra.mxu0 0.0
        %1555 = vmatprep.subr.mxu0 0.0
        %1556 = vmatpush2.msra.mxu0 0.0
        %1557 = vmatprep.subr.mxu0 0.0
        %1558 = vmatpush2.msra.mxu0 0.0
        %1559 = vmatprep.subr.mxu0 0.0
        %1560 = vmatpush2.msra.mxu0 0.0
        %1561 = vmatprep.mubr.f32.mxu0 0.0
        %1562 = vmatmul.mubr.f32.gmra.mxu0 %v1474
        %v1563 = vpop.f32.mrf.mxu0
        %v1564 = vadd.f32 0.0, %v1563
        %v1565 = vpop.f32.mrf.mxu0
        %1566 = vmatprep.mubr.f32.mxu0 0.0
        %1567 = vmatmul.mubr.f32.gmra.mxu0 %v1477
        %v1568 = vpop.f32.mrf.mxu0
        %v1569 = vadd.f32 0.0, %v1568
        %v1570 = vpop.f32.mrf.mxu0
        %1571 = vmatprep.mubr.f32.mxu0 0.0
        %1572 = vmatmul.mubr.f32.gmra.mxu0 %v1480
        %v1573 = vpop.f32.mrf.mxu0
        %v1574 = vadd.f32 0.0, %v1573
        %v1575 = vpop.f32.mrf.mxu0
        %1576 = vmatprep.mubr.f32.mxu0 0.0
        %1577 = vmatmul.mubr.f32.gmra.mxu0 %v1483
        %v1578 = vpop.f32.mrf.mxu0
        %v1579 = vadd.f32 0.0, %v1578
        %v1580 = vpop.f32.mrf.mxu0
        %1581 = vmatprep.mubr.f32.mxu0 0.0
        %1582 = vmatmul.mubr.f32.gmra.mxu0 %v1486
        %v1583 = vpop.f32.mrf.mxu0
        %v1584 = vadd.f32 0.0, %v1583
        %v1585 = vpop.f32.mrf.mxu0
        %1586 = vmatprep.mubr.f32.mxu0 0.0
        %1587 = vmatmul.mubr.f32.gmra.mxu0 %v1489
        %v1588 = vpop.f32.mrf.mxu0
        %v1589 = vadd.f32 0.0, %v1588
        %v1590 = vpop.f32.mrf.mxu0
        %1591 = vmatprep.mubr.f32.mxu0 0.0
        %1592 = vmatmul.mubr.f32.gmra.mxu0 %v1492
        %v1593 = vpop.f32.mrf.mxu0
        %v1594 = vadd.f32 0.0, %v1593
        %v1595 = vpop.f32.mrf.mxu0
        %1596 = vmatprep.mubr.f32.mxu0 0.0
        %1597 = vmatmul.mubr.f32.gmra.mxu0 %v1495
        %v1598 = vpop.f32.mrf.mxu0
        %v1599 = vadd.f32 0.0, %v1598
        %v1600 = vpop.f32.mrf.mxu0
        %1601 = vdwg.mxu0
        %v1603 = vsel %vm1343, %v911, 0
        %v1606 = vsel %vm1343, %v912, 0
        %v1609 = vsel %vm1343, %v913, 0
        %v1612 = vsel %vm1343, %v914, 0
        %v1615 = vsel %vm1343, %v915, 0
        %v1618 = vsel %vm1343, %v916, 0
        %v1621 = vsel %vm1343, %v917, 0
        %v1624 = vsel %vm1343, %v918, 0
        %1626 = vmatprep.subr.mxu0 0.0
        %1627 = vmatpush1.msra.mxu0 0.0
        %1628 = vmatprep.subr.mxu0 0.0
        %1629 = vmatpush1.msra.mxu0 0.0
        %1630 = vmatprep.subr.mxu0 0.0
        %1631 = vmatpush1.msra.mxu0 0.0
        %1632 = vmatprep.subr.mxu0 0.0
        %1633 = vmatpush1.msra.mxu0 0.0
        %1634 = vmatprep.subr.mxu0 0.0
        %1635 = vmatpush1.msra.mxu0 0.0
        %1636 = vmatprep.subr.mxu0 0.0
        %1637 = vmatpush1.msra.mxu0 0.0
        %1638 = vmatprep.subr.mxu0 0.0
        %1639 = vmatpush1.msra.mxu0 0.0
        %1640 = vmatprep.subr.mxu0 0.0
        %1641 = vmatpush1.msra.mxu0 0.0
        %1642 = vmatprep.subr.mxu0 0.0
        %1643 = vmatpush1.msra.mxu0 0.0
        %1644 = vmatprep.subr.mxu0 0.0
        %1645 = vmatpush1.msra.mxu0 0.0
        %1646 = vmatprep.subr.mxu0 0.0
        %1647 = vmatpush1.msra.mxu0 0.0
        %1648 = vmatprep.subr.mxu0 0.0
        %1649 = vmatpush1.msra.mxu0 0.0
        %1650 = vmatprep.subr.mxu0 0.0
        %1651 = vmatpush1.msra.mxu0 0.0
        %1652 = vmatprep.subr.mxu0 0.0
        %1653 = vmatpush1.msra.mxu0 0.0
        %1654 = vmatprep.subr.mxu0 0.0
        %1655 = vmatpush1.msra.mxu0 0.0
        %1656 = vmatprep.subr.mxu0 0.0
        %1657 = vmatpush1.msra.mxu0 %v725
        %1658 = vmatprep.subr.mxu0 0.0
        %1659 = vmatpush2.msra.mxu0 0.0
        %1660 = vmatprep.subr.mxu0 0.0
        %1661 = vmatpush2.msra.mxu0 0.0
        %1662 = vmatprep.subr.mxu0 0.0
        %1663 = vmatpush2.msra.mxu0 0.0
        %1664 = vmatprep.subr.mxu0 0.0
        %1665 = vmatpush2.msra.mxu0 0.0
        %1666 = vmatprep.subr.mxu0 0.0
        %1667 = vmatpush2.msra.mxu0 0.0
        %1668 = vmatprep.subr.mxu0 0.0
        %1669 = vmatpush2.msra.mxu0 0.0
        %1670 = vmatprep.subr.mxu0 0.0
        %1671 = vmatpush2.msra.mxu0 0.0
        %1672 = vmatprep.subr.mxu0 0.0
        %1673 = vmatpush2.msra.mxu0 0.0
        %1674 = vmatprep.subr.mxu0 0.0
        %1675 = vmatpush2.msra.mxu0 0.0
        %1676 = vmatprep.subr.mxu0 0.0
        %1677 = vmatpush2.msra.mxu0 0.0
        %1678 = vmatprep.subr.mxu0 0.0
        %1679 = vmatpush2.msra.mxu0 0.0
        %1680 = vmatprep.subr.mxu0 0.0
        %1681 = vmatpush2.msra.mxu0 0.0
        %1682 = vmatprep.subr.mxu0 0.0
        %1683 = vmatpush2.msra.mxu0 0.0
        %1684 = vmatprep.subr.mxu0 0.0
        %1685 = vmatpush2.msra.mxu0 0.0
        %1686 = vmatprep.subr.mxu0 0.0
        %1687 = vmatpush2.msra.mxu0 0.0
        %1688 = vmatprep.subr.mxu0 0.0
        %1689 = vmatpush2.msra.mxu0 0.0
        %1690 = vmatprep.mubr.f32.mxu0 0.0
        %1691 = vmatmul.mubr.f32.gmra.mxu0 %v1603
        %v1692 = vpop.f32.mrf.mxu0
        %v1693 = vadd.f32 0.0, %v1692
        %v1694 = vpop.f32.mrf.mxu0
        %1695 = vmatprep.mubr.f32.mxu0 0.0
        %1696 = vmatmul.mubr.f32.gmra.mxu0 %v1606
        %v1697 = vpop.f32.mrf.mxu0
        %v1698 = vadd.f32 0.0, %v1697
        %v1699 = vpop.f32.mrf.mxu0
        %1700 = vmatprep.mubr.f32.mxu0 0.0
        %1701 = vmatmul.mubr.f32.gmra.mxu0 %v1609
        %v1702 = vpop.f32.mrf.mxu0
        %v1703 = vadd.f32 0.0, %v1702
        %v1704 = vpop.f32.mrf.mxu0
        %1705 = vmatprep.mubr.f32.mxu0 0.0
        %1706 = vmatmul.mubr.f32.gmra.mxu0 %v1612
        %v1707 = vpop.f32.mrf.mxu0
        %v1708 = vadd.f32 0.0, %v1707
        %v1709 = vpop.f32.mrf.mxu0
        %1710 = vmatprep.mubr.f32.mxu0 0.0
        %1711 = vmatmul.mubr.f32.gmra.mxu0 %v1615
        %v1712 = vpop.f32.mrf.mxu0
        %v1713 = vadd.f32 0.0, %v1712
        %v1714 = vpop.f32.mrf.mxu0
        %1715 = vmatprep.mubr.f32.mxu0 0.0
        %1716 = vmatmul.mubr.f32.gmra.mxu0 %v1618
        %v1717 = vpop.f32.mrf.mxu0
        %v1718 = vadd.f32 0.0, %v1717
        %v1719 = vpop.f32.mrf.mxu0
        %1720 = vmatprep.mubr.f32.mxu0 0.0
        %1721 = vmatmul.mubr.f32.gmra.mxu0 %v1621
        %v1722 = vpop.f32.mrf.mxu0
        %v1723 = vadd.f32 0.0, %v1722
        %v1724 = vpop.f32.mrf.mxu0
        %1725 = vmatprep.mubr.f32.mxu0 0.0
        %1726 = vmatmul.mubr.f32.gmra.mxu0 %v1624
        %v1727 = vpop.f32.mrf.mxu0
        %v1728 = vadd.f32 0.0, %v1727
        %v1729 = vpop.f32.mrf.mxu0
        %1730 = vdwg.mxu0
        %v1732 = vsel %vm1343, %v943, 0
        %v1735 = vsel %vm1343, %v944, 0
        %v1738 = vsel %vm1343, %v945, 0
        %v1741 = vsel %vm1343, %v946, 0
        %v1744 = vsel %vm1343, %v947, 0
        %v1747 = vsel %vm1343, %v948, 0
        %v1750 = vsel %vm1343, %v949, 0
        %v1753 = vsel %vm1343, %v950, 0
        %1755 = vmatprep.subr.mxu0 0.0
        %1756 = vmatpush1.msra.mxu0 0.0
        %1757 = vmatprep.subr.mxu0 0.0
        %1758 = vmatpush1.msra.mxu0 0.0
        %1759 = vmatprep.subr.mxu0 0.0
        %1760 = vmatpush1.msra.mxu0 0.0
        %1761 = vmatprep.subr.mxu0 0.0
        %1762 = vmatpush1.msra.mxu0 0.0
        %1763 = vmatprep.subr.mxu0 0.0
        %1764 = vmatpush1.msra.mxu0 0.0
        %1765 = vmatprep.subr.mxu0 0.0
        %1766 = vmatpush1.msra.mxu0 0.0
        %1767 = vmatprep.subr.mxu0 0.0
        %1768 = vmatpush1.msra.mxu0 0.0
        %1769 = vmatprep.subr.mxu0 0.0
        %1770 = vmatpush1.msra.mxu0 0.0
        %1771 = vmatprep.subr.mxu0 0.0
        %1772 = vmatpush1.msra.mxu0 0.0
        %1773 = vmatprep.subr.mxu0 0.0
        %1774 = vmatpush1.msra.mxu0 0.0
        %1775 = vmatprep.subr.mxu0 0.0
        %1776 = vmatpush1.msra.mxu0 0.0
        %1777 = vmatprep.subr.mxu0 0.0
        %1778 = vmatpush1.msra.mxu0 0.0
        %1779 = vmatprep.subr.mxu0 0.0
        %1780 = vmatpush1.msra.mxu0 0.0
        %1781 = vmatprep.subr.mxu0 0.0
        %1782 = vmatpush1.msra.mxu0 0.0
        %1783 = vmatprep.subr.mxu0 0.0
        %1784 = vmatpush1.msra.mxu0 0.0
        %1785 = vmatprep.subr.mxu0 0.0
        %1786 = vmatpush1.msra.mxu0 %v726
        %1787 = vmatprep.subr.mxu0 0.0
        %1788 = vmatpush2.msra.mxu0 0.0
        %1789 = vmatprep.subr.mxu0 0.0
        %1790 = vmatpush2.msra.mxu0 0.0
        %1791 = vmatprep.subr.mxu0 0.0
        %1792 = vmatpush2.msra.mxu0 0.0
        %1793 = vmatprep.subr.mxu0 0.0
        %1794 = vmatpush2.msra.mxu0 0.0
        %1795 = vmatprep.subr.mxu0 0.0
        %1796 = vmatpush2.msra.mxu0 0.0
        %1797 = vmatprep.subr.mxu0 0.0
        %1798 = vmatpush2.msra.mxu0 0.0
        %1799 = vmatprep.subr.mxu0 0.0
        %1800 = vmatpush2.msra.mxu0 0.0
        %1801 = vmatprep.subr.mxu0 0.0
        %1802 = vmatpush2.msra.mxu0 0.0
        %1803 = vmatprep.subr.mxu0 0.0
        %1804 = vmatpush2.msra.mxu0 0.0
        %1805 = vmatprep.subr.mxu0 0.0
        %1806 = vmatpush2.msra.mxu0 0.0
        %1807 = vmatprep.subr.mxu0 0.0
        %1808 = vmatpush2.msra.mxu0 0.0
        %1809 = vmatprep.subr.mxu0 0.0
        %1810 = vmatpush2.msra.mxu0 0.0
        %1811 = vmatprep.subr.mxu0 0.0
        %1812 = vmatpush2.msra.mxu0 0.0
        %1813 = vmatprep.subr.mxu0 0.0
        %1814 = vmatpush2.msra.mxu0 0.0
        %1815 = vmatprep.subr.mxu0 0.0
        %1816 = vmatpush2.msra.mxu0 0.0
        %1817 = vmatprep.subr.mxu0 0.0
        %1818 = vmatpush2.msra.mxu0 0.0
        %1819 = vmatprep.mubr.f32.mxu0 0.0
        %1820 = vmatmul.mubr.f32.gmra.mxu0 %v1732
        %v1821 = vpop.f32.mrf.mxu0
        %v1822 = vadd.f32 0.0, %v1821
        %v1823 = vpop.f32.mrf.mxu0
        %1824 = vmatprep.mubr.f32.mxu0 0.0
        %1825 = vmatmul.mubr.f32.gmra.mxu0 %v1735
        %v1826 = vpop.f32.mrf.mxu0
        %v1827 = vadd.f32 0.0, %v1826
        %v1828 = vpop.f32.mrf.mxu0
        %1829 = vmatprep.mubr.f32.mxu0 0.0
        %1830 = vmatmul.mubr.f32.gmra.mxu0 %v1738
        %v1831 = vpop.f32.mrf.mxu0
        %v1832 = vadd.f32 0.0, %v1831
        %v1833 = vpop.f32.mrf.mxu0
        %1834 = vmatprep.mubr.f32.mxu0 0.0
        %1835 = vmatmul.mubr.f32.gmra.mxu0 %v1741
        %v1836 = vpop.f32.mrf.mxu0
        %v1837 = vadd.f32 0.0, %v1836
        %v1838 = vpop.f32.mrf.mxu0
        %1839 = vmatprep.mubr.f32.mxu0 0.0
        %1840 = vmatmul.mubr.f32.gmra.mxu0 %v1744
        %v1841 = vpop.f32.mrf.mxu0
        %v1842 = vadd.f32 0.0, %v1841
        %v1843 = vpop.f32.mrf.mxu0
        %1844 = vmatprep.mubr.f32.mxu0 0.0
        %1845 = vmatmul.mubr.f32.gmra.mxu0 %v1747
        %v1846 = vpop.f32.mrf.mxu0
        %v1847 = vadd.f32 0.0, %v1846
        %v1848 = vpop.f32.mrf.mxu0
        %1849 = vmatprep.mubr.f32.mxu0 0.0
        %1850 = vmatmul.mubr.f32.gmra.mxu0 %v1750
        %v1851 = vpop.f32.mrf.mxu0
        %v1852 = vadd.f32 0.0, %v1851
        %v1853 = vpop.f32.mrf.mxu0
        %1854 = vmatprep.mubr.f32.mxu0 0.0
        %1855 = vmatmul.mubr.f32.gmra.mxu0 %v1753
        %v1856 = vpop.f32.mrf.mxu0
        %v1857 = vadd.f32 0.0, %v1856
        %v1858 = vpop.f32.mrf.mxu0
        %1859 = vdwg.mxu0
        %v1861 = vsel %vm1343, %v975, 0
        %v1864 = vsel %vm1343, %v976, 0
        %v1867 = vsel %vm1343, %v977, 0
        %v1870 = vsel %vm1343, %v978, 0
        %v1873 = vsel %vm1343, %v979, 0
        %v1876 = vsel %vm1343, %v980, 0
        %v1879 = vsel %vm1343, %v981, 0
        %v1882 = vsel %vm1343, %v982, 0
        %1884 = vmatprep.subr.mxu0 0.0
        %1885 = vmatpush1.msra.mxu0 0.0
        %1886 = vmatprep.subr.mxu0 0.0
        %1887 = vmatpush1.msra.mxu0 0.0
        %1888 = vmatprep.subr.mxu0 0.0
        %1889 = vmatpush1.msra.mxu0 0.0
        %1890 = vmatprep.subr.mxu0 0.0
        %1891 = vmatpush1.msra.mxu0 0.0
        %1892 = vmatprep.subr.mxu0 0.0
        %1893 = vmatpush1.msra.mxu0 0.0
        %1894 = vmatprep.subr.mxu0 0.0
        %1895 = vmatpush1.msra.mxu0 0.0
        %1896 = vmatprep.subr.mxu0 0.0
        %1897 = vmatpush1.msra.mxu0 0.0
        %1898 = vmatprep.subr.mxu0 0.0
        %1899 = vmatpush1.msra.mxu0 0.0
        %1900 = vmatprep.subr.mxu0 0.0
        %1901 = vmatpush1.msra.mxu0 0.0
        %1902 = vmatprep.subr.mxu0 0.0
        %1903 = vmatpush1.msra.mxu0 0.0
        %1904 = vmatprep.subr.mxu0 0.0
        %1905 = vmatpush1.msra.mxu0 0.0
        %1906 = vmatprep.subr.mxu0 0.0
        %1907 = vmatpush1.msra.mxu0 0.0
        %1908 = vmatprep.subr.mxu0 0.0
        %1909 = vmatpush1.msra.mxu0 0.0
        %1910 = vmatprep.subr.mxu0 0.0
        %1911 = vmatpush1.msra.mxu0 0.0
        %1912 = vmatprep.subr.mxu0 0.0
        %1913 = vmatpush1.msra.mxu0 0.0
        %1914 = vmatprep.subr.mxu0 0.0
        %1915 = vmatpush1.msra.mxu0 %v755
        %1916 = vmatprep.subr.mxu0 0.0
        %1917 = vmatpush2.msra.mxu0 0.0
        %1918 = vmatprep.subr.mxu0 0.0
        %1919 = vmatpush2.msra.mxu0 0.0
        %1920 = vmatprep.subr.mxu0 0.0
        %1921 = vmatpush2.msra.mxu0 0.0
        %1922 = vmatprep.subr.mxu0 0.0
        %1923 = vmatpush2.msra.mxu0 0.0
        %1924 = vmatprep.subr.mxu0 0.0
        %1925 = vmatpush2.msra.mxu0 0.0
        %1926 = vmatprep.subr.mxu0 0.0
        %1927 = vmatpush2.msra.mxu0 0.0
        %1928 = vmatprep.subr.mxu0 0.0
        %1929 = vmatpush2.msra.mxu0 0.0
        %1930 = vmatprep.subr.mxu0 0.0
        %1931 = vmatpush2.msra.mxu0 0.0
        %1932 = vmatprep.subr.mxu0 0.0
        %1933 = vmatpush2.msra.mxu0 0.0
        %1934 = vmatprep.subr.mxu0 0.0
        %1935 = vmatpush2.msra.mxu0 0.0
        %1936 = vmatprep.subr.mxu0 0.0
        %1937 = vmatpush2.msra.mxu0 0.0
        %1938 = vmatprep.subr.mxu0 0.0
        %1939 = vmatpush2.msra.mxu0 0.0
        %1940 = vmatprep.subr.mxu0 0.0
        %1941 = vmatpush2.msra.mxu0 0.0
        %1942 = vmatprep.subr.mxu0 0.0
        %1943 = vmatpush2.msra.mxu0 0.0
        %1944 = vmatprep.subr.mxu0 0.0
        %1945 = vmatpush2.msra.mxu0 0.0
        %1946 = vmatprep.subr.mxu0 0.0
        %1947 = vmatpush2.msra.mxu0 0.0
        %1948 = vmatprep.mubr.f32.mxu0 0.0
        %1949 = vmatmul.mubr.f32.gmra.mxu0 %v1861
        %v1950 = vpop.f32.mrf.mxu0
        %v1951 = vadd.f32 0.0, %v1950
        %v1952 = vpop.f32.mrf.mxu0
        %1953 = vmatprep.mubr.f32.mxu0 0.0
        %1954 = vmatmul.mubr.f32.gmra.mxu0 %v1864
        %v1955 = vpop.f32.mrf.mxu0
        %v1956 = vadd.f32 0.0, %v1955
        %v1957 = vpop.f32.mrf.mxu0
        %1958 = vmatprep.mubr.f32.mxu0 0.0
        %1959 = vmatmul.mubr.f32.gmra.mxu0 %v1867
        %v1960 = vpop.f32.mrf.mxu0
        %v1961 = vadd.f32 0.0, %v1960
        %v1962 = vpop.f32.mrf.mxu0
        %1963 = vmatprep.mubr.f32.mxu0 0.0
        %1964 = vmatmul.mubr.f32.gmra.mxu0 %v1870
        %v1965 = vpop.f32.mrf.mxu0
        %v1966 = vadd.f32 0.0, %v1965
        %v1967 = vpop.f32.mrf.mxu0
        %1968 = vmatprep.mubr.f32.mxu0 0.0
        %1969 = vmatmul.mubr.f32.gmra.mxu0 %v1873
        %v1970 = vpop.f32.mrf.mxu0
        %v1971 = vadd.f32 0.0, %v1970
        %v1972 = vpop.f32.mrf.mxu0
        %1973 = vmatprep.mubr.f32.mxu0 0.0
        %1974 = vmatmul.mubr.f32.gmra.mxu0 %v1876
        %v1975 = vpop.f32.mrf.mxu0
        %v1976 = vadd.f32 0.0, %v1975
        %v1977 = vpop.f32.mrf.mxu0
        %1978 = vmatprep.mubr.f32.mxu0 0.0
        %1979 = vmatmul.mubr.f32.gmra.mxu0 %v1879
        %v1980 = vpop.f32.mrf.mxu0
        %v1981 = vadd.f32 0.0, %v1980
        %v1982 = vpop.f32.mrf.mxu0
        %1983 = vmatprep.mubr.f32.mxu0 0.0
        %1984 = vmatmul.mubr.f32.gmra.mxu0 %v1882
        %v1985 = vpop.f32.mrf.mxu0
        %v1986 = vadd.f32 0.0, %v1985
        %v1987 = vpop.f32.mrf.mxu0
        %1988 = vdwg.mxu0
        %v1990 = vsel %vm1343, %v1007, 0
        %v1993 = vsel %vm1343, %v1008, 0
        %v1996 = vsel %vm1343, %v1009, 0
        %v1999 = vsel %vm1343, %v1010, 0
        %v2002 = vsel %vm1343, %v1011, 0
        %v2005 = vsel %vm1343, %v1012, 0
        %v2008 = vsel %vm1343, %v1013, 0
        %v2011 = vsel %vm1343, %v1014, 0
        %2013 = vmatprep.subr.mxu0 0.0
        %2014 = vmatpush1.msra.mxu0 0.0
        %2015 = vmatprep.subr.mxu0 0.0
        %2016 = vmatpush1.msra.mxu0 0.0
        %2017 = vmatprep.subr.mxu0 0.0
        %2018 = vmatpush1.msra.mxu0 0.0
        %2019 = vmatprep.subr.mxu0 0.0
        %2020 = vmatpush1.msra.mxu0 0.0
        %2021 = vmatprep.subr.mxu0 0.0
        %2022 = vmatpush1.msra.mxu0 0.0
        %2023 = vmatprep.subr.mxu0 0.0
        %2024 = vmatpush1.msra.mxu0 0.0
        %2025 = vmatprep.subr.mxu0 0.0
        %2026 = vmatpush1.msra.mxu0 0.0
        %2027 = vmatprep.subr.mxu0 0.0
        %2028 = vmatpush1.msra.mxu0 0.0
        %2029 = vmatprep.subr.mxu0 0.0
        %2030 = vmatpush1.msra.mxu0 0.0
        %2031 = vmatprep.subr.mxu0 0.0
        %2032 = vmatpush1.msra.mxu0 0.0
        %2033 = vmatprep.subr.mxu0 0.0
        %2034 = vmatpush1.msra.mxu0 0.0
        %2035 = vmatprep.subr.mxu0 0.0
        %2036 = vmatpush1.msra.mxu0 0.0
        %2037 = vmatprep.subr.mxu0 0.0
        %2038 = vmatpush1.msra.mxu0 0.0
        %2039 = vmatprep.subr.mxu0 0.0
        %2040 = vmatpush1.msra.mxu0 0.0
        %2041 = vmatprep.subr.mxu0 0.0
        %2042 = vmatpush1.msra.mxu0 0.0
        %2043 = vmatprep.subr.mxu0 0.0
        %2044 = vmatpush1.msra.mxu0 %v756
        %2045 = vmatprep.subr.mxu0 0.0
        %2046 = vmatpush2.msra.mxu0 0.0
        %2047 = vmatprep.subr.mxu0 0.0
        %2048 = vmatpush2.msra.mxu0 0.0
        %2049 = vmatprep.subr.mxu0 0.0
        %2050 = vmatpush2.msra.mxu0 0.0
        %2051 = vmatprep.subr.mxu0 0.0
        %2052 = vmatpush2.msra.mxu0 0.0
        %2053 = vmatprep.subr.mxu0 0.0
        %2054 = vmatpush2.msra.mxu0 0.0
        %2055 = vmatprep.subr.mxu0 0.0
        %2056 = vmatpush2.msra.mxu0 0.0
        %2057 = vmatprep.subr.mxu0 0.0
        %2058 = vmatpush2.msra.mxu0 0.0
        %2059 = vmatprep.subr.mxu0 0.0
        %2060 = vmatpush2.msra.mxu0 0.0
        %2061 = vmatprep.subr.mxu0 0.0
        %2062 = vmatpush2.msra.mxu0 0.0
        %2063 = vmatprep.subr.mxu0 0.0
        %2064 = vmatpush2.msra.mxu0 0.0
        %2065 = vmatprep.subr.mxu0 0.0
        %2066 = vmatpush2.msra.mxu0 0.0
        %2067 = vmatprep.subr.mxu0 0.0
        %2068 = vmatpush2.msra.mxu0 0.0
        %2069 = vmatprep.subr.mxu0 0.0
        %2070 = vmatpush2.msra.mxu0 0.0
        %2071 = vmatprep.subr.mxu0 0.0
        %2072 = vmatpush2.msra.mxu0 0.0
        %2073 = vmatprep.subr.mxu0 0.0
        %2074 = vmatpush2.msra.mxu0 0.0
        %2075 = vmatprep.subr.mxu0 0.0
        %2076 = vmatpush2.msra.mxu0 0.0
        %2077 = vmatprep.mubr.f32.mxu0 0.0
        %2078 = vmatmul.mubr.f32.gmra.mxu0 %v1990
        %v2079 = vpop.f32.mrf.mxu0
        %v2080 = vadd.f32 0.0, %v2079
        %v2081 = vpop.f32.mrf.mxu0
        %2082 = vmatprep.mubr.f32.mxu0 0.0
        %2083 = vmatmul.mubr.f32.gmra.mxu0 %v1993
        %v2084 = vpop.f32.mrf.mxu0
        %v2085 = vadd.f32 0.0, %v2084
        %v2086 = vpop.f32.mrf.mxu0
        %2087 = vmatprep.mubr.f32.mxu0 0.0
        %2088 = vmatmul.mubr.f32.gmra.mxu0 %v1996
        %v2089 = vpop.f32.mrf.mxu0
        %v2090 = vadd.f32 0.0, %v2089
        %v2091 = vpop.f32.mrf.mxu0
        %2092 = vmatprep.mubr.f32.mxu0 0.0
        %2093 = vmatmul.mubr.f32.gmra.mxu0 %v1999
        %v2094 = vpop.f32.mrf.mxu0
        %v2095 = vadd.f32 0.0, %v2094
        %v2096 = vpop.f32.mrf.mxu0
        %2097 = vmatprep.mubr.f32.mxu0 0.0
        %2098 = vmatmul.mubr.f32.gmra.mxu0 %v2002
        %v2099 = vpop.f32.mrf.mxu0
        %v2100 = vadd.f32 0.0, %v2099
        %v2101 = vpop.f32.mrf.mxu0
        %2102 = vmatprep.mubr.f32.mxu0 0.0
        %2103 = vmatmul.mubr.f32.gmra.mxu0 %v2005
        %v2104 = vpop.f32.mrf.mxu0
        %v2105 = vadd.f32 0.0, %v2104
        %v2106 = vpop.f32.mrf.mxu0
        %2107 = vmatprep.mubr.f32.mxu0 0.0
        %2108 = vmatmul.mubr.f32.gmra.mxu0 %v2008
        %v2109 = vpop.f32.mrf.mxu0
        %v2110 = vadd.f32 0.0, %v2109
        %v2111 = vpop.f32.mrf.mxu0
        %2112 = vmatprep.mubr.f32.mxu0 0.0
        %2113 = vmatmul.mubr.f32.gmra.mxu0 %v2011
        %v2114 = vpop.f32.mrf.mxu0
        %v2115 = vadd.f32 0.0, %v2114
        %v2116 = vpop.f32.mrf.mxu0
        %2117 = vdwg.mxu0
        %v2119 = vsel %vm1343, %v1039, 0
        %v2122 = vsel %vm1343, %v1040, 0
        %v2125 = vsel %vm1343, %v1041, 0
        %v2128 = vsel %vm1343, %v1042, 0
        %v2131 = vsel %vm1343, %v1043, 0
        %v2134 = vsel %vm1343, %v1044, 0
        %v2137 = vsel %vm1343, %v1045, 0
        %v2140 = vsel %vm1343, %v1046, 0
        %2142 = vmatprep.subr.mxu0 0.0
        %2143 = vmatpush1.msra.mxu0 0.0
        %2144 = vmatprep.subr.mxu0 0.0
        %2145 = vmatpush1.msra.mxu0 0.0
        %2146 = vmatprep.subr.mxu0 0.0
        %2147 = vmatpush1.msra.mxu0 0.0
        %2148 = vmatprep.subr.mxu0 0.0
        %2149 = vmatpush1.msra.mxu0 0.0
        %2150 = vmatprep.subr.mxu0 0.0
        %2151 = vmatpush1.msra.mxu0 0.0
        %2152 = vmatprep.subr.mxu0 0.0
        %2153 = vmatpush1.msra.mxu0 0.0
        %2154 = vmatprep.subr.mxu0 0.0
        %2155 = vmatpush1.msra.mxu0 0.0
        %2156 = vmatprep.subr.mxu0 0.0
        %2157 = vmatpush1.msra.mxu0 0.0
        %2158 = vmatprep.subr.mxu0 0.0
        %2159 = vmatpush1.msra.mxu0 0.0
        %2160 = vmatprep.subr.mxu0 0.0
        %2161 = vmatpush1.msra.mxu0 0.0
        %2162 = vmatprep.subr.mxu0 0.0
        %2163 = vmatpush1.msra.mxu0 0.0
        %2164 = vmatprep.subr.mxu0 0.0
        %2165 = vmatpush1.msra.mxu0 0.0
        %2166 = vmatprep.subr.mxu0 0.0
        %2167 = vmatpush1.msra.mxu0 0.0
        %2168 = vmatprep.subr.mxu0 0.0
        %2169 = vmatpush1.msra.mxu0 0.0
        %2170 = vmatprep.subr.mxu0 0.0
        %2171 = vmatpush1.msra.mxu0 0.0
        %2172 = vmatprep.subr.mxu0 0.0
        %2173 = vmatpush1.msra.mxu0 %v757
        %2174 = vmatprep.subr.mxu0 0.0
        %2175 = vmatpush2.msra.mxu0 0.0
        %2176 = vmatprep.subr.mxu0 0.0
        %2177 = vmatpush2.msra.mxu0 0.0
        %2178 = vmatprep.subr.mxu0 0.0
        %2179 = vmatpush2.msra.mxu0 0.0
        %2180 = vmatprep.subr.mxu0 0.0
        %2181 = vmatpush2.msra.mxu0 0.0
        %2182 = vmatprep.subr.mxu0 0.0
        %2183 = vmatpush2.msra.mxu0 0.0
        %2184 = vmatprep.subr.mxu0 0.0
        %2185 = vmatpush2.msra.mxu0 0.0
        %2186 = vmatprep.subr.mxu0 0.0
        %2187 = vmatpush2.msra.mxu0 0.0
        %2188 = vmatprep.subr.mxu0 0.0
        %2189 = vmatpush2.msra.mxu0 0.0
        %2190 = vmatprep.subr.mxu0 0.0
        %2191 = vmatpush2.msra.mxu0 0.0
        %2192 = vmatprep.subr.mxu0 0.0
        %2193 = vmatpush2.msra.mxu0 0.0
        %2194 = vmatprep.subr.mxu0 0.0
        %2195 = vmatpush2.msra.mxu0 0.0
        %2196 = vmatprep.subr.mxu0 0.0
        %2197 = vmatpush2.msra.mxu0 0.0
        %2198 = vmatprep.subr.mxu0 0.0
        %2199 = vmatpush2.msra.mxu0 0.0
        %2200 = vmatprep.subr.mxu0 0.0
        %2201 = vmatpush2.msra.mxu0 0.0
        %2202 = vmatprep.subr.mxu0 0.0
        %2203 = vmatpush2.msra.mxu0 0.0
        %2204 = vmatprep.subr.mxu0 0.0
        %2205 = vmatpush2.msra.mxu0 0.0
        %2206 = vmatprep.mubr.f32.mxu0 0.0
        %2207 = vmatmul.mubr.f32.gmra.mxu0 %v2119
        %v2208 = vpop.f32.mrf.mxu0
        %v2209 = vadd.f32 0.0, %v2208
        %v2210 = vpop.f32.mrf.mxu0
        %2211 = vmatprep.mubr.f32.mxu0 0.0
        %2212 = vmatmul.mubr.f32.gmra.mxu0 %v2122
        %v2213 = vpop.f32.mrf.mxu0
        %v2214 = vadd.f32 0.0, %v2213
        %v2215 = vpop.f32.mrf.mxu0
        %2216 = vmatprep.mubr.f32.mxu0 0.0
        %2217 = vmatmul.mubr.f32.gmra.mxu0 %v2125
        %v2218 = vpop.f32.mrf.mxu0
        %v2219 = vadd.f32 0.0, %v2218
        %v2220 = vpop.f32.mrf.mxu0
        %2221 = vmatprep.mubr.f32.mxu0 0.0
        %2222 = vmatmul.mubr.f32.gmra.mxu0 %v2128
        %v2223 = vpop.f32.mrf.mxu0
        %v2224 = vadd.f32 0.0, %v2223
        %v2225 = vpop.f32.mrf.mxu0
        %2226 = vmatprep.mubr.f32.mxu0 0.0
        %2227 = vmatmul.mubr.f32.gmra.mxu0 %v2131
        %v2228 = vpop.f32.mrf.mxu0
        %v2229 = vadd.f32 0.0, %v2228
        %v2230 = vpop.f32.mrf.mxu0
        %2231 = vmatprep.mubr.f32.mxu0 0.0
        %2232 = vmatmul.mubr.f32.gmra.mxu0 %v2134
        %v2233 = vpop.f32.mrf.mxu0
        %v2234 = vadd.f32 0.0, %v2233
        %v2235 = vpop.f32.mrf.mxu0
        %2236 = vmatprep.mubr.f32.mxu0 0.0
        %2237 = vmatmul.mubr.f32.gmra.mxu0 %v2137
        %v2238 = vpop.f32.mrf.mxu0
        %v2239 = vadd.f32 0.0, %v2238
        %v2240 = vpop.f32.mrf.mxu0
        %2241 = vmatprep.mubr.f32.mxu0 0.0
        %2242 = vmatmul.mubr.f32.gmra.mxu0 %v2140
        %v2243 = vpop.f32.mrf.mxu0
        %v2244 = vadd.f32 0.0, %v2243
        %v2245 = vpop.f32.mrf.mxu0
        %2246 = vdwg.mxu0
        %v2248 = vsel %vm1343, %v1071, 0
        %v2251 = vsel %vm1343, %v1072, 0
        %v2254 = vsel %vm1343, %v1073, 0
        %v2257 = vsel %vm1343, %v1074, 0
        %v2260 = vsel %vm1343, %v1075, 0
        %v2263 = vsel %vm1343, %v1076, 0
        %v2266 = vsel %vm1343, %v1077, 0
        %v2269 = vsel %vm1343, %v1078, 0
        %2271 = vmatprep.subr.mxu0 0.0
        %2272 = vmatpush1.msra.mxu0 0.0
        %2273 = vmatprep.subr.mxu0 0.0
        %2274 = vmatpush1.msra.mxu0 0.0
        %2275 = vmatprep.subr.mxu0 0.0
        %2276 = vmatpush1.msra.mxu0 0.0
        %2277 = vmatprep.subr.mxu0 0.0
        %2278 = vmatpush1.msra.mxu0 0.0
        %2279 = vmatprep.subr.mxu0 0.0
        %2280 = vmatpush1.msra.mxu0 0.0
        %2281 = vmatprep.subr.mxu0 0.0
        %2282 = vmatpush1.msra.mxu0 0.0
        %2283 = vmatprep.subr.mxu0 0.0
        %2284 = vmatpush1.msra.mxu0 0.0
        %2285 = vmatprep.subr.mxu0 0.0
        %2286 = vmatpush1.msra.mxu0 0.0
        %2287 = vmatprep.subr.mxu0 0.0
        %2288 = vmatpush1.msra.mxu0 0.0
        %2289 = vmatprep.subr.mxu0 0.0
        %2290 = vmatpush1.msra.mxu0 0.0
        %2291 = vmatprep.subr.mxu0 0.0
        %2292 = vmatpush1.msra.mxu0 0.0
        %2293 = vmatprep.subr.mxu0 0.0
        %2294 = vmatpush1.msra.mxu0 0.0
        %2295 = vmatprep.subr.mxu0 0.0
        %2296 = vmatpush1.msra.mxu0 0.0
        %2297 = vmatprep.subr.mxu0 0.0
        %2298 = vmatpush1.msra.mxu0 0.0
        %2299 = vmatprep.subr.mxu0 0.0
        %2300 = vmatpush1.msra.mxu0 0.0
        %2301 = vmatprep.subr.mxu0 0.0
        %2302 = vmatpush1.msra.mxu0 %v758
        %2303 = vmatprep.subr.mxu0 0.0
        %2304 = vmatpush2.msra.mxu0 0.0
        %2305 = vmatprep.subr.mxu0 0.0
        %2306 = vmatpush2.msra.mxu0 0.0
        %2307 = vmatprep.subr.mxu0 0.0
        %2308 = vmatpush2.msra.mxu0 0.0
        %2309 = vmatprep.subr.mxu0 0.0
        %2310 = vmatpush2.msra.mxu0 0.0
        %2311 = vmatprep.subr.mxu0 0.0
        %2312 = vmatpush2.msra.mxu0 0.0
        %2313 = vmatprep.subr.mxu0 0.0
        %2314 = vmatpush2.msra.mxu0 0.0
        %2315 = vmatprep.subr.mxu0 0.0
        %2316 = vmatpush2.msra.mxu0 0.0
        %2317 = vmatprep.subr.mxu0 0.0
        %2318 = vmatpush2.msra.mxu0 0.0
        %2319 = vmatprep.subr.mxu0 0.0
        %2320 = vmatpush2.msra.mxu0 0.0
        %2321 = vmatprep.subr.mxu0 0.0
        %2322 = vmatpush2.msra.mxu0 0.0
        %2323 = vmatprep.subr.mxu0 0.0
        %2324 = vmatpush2.msra.mxu0 0.0
        %2325 = vmatprep.subr.mxu0 0.0
        %2326 = vmatpush2.msra.mxu0 0.0
        %2327 = vmatprep.subr.mxu0 0.0
        %2328 = vmatpush2.msra.mxu0 0.0
        %2329 = vmatprep.subr.mxu0 0.0
        %2330 = vmatpush2.msra.mxu0 0.0
        %2331 = vmatprep.subr.mxu0 0.0
        %2332 = vmatpush2.msra.mxu0 0.0
        %2333 = vmatprep.subr.mxu0 0.0
        %2334 = vmatpush2.msra.mxu0 0.0
        %2335 = vmatprep.mubr.f32.mxu0 0.0
        %2336 = vmatmul.mubr.f32.gmra.mxu0 %v2248
        %v2337 = vpop.f32.mrf.mxu0
        %v2338 = vadd.f32 0.0, %v2337
        %v2339 = vpop.f32.mrf.mxu0
        %2340 = vmatprep.mubr.f32.mxu0 0.0
        %2341 = vmatmul.mubr.f32.gmra.mxu0 %v2251
        %v2342 = vpop.f32.mrf.mxu0
        %v2343 = vadd.f32 0.0, %v2342
        %v2344 = vpop.f32.mrf.mxu0
        %2345 = vmatprep.mubr.f32.mxu0 0.0
        %2346 = vmatmul.mubr.f32.gmra.mxu0 %v2254
        %v2347 = vpop.f32.mrf.mxu0
        %v2348 = vadd.f32 0.0, %v2347
        %v2349 = vpop.f32.mrf.mxu0
        %2350 = vmatprep.mubr.f32.mxu0 0.0
        %2351 = vmatmul.mubr.f32.gmra.mxu0 %v2257
        %v2352 = vpop.f32.mrf.mxu0
        %v2353 = vadd.f32 0.0, %v2352
        %v2354 = vpop.f32.mrf.mxu0
        %2355 = vmatprep.mubr.f32.mxu0 0.0
        %2356 = vmatmul.mubr.f32.gmra.mxu0 %v2260
        %v2357 = vpop.f32.mrf.mxu0
        %v2358 = vadd.f32 0.0, %v2357
        %v2359 = vpop.f32.mrf.mxu0
        %2360 = vmatprep.mubr.f32.mxu0 0.0
        %2361 = vmatmul.mubr.f32.gmra.mxu0 %v2263
        %v2362 = vpop.f32.mrf.mxu0
        %v2363 = vadd.f32 0.0, %v2362
        %v2364 = vpop.f32.mrf.mxu0
        %2365 = vmatprep.mubr.f32.mxu0 0.0
        %2366 = vmatmul.mubr.f32.gmra.mxu0 %v2266
        %v2367 = vpop.f32.mrf.mxu0
        %v2368 = vadd.f32 0.0, %v2367
        %v2369 = vpop.f32.mrf.mxu0
        %2370 = vmatprep.mubr.f32.mxu0 0.0
        %2371 = vmatmul.mubr.f32.gmra.mxu0 %v2269
        %v2372 = vpop.f32.mrf.mxu0
        %v2373 = vadd.f32 0.0, %v2372
        %v2374 = vpop.f32.mrf.mxu0
        %2375 = vdwg.mxu0
        %v2377 = vsel %vm1343, %v1103, 0
        %v2380 = vsel %vm1343, %v1104, 0
        %v2383 = vsel %vm1343, %v1105, 0
        %v2386 = vsel %vm1343, %v1106, 0
        %v2389 = vsel %vm1343, %v1107, 0
        %v2392 = vsel %vm1343, %v1108, 0
        %v2395 = vsel %vm1343, %v1109, 0
        %v2398 = vsel %vm1343, %v1110, 0
        %2400 = vmatprep.subr.mxu0 0.0
        %2401 = vmatpush1.msra.mxu0 0.0
        %2402 = vmatprep.subr.mxu0 0.0
        %2403 = vmatpush1.msra.mxu0 0.0
        %2404 = vmatprep.subr.mxu0 0.0
        %2405 = vmatpush1.msra.mxu0 0.0
        %2406 = vmatprep.subr.mxu0 0.0
        %2407 = vmatpush1.msra.mxu0 0.0
        %2408 = vmatprep.subr.mxu0 0.0
        %2409 = vmatpush1.msra.mxu0 0.0
        %2410 = vmatprep.subr.mxu0 0.0
        %2411 = vmatpush1.msra.mxu0 0.0
        %2412 = vmatprep.subr.mxu0 0.0
        %2413 = vmatpush1.msra.mxu0 0.0
        %2414 = vmatprep.subr.mxu0 0.0
        %2415 = vmatpush1.msra.mxu0 0.0
        %2416 = vmatprep.subr.mxu0 0.0
        %2417 = vmatpush1.msra.mxu0 0.0
        %2418 = vmatprep.subr.mxu0 0.0
        %2419 = vmatpush1.msra.mxu0 0.0
        %2420 = vmatprep.subr.mxu0 0.0
        %2421 = vmatpush1.msra.mxu0 0.0
        %2422 = vmatprep.subr.mxu0 0.0
        %2423 = vmatpush1.msra.mxu0 0.0
        %2424 = vmatprep.subr.mxu0 0.0
        %2425 = vmatpush1.msra.mxu0 0.0
        %2426 = vmatprep.subr.mxu0 0.0
        %2427 = vmatpush1.msra.mxu0 0.0
        %2428 = vmatprep.subr.mxu0 0.0
        %2429 = vmatpush1.msra.mxu0 0.0
        %2430 = vmatprep.subr.mxu0 0.0
        %2431 = vmatpush1.msra.mxu0 %v787
        %2432 = vmatprep.subr.mxu0 0.0
        %2433 = vmatpush2.msra.mxu0 0.0
        %2434 = vmatprep.subr.mxu0 0.0
        %2435 = vmatpush2.msra.mxu0 0.0
        %2436 = vmatprep.subr.mxu0 0.0
        %2437 = vmatpush2.msra.mxu0 0.0
        %2438 = vmatprep.subr.mxu0 0.0
        %2439 = vmatpush2.msra.mxu0 0.0
        %2440 = vmatprep.subr.mxu0 0.0
        %2441 = vmatpush2.msra.mxu0 0.0
        %2442 = vmatprep.subr.mxu0 0.0
        %2443 = vmatpush2.msra.mxu0 0.0
        %2444 = vmatprep.subr.mxu0 0.0
        %2445 = vmatpush2.msra.mxu0 0.0
        %2446 = vmatprep.subr.mxu0 0.0
        %2447 = vmatpush2.msra.mxu0 0.0
        %2448 = vmatprep.subr.mxu0 0.0
        %2449 = vmatpush2.msra.mxu0 0.0
        %2450 = vmatprep.subr.mxu0 0.0
        %2451 = vmatpush2.msra.mxu0 0.0
        %2452 = vmatprep.subr.mxu0 0.0
        %2453 = vmatpush2.msra.mxu0 0.0
        %2454 = vmatprep.subr.mxu0 0.0
        %2455 = vmatpush2.msra.mxu0 0.0
        %2456 = vmatprep.subr.mxu0 0.0
        %2457 = vmatpush2.msra.mxu0 0.0
        %2458 = vmatprep.subr.mxu0 0.0
        %2459 = vmatpush2.msra.mxu0 0.0
        %2460 = vmatprep.subr.mxu0 0.0
        %2461 = vmatpush2.msra.mxu0 0.0
        %2462 = vmatprep.subr.mxu0 0.0
        %2463 = vmatpush2.msra.mxu0 0.0
        %2464 = vmatprep.mubr.f32.mxu0 0.0
        %2465 = vmatmul.mubr.f32.gmra.mxu0 %v2377
        %v2466 = vpop.f32.mrf.mxu0
        %v2467 = vadd.f32 0.0, %v2466
        %v2468 = vpop.f32.mrf.mxu0
        %2469 = vmatprep.mubr.f32.mxu0 0.0
        %2470 = vmatmul.mubr.f32.gmra.mxu0 %v2380
        %v2471 = vpop.f32.mrf.mxu0
        %v2472 = vadd.f32 0.0, %v2471
        %v2473 = vpop.f32.mrf.mxu0
        %2474 = vmatprep.mubr.f32.mxu0 0.0
        %2475 = vmatmul.mubr.f32.gmra.mxu0 %v2383
        %v2476 = vpop.f32.mrf.mxu0
        %v2477 = vadd.f32 0.0, %v2476
        %v2478 = vpop.f32.mrf.mxu0
        %2479 = vmatprep.mubr.f32.mxu0 0.0
        %2480 = vmatmul.mubr.f32.gmra.mxu0 %v2386
        %v2481 = vpop.f32.mrf.mxu0
        %v2482 = vadd.f32 0.0, %v2481
        %v2483 = vpop.f32.mrf.mxu0
        %2484 = vmatprep.mubr.f32.mxu0 0.0
        %2485 = vmatmul.mubr.f32.gmra.mxu0 %v2389
        %v2486 = vpop.f32.mrf.mxu0
        %v2487 = vadd.f32 0.0, %v2486
        %v2488 = vpop.f32.mrf.mxu0
        %2489 = vmatprep.mubr.f32.mxu0 0.0
        %2490 = vmatmul.mubr.f32.gmra.mxu0 %v2392
        %v2491 = vpop.f32.mrf.mxu0
        %v2492 = vadd.f32 0.0, %v2491
        %v2493 = vpop.f32.mrf.mxu0
        %2494 = vmatprep.mubr.f32.mxu0 0.0
        %2495 = vmatmul.mubr.f32.gmra.mxu0 %v2395
        %v2496 = vpop.f32.mrf.mxu0
        %v2497 = vadd.f32 0.0, %v2496
        %v2498 = vpop.f32.mrf.mxu0
        %2499 = vmatprep.mubr.f32.mxu0 0.0
        %2500 = vmatmul.mubr.f32.gmra.mxu0 %v2398
        %v2501 = vpop.f32.mrf.mxu0
        %v2502 = vadd.f32 0.0, %v2501
        %v2503 = vpop.f32.mrf.mxu0
        %2504 = vdwg.mxu0
        %v2506 = vsel %vm1343, %v1135, 0
        %v2509 = vsel %vm1343, %v1136, 0
        %v2512 = vsel %vm1343, %v1137, 0
        %v2515 = vsel %vm1343, %v1138, 0
        %v2518 = vsel %vm1343, %v1139, 0
        %v2521 = vsel %vm1343, %v1140, 0
        %v2524 = vsel %vm1343, %v1141, 0
        %v2527 = vsel %vm1343, %v1142, 0
        %2529 = vmatprep.subr.mxu0 0.0
        %2530 = vmatpush1.msra.mxu0 0.0
        %2531 = vmatprep.subr.mxu0 0.0
        %2532 = vmatpush1.msra.mxu0 0.0
        %2533 = vmatprep.subr.mxu0 0.0
        %2534 = vmatpush1.msra.mxu0 0.0
        %2535 = vmatprep.subr.mxu0 0.0
        %2536 = vmatpush1.msra.mxu0 0.0
        %2537 = vmatprep.subr.mxu0 0.0
        %2538 = vmatpush1.msra.mxu0 0.0
        %2539 = vmatprep.subr.mxu0 0.0
        %2540 = vmatpush1.msra.mxu0 0.0
        %2541 = vmatprep.subr.mxu0 0.0
        %2542 = vmatpush1.msra.mxu0 0.0
        %2543 = vmatprep.subr.mxu0 0.0
        %2544 = vmatpush1.msra.mxu0 0.0
        %2545 = vmatprep.subr.mxu0 0.0
        %2546 = vmatpush1.msra.mxu0 0.0
        %2547 = vmatprep.subr.mxu0 0.0
        %2548 = vmatpush1.msra.mxu0 0.0
        %2549 = vmatprep.subr.mxu0 0.0
        %2550 = vmatpush1.msra.mxu0 0.0
        %2551 = vmatprep.subr.mxu0 0.0
        %2552 = vmatpush1.msra.mxu0 0.0
        %2553 = vmatprep.subr.mxu0 0.0
        %2554 = vmatpush1.msra.mxu0 0.0
        %2555 = vmatprep.subr.mxu0 0.0
        %2556 = vmatpush1.msra.mxu0 0.0
        %2557 = vmatprep.subr.mxu0 0.0
        %2558 = vmatpush1.msra.mxu0 0.0
        %2559 = vmatprep.subr.mxu0 0.0
        %2560 = vmatpush1.msra.mxu0 %v788
        %2561 = vmatprep.subr.mxu0 0.0
        %2562 = vmatpush2.msra.mxu0 0.0
        %2563 = vmatprep.subr.mxu0 0.0
        %2564 = vmatpush2.msra.mxu0 0.0
        %2565 = vmatprep.subr.mxu0 0.0
        %2566 = vmatpush2.msra.mxu0 0.0
        %2567 = vmatprep.subr.mxu0 0.0
        %2568 = vmatpush2.msra.mxu0 0.0
        %2569 = vmatprep.subr.mxu0 0.0
        %2570 = vmatpush2.msra.mxu0 0.0
        %2571 = vmatprep.subr.mxu0 0.0
        %2572 = vmatpush2.msra.mxu0 0.0
        %2573 = vmatprep.subr.mxu0 0.0
        %2574 = vmatpush2.msra.mxu0 0.0
        %2575 = vmatprep.subr.mxu0 0.0
        %2576 = vmatpush2.msra.mxu0 0.0
        %2577 = vmatprep.subr.mxu0 0.0
        %2578 = vmatpush2.msra.mxu0 0.0
        %2579 = vmatprep.subr.mxu0 0.0
        %2580 = vmatpush2.msra.mxu0 0.0
        %2581 = vmatprep.subr.mxu0 0.0
        %2582 = vmatpush2.msra.mxu0 0.0
        %2583 = vmatprep.subr.mxu0 0.0
        %2584 = vmatpush2.msra.mxu0 0.0
        %2585 = vmatprep.subr.mxu0 0.0
        %2586 = vmatpush2.msra.mxu0 0.0
        %2587 = vmatprep.subr.mxu0 0.0
        %2588 = vmatpush2.msra.mxu0 0.0
        %2589 = vmatprep.subr.mxu0 0.0
        %2590 = vmatpush2.msra.mxu0 0.0
        %2591 = vmatprep.subr.mxu0 0.0
        %2592 = vmatpush2.msra.mxu0 0.0
        %2593 = vmatprep.mubr.f32.mxu0 0.0
        %2594 = vmatmul.mubr.f32.gmra.mxu0 %v2506
        %v2595 = vpop.f32.mrf.mxu0
        %v2596 = vadd.f32 0.0, %v2595
        %v2597 = vpop.f32.mrf.mxu0
        %2598 = vmatprep.mubr.f32.mxu0 0.0
        %2599 = vmatmul.mubr.f32.gmra.mxu0 %v2509
        %v2600 = vpop.f32.mrf.mxu0
        %v2601 = vadd.f32 0.0, %v2600
        %v2602 = vpop.f32.mrf.mxu0
        %2603 = vmatprep.mubr.f32.mxu0 0.0
        %2604 = vmatmul.mubr.f32.gmra.mxu0 %v2512
        %v2605 = vpop.f32.mrf.mxu0
        %v2606 = vadd.f32 0.0, %v2605
        %v2607 = vpop.f32.mrf.mxu0
        %2608 = vmatprep.mubr.f32.mxu0 0.0
        %2609 = vmatmul.mubr.f32.gmra.mxu0 %v2515
        %v2610 = vpop.f32.mrf.mxu0
        %v2611 = vadd.f32 0.0, %v2610
        %v2612 = vpop.f32.mrf.mxu0
        %2613 = vmatprep.mubr.f32.mxu0 0.0
        %2614 = vmatmul.mubr.f32.gmra.mxu0 %v2518
        %v2615 = vpop.f32.mrf.mxu0
        %v2616 = vadd.f32 0.0, %v2615
        %v2617 = vpop.f32.mrf.mxu0
        %2618 = vmatprep.mubr.f32.mxu0 0.0
        %2619 = vmatmul.mubr.f32.gmra.mxu0 %v2521
        %v2620 = vpop.f32.mrf.mxu0
        %v2621 = vadd.f32 0.0, %v2620
        %v2622 = vpop.f32.mrf.mxu0
        %2623 = vmatprep.mubr.f32.mxu0 0.0
        %2624 = vmatmul.mubr.f32.gmra.mxu0 %v2524
        %v2625 = vpop.f32.mrf.mxu0
        %v2626 = vadd.f32 0.0, %v2625
        %v2627 = vpop.f32.mrf.mxu0
        %2628 = vmatprep.mubr.f32.mxu0 0.0
        %2629 = vmatmul.mubr.f32.gmra.mxu0 %v2527
        %v2630 = vpop.f32.mrf.mxu0
        %v2631 = vadd.f32 0.0, %v2630
        %v2632 = vpop.f32.mrf.mxu0
        %2633 = vdwg.mxu0
        %v2635 = vsel %vm1343, %v1167, 0
        %v2638 = vsel %vm1343, %v1168, 0
        %v2641 = vsel %vm1343, %v1169, 0
        %v2644 = vsel %vm1343, %v1170, 0
        %v2647 = vsel %vm1343, %v1171, 0
        %v2650 = vsel %vm1343, %v1172, 0
        %v2653 = vsel %vm1343, %v1173, 0
        %v2656 = vsel %vm1343, %v1174, 0
        %2658 = vmatprep.subr.mxu0 0.0
        %2659 = vmatpush1.msra.mxu0 0.0
        %2660 = vmatprep.subr.mxu0 0.0
        %2661 = vmatpush1.msra.mxu0 0.0
        %2662 = vmatprep.subr.mxu0 0.0
        %2663 = vmatpush1.msra.mxu0 0.0
        %2664 = vmatprep.subr.mxu0 0.0
        %2665 = vmatpush1.msra.mxu0 0.0
        %2666 = vmatprep.subr.mxu0 0.0
        %2667 = vmatpush1.msra.mxu0 0.0
        %2668 = vmatprep.subr.mxu0 0.0
        %2669 = vmatpush1.msra.mxu0 0.0
        %2670 = vmatprep.subr.mxu0 0.0
        %2671 = vmatpush1.msra.mxu0 0.0
        %2672 = vmatprep.subr.mxu0 0.0
        %2673 = vmatpush1.msra.mxu0 0.0
        %2674 = vmatprep.subr.mxu0 0.0
        %2675 = vmatpush1.msra.mxu0 0.0
        %2676 = vmatprep.subr.mxu0 0.0
        %2677 = vmatpush1.msra.mxu0 0.0
        %2678 = vmatprep.subr.mxu0 0.0
        %2679 = vmatpush1.msra.mxu0 0.0
        %2680 = vmatprep.subr.mxu0 0.0
        %2681 = vmatpush1.msra.mxu0 0.0
        %2682 = vmatprep.subr.mxu0 0.0
        %2683 = vmatpush1.msra.mxu0 0.0
        %2684 = vmatprep.subr.mxu0 0.0
        %2685 = vmatpush1.msra.mxu0 0.0
        %2686 = vmatprep.subr.mxu0 0.0
        %2687 = vmatpush1.msra.mxu0 0.0
        %2688 = vmatprep.subr.mxu0 0.0
        %2689 = vmatpush1.msra.mxu0 %v789
        %2690 = vmatprep.subr.mxu0 0.0
        %2691 = vmatpush2.msra.mxu0 0.0
        %2692 = vmatprep.subr.mxu0 0.0
        %2693 = vmatpush2.msra.mxu0 0.0
        %2694 = vmatprep.subr.mxu0 0.0
        %2695 = vmatpush2.msra.mxu0 0.0
        %2696 = vmatprep.subr.mxu0 0.0
        %2697 = vmatpush2.msra.mxu0 0.0
        %2698 = vmatprep.subr.mxu0 0.0
        %2699 = vmatpush2.msra.mxu0 0.0
        %2700 = vmatprep.subr.mxu0 0.0
        %2701 = vmatpush2.msra.mxu0 0.0
        %2702 = vmatprep.subr.mxu0 0.0
        %2703 = vmatpush2.msra.mxu0 0.0
        %2704 = vmatprep.subr.mxu0 0.0
        %2705 = vmatpush2.msra.mxu0 0.0
        %2706 = vmatprep.subr.mxu0 0.0
        %2707 = vmatpush2.msra.mxu0 0.0
        %2708 = vmatprep.subr.mxu0 0.0
        %2709 = vmatpush2.msra.mxu0 0.0
        %2710 = vmatprep.subr.mxu0 0.0
        %2711 = vmatpush2.msra.mxu0 0.0
        %2712 = vmatprep.subr.mxu0 0.0
        %2713 = vmatpush2.msra.mxu0 0.0
        %2714 = vmatprep.subr.mxu0 0.0
        %2715 = vmatpush2.msra.mxu0 0.0
        %2716 = vmatprep.subr.mxu0 0.0
        %2717 = vmatpush2.msra.mxu0 0.0
        %2718 = vmatprep.subr.mxu0 0.0
        %2719 = vmatpush2.msra.mxu0 0.0
        %2720 = vmatprep.subr.mxu0 0.0
        %2721 = vmatpush2.msra.mxu0 0.0
        %2722 = vmatprep.mubr.f32.mxu0 0.0
        %2723 = vmatmul.mubr.f32.gmra.mxu0 %v2635
        %v2724 = vpop.f32.mrf.mxu0
        %v2725 = vadd.f32 0.0, %v2724
        %v2726 = vpop.f32.mrf.mxu0
        %2727 = vmatprep.mubr.f32.mxu0 0.0
        %2728 = vmatmul.mubr.f32.gmra.mxu0 %v2638
        %v2729 = vpop.f32.mrf.mxu0
        %v2730 = vadd.f32 0.0, %v2729
        %v2731 = vpop.f32.mrf.mxu0
        %2732 = vmatprep.mubr.f32.mxu0 0.0
        %2733 = vmatmul.mubr.f32.gmra.mxu0 %v2641
        %v2734 = vpop.f32.mrf.mxu0
        %v2735 = vadd.f32 0.0, %v2734
        %v2736 = vpop.f32.mrf.mxu0
        %2737 = vmatprep.mubr.f32.mxu0 0.0
        %2738 = vmatmul.mubr.f32.gmra.mxu0 %v2644
        %v2739 = vpop.f32.mrf.mxu0
        %v2740 = vadd.f32 0.0, %v2739
        %v2741 = vpop.f32.mrf.mxu0
        %2742 = vmatprep.mubr.f32.mxu0 0.0
        %2743 = vmatmul.mubr.f32.gmra.mxu0 %v2647
        %v2744 = vpop.f32.mrf.mxu0
        %v2745 = vadd.f32 0.0, %v2744
        %v2746 = vpop.f32.mrf.mxu0
        %2747 = vmatprep.mubr.f32.mxu0 0.0
        %2748 = vmatmul.mubr.f32.gmra.mxu0 %v2650
        %v2749 = vpop.f32.mrf.mxu0
        %v2750 = vadd.f32 0.0, %v2749
        %v2751 = vpop.f32.mrf.mxu0
        %2752 = vmatprep.mubr.f32.mxu0 0.0
        %2753 = vmatmul.mubr.f32.gmra.mxu0 %v2653
        %v2754 = vpop.f32.mrf.mxu0
        %v2755 = vadd.f32 0.0, %v2754
        %v2756 = vpop.f32.mrf.mxu0
        %2757 = vmatprep.mubr.f32.mxu0 0.0
        %2758 = vmatmul.mubr.f32.gmra.mxu0 %v2656
        %v2759 = vpop.f32.mrf.mxu0
        %v2760 = vadd.f32 0.0, %v2759
        %v2761 = vpop.f32.mrf.mxu0
        %2762 = vdwg.mxu0
        %v2764 = vsel %vm1343, %v1199, 0
        %v2767 = vsel %vm1343, %v1200, 0
        %v2770 = vsel %vm1343, %v1201, 0
        %v2773 = vsel %vm1343, %v1202, 0
        %v2776 = vsel %vm1343, %v1203, 0
        %v2779 = vsel %vm1343, %v1204, 0
        %v2782 = vsel %vm1343, %v1205, 0
        %v2785 = vsel %vm1343, %v1206, 0
        %2787 = vmatprep.subr.mxu0 0.0
        %2788 = vmatpush1.msra.mxu0 0.0
        %2789 = vmatprep.subr.mxu0 0.0
        %2790 = vmatpush1.msra.mxu0 0.0
        %2791 = vmatprep.subr.mxu0 0.0
        %2792 = vmatpush1.msra.mxu0 0.0
        %2793 = vmatprep.subr.mxu0 0.0
        %2794 = vmatpush1.msra.mxu0 0.0
        %2795 = vmatprep.subr.mxu0 0.0
        %2796 = vmatpush1.msra.mxu0 0.0
        %2797 = vmatprep.subr.mxu0 0.0
        %2798 = vmatpush1.msra.mxu0 0.0
        %2799 = vmatprep.subr.mxu0 0.0
        %2800 = vmatpush1.msra.mxu0 0.0
        %2801 = vmatprep.subr.mxu0 0.0
        %2802 = vmatpush1.msra.mxu0 0.0
        %2803 = vmatprep.subr.mxu0 0.0
        %2804 = vmatpush1.msra.mxu0 0.0
        %2805 = vmatprep.subr.mxu0 0.0
        %2806 = vmatpush1.msra.mxu0 0.0
        %2807 = vmatprep.subr.mxu0 0.0
        %2808 = vmatpush1.msra.mxu0 0.0
        %2809 = vmatprep.subr.mxu0 0.0
        %2810 = vmatpush1.msra.mxu0 0.0
        %2811 = vmatprep.subr.mxu0 0.0
        %2812 = vmatpush1.msra.mxu0 0.0
        %2813 = vmatprep.subr.mxu0 0.0
        %2814 = vmatpush1.msra.mxu0 0.0
        %2815 = vmatprep.subr.mxu0 0.0
        %2816 = vmatpush1.msra.mxu0 0.0
        %2817 = vmatprep.subr.mxu0 0.0
        %2818 = vmatpush1.msra.mxu0 %v790
        %2819 = vmatprep.subr.mxu0 0.0
        %2820 = vmatpush2.msra.mxu0 0.0
        %2821 = vmatprep.subr.mxu0 0.0
        %2822 = vmatpush2.msra.mxu0 0.0
        %2823 = vmatprep.subr.mxu0 0.0
        %2824 = vmatpush2.msra.mxu0 0.0
        %2825 = vmatprep.subr.mxu0 0.0
        %2826 = vmatpush2.msra.mxu0 0.0
        %2827 = vmatprep.subr.mxu0 0.0
        %2828 = vmatpush2.msra.mxu0 0.0
        %2829 = vmatprep.subr.mxu0 0.0
        %2830 = vmatpush2.msra.mxu0 0.0
        %2831 = vmatprep.subr.mxu0 0.0
        %2832 = vmatpush2.msra.mxu0 0.0
        %2833 = vmatprep.subr.mxu0 0.0
        %2834 = vmatpush2.msra.mxu0 0.0
        %2835 = vmatprep.subr.mxu0 0.0
        %2836 = vmatpush2.msra.mxu0 0.0
        %2837 = vmatprep.subr.mxu0 0.0
        %2838 = vmatpush2.msra.mxu0 0.0
        %2839 = vmatprep.subr.mxu0 0.0
        %2840 = vmatpush2.msra.mxu0 0.0
        %2841 = vmatprep.subr.mxu0 0.0
        %2842 = vmatpush2.msra.mxu0 0.0
        %2843 = vmatprep.subr.mxu0 0.0
        %2844 = vmatpush2.msra.mxu0 0.0
        %2845 = vmatprep.subr.mxu0 0.0
        %2846 = vmatpush2.msra.mxu0 0.0
        %2847 = vmatprep.subr.mxu0 0.0
        %2848 = vmatpush2.msra.mxu0 0.0
        %2849 = vmatprep.subr.mxu0 0.0
        %2850 = vmatpush2.msra.mxu0 0.0
        %2851 = vmatprep.mubr.f32.mxu0 0.0
        %2852 = vmatmul.mubr.f32.gmra.mxu0 %v2764
        %v2853 = vpop.f32.mrf.mxu0
        %v2854 = vadd.f32 0.0, %v2853
        %v2855 = vpop.f32.mrf.mxu0
        %2856 = vmatprep.mubr.f32.mxu0 0.0
        %2857 = vmatmul.mubr.f32.gmra.mxu0 %v2767
        %v2858 = vpop.f32.mrf.mxu0
        %v2859 = vadd.f32 0.0, %v2858
        %v2860 = vpop.f32.mrf.mxu0
        %2861 = vmatprep.mubr.f32.mxu0 0.0
        %2862 = vmatmul.mubr.f32.gmra.mxu0 %v2770
        %v2863 = vpop.f32.mrf.mxu0
        %v2864 = vadd.f32 0.0, %v2863
        %v2865 = vpop.f32.mrf.mxu0
        %2866 = vmatprep.mubr.f32.mxu0 0.0
        %2867 = vmatmul.mubr.f32.gmra.mxu0 %v2773
        %v2868 = vpop.f32.mrf.mxu0
        %v2869 = vadd.f32 0.0, %v2868
        %v2870 = vpop.f32.mrf.mxu0
        %2871 = vmatprep.mubr.f32.mxu0 0.0
        %2872 = vmatmul.mubr.f32.gmra.mxu0 %v2776
        %v2873 = vpop.f32.mrf.mxu0
        %v2874 = vadd.f32 0.0, %v2873
        %v2875 = vpop.f32.mrf.mxu0
        %2876 = vmatprep.mubr.f32.mxu0 0.0
        %2877 = vmatmul.mubr.f32.gmra.mxu0 %v2779
        %v2878 = vpop.f32.mrf.mxu0
        %v2879 = vadd.f32 0.0, %v2878
        %v2880 = vpop.f32.mrf.mxu0
        %2881 = vmatprep.mubr.f32.mxu0 0.0
        %2882 = vmatmul.mubr.f32.gmra.mxu0 %v2782
        %v2883 = vpop.f32.mrf.mxu0
        %v2884 = vadd.f32 0.0, %v2883
        %v2885 = vpop.f32.mrf.mxu0
        %2886 = vmatprep.mubr.f32.mxu0 0.0
        %2887 = vmatmul.mubr.f32.gmra.mxu0 %v2785
        %v2888 = vpop.f32.mrf.mxu0
        %v2889 = vadd.f32 0.0, %v2888
        %v2890 = vpop.f32.mrf.mxu0
        %2891 = vdwg.mxu0
        %v2893 = vsel %vm1343, %v1231, 0
        %v2896 = vsel %vm1343, %v1232, 0
        %v2899 = vsel %vm1343, %v1233, 0
        %v2902 = vsel %vm1343, %v1234, 0
        %v2905 = vsel %vm1343, %v1235, 0
        %v2908 = vsel %vm1343, %v1236, 0
        %v2911 = vsel %vm1343, %v1237, 0
        %v2914 = vsel %vm1343, %v1238, 0
        %2916 = vmatprep.subr.mxu0 0.0
        %2917 = vmatpush1.msra.mxu0 0.0
        %2918 = vmatprep.subr.mxu0 0.0
        %2919 = vmatpush1.msra.mxu0 0.0
        %2920 = vmatprep.subr.mxu0 0.0
        %2921 = vmatpush1.msra.mxu0 0.0
        %2922 = vmatprep.subr.mxu0 0.0
        %2923 = vmatpush1.msra.mxu0 0.0
        %2924 = vmatprep.subr.mxu0 0.0
        %2925 = vmatpush1.msra.mxu0 0.0
        %2926 = vmatprep.subr.mxu0 0.0
        %2927 = vmatpush1.msra.mxu0 0.0
        %2928 = vmatprep.subr.mxu0 0.0
        %2929 = vmatpush1.msra.mxu0 0.0
        %2930 = vmatprep.subr.mxu0 0.0
        %2931 = vmatpush1.msra.mxu0 0.0
        %2932 = vmatprep.subr.mxu0 0.0
        %2933 = vmatpush1.msra.mxu0 0.0
        %2934 = vmatprep.subr.mxu0 0.0
        %2935 = vmatpush1.msra.mxu0 0.0
        %2936 = vmatprep.subr.mxu0 0.0
        %2937 = vmatpush1.msra.mxu0 0.0
        %2938 = vmatprep.subr.mxu0 0.0
        %2939 = vmatpush1.msra.mxu0 0.0
        %2940 = vmatprep.subr.mxu0 0.0
        %2941 = vmatpush1.msra.mxu0 0.0
        %2942 = vmatprep.subr.mxu0 0.0
        %2943 = vmatpush1.msra.mxu0 0.0
        %2944 = vmatprep.subr.mxu0 0.0
        %2945 = vmatpush1.msra.mxu0 0.0
        %2946 = vmatprep.subr.mxu0 0.0
        %2947 = vmatpush1.msra.mxu0 %v819
        %2948 = vmatprep.subr.mxu0 0.0
        %2949 = vmatpush2.msra.mxu0 0.0
        %2950 = vmatprep.subr.mxu0 0.0
        %2951 = vmatpush2.msra.mxu0 0.0
        %2952 = vmatprep.subr.mxu0 0.0
        %2953 = vmatpush2.msra.mxu0 0.0
        %2954 = vmatprep.subr.mxu0 0.0
        %2955 = vmatpush2.msra.mxu0 0.0
        %2956 = vmatprep.subr.mxu0 0.0
        %2957 = vmatpush2.msra.mxu0 0.0
        %2958 = vmatprep.subr.mxu0 0.0
        %2959 = vmatpush2.msra.mxu0 0.0
        %2960 = vmatprep.subr.mxu0 0.0
        %2961 = vmatpush2.msra.mxu0 0.0
        %2962 = vmatprep.subr.mxu0 0.0
        %2963 = vmatpush2.msra.mxu0 0.0
        %2964 = vmatprep.subr.mxu0 0.0
        %2965 = vmatpush2.msra.mxu0 0.0
        %2966 = vmatprep.subr.mxu0 0.0
        %2967 = vmatpush2.msra.mxu0 0.0
        %2968 = vmatprep.subr.mxu0 0.0
        %2969 = vmatpush2.msra.mxu0 0.0
        %2970 = vmatprep.subr.mxu0 0.0
        %2971 = vmatpush2.msra.mxu0 0.0
        %2972 = vmatprep.subr.mxu0 0.0
        %2973 = vmatpush2.msra.mxu0 0.0
        %2974 = vmatprep.subr.mxu0 0.0
        %2975 = vmatpush2.msra.mxu0 0.0
        %2976 = vmatprep.subr.mxu0 0.0
        %2977 = vmatpush2.msra.mxu0 0.0
        %2978 = vmatprep.subr.mxu0 0.0
        %2979 = vmatpush2.msra.mxu0 0.0
        %2980 = vmatprep.mubr.f32.mxu0 0.0
        %2981 = vmatmul.mubr.f32.gmra.mxu0 %v2893
        %v2982 = vpop.f32.mrf.mxu0
        %v2983 = vadd.f32 0.0, %v2982
        %v2984 = vpop.f32.mrf.mxu0
        %2985 = vmatprep.mubr.f32.mxu0 0.0
        %2986 = vmatmul.mubr.f32.gmra.mxu0 %v2896
        %v2987 = vpop.f32.mrf.mxu0
        %v2988 = vadd.f32 0.0, %v2987
        %v2989 = vpop.f32.mrf.mxu0
        %2990 = vmatprep.mubr.f32.mxu0 0.0
        %2991 = vmatmul.mubr.f32.gmra.mxu0 %v2899
        %v2992 = vpop.f32.mrf.mxu0
        %v2993 = vadd.f32 0.0, %v2992
        %v2994 = vpop.f32.mrf.mxu0
        %2995 = vmatprep.mubr.f32.mxu0 0.0
        %2996 = vmatmul.mubr.f32.gmra.mxu0 %v2902
        %v2997 = vpop.f32.mrf.mxu0
        %v2998 = vadd.f32 0.0, %v2997
        %v2999 = vpop.f32.mrf.mxu0
        %3000 = vmatprep.mubr.f32.mxu0 0.0
        %3001 = vmatmul.mubr.f32.gmra.mxu0 %v2905
        %v3002 = vpop.f32.mrf.mxu0
        %v3003 = vadd.f32 0.0, %v3002
        %v3004 = vpop.f32.mrf.mxu0
        %3005 = vmatprep.mubr.f32.mxu0 0.0
        %3006 = vmatmul.mubr.f32.gmra.mxu0 %v2908
        %v3007 = vpop.f32.mrf.mxu0
        %v3008 = vadd.f32 0.0, %v3007
        %v3009 = vpop.f32.mrf.mxu0
        %3010 = vmatprep.mubr.f32.mxu0 0.0
        %3011 = vmatmul.mubr.f32.gmra.mxu0 %v2911
        %v3012 = vpop.f32.mrf.mxu0
        %v3013 = vadd.f32 0.0, %v3012
        %v3014 = vpop.f32.mrf.mxu0
        %3015 = vmatprep.mubr.f32.mxu0 0.0
        %3016 = vmatmul.mubr.f32.gmra.mxu0 %v2914
        %v3017 = vpop.f32.mrf.mxu0
        %v3018 = vadd.f32 0.0, %v3017
        %v3019 = vpop.f32.mrf.mxu0
        %3020 = vdwg.mxu0
        %v3022 = vsel %vm1343, %v1263, 0
        %v3025 = vsel %vm1343, %v1264, 0
        %v3028 = vsel %vm1343, %v1265, 0
        %v3031 = vsel %vm1343, %v1266, 0
        %v3034 = vsel %vm1343, %v1267, 0
        %v3037 = vsel %vm1343, %v1268, 0
        %v3040 = vsel %vm1343, %v1269, 0
        %v3043 = vsel %vm1343, %v1270, 0
        %3045 = vmatprep.subr.mxu0 0.0
        %3046 = vmatpush1.msra.mxu0 0.0
        %3047 = vmatprep.subr.mxu0 0.0
        %3048 = vmatpush1.msra.mxu0 0.0
        %3049 = vmatprep.subr.mxu0 0.0
        %3050 = vmatpush1.msra.mxu0 0.0
        %3051 = vmatprep.subr.mxu0 0.0
        %3052 = vmatpush1.msra.mxu0 0.0
        %3053 = vmatprep.subr.mxu0 0.0
        %3054 = vmatpush1.msra.mxu0 0.0
        %3055 = vmatprep.subr.mxu0 0.0
        %3056 = vmatpush1.msra.mxu0 0.0
        %3057 = vmatprep.subr.mxu0 0.0
        %3058 = vmatpush1.msra.mxu0 0.0
        %3059 = vmatprep.subr.mxu0 0.0
        %3060 = vmatpush1.msra.mxu0 0.0
        %3061 = vmatprep.subr.mxu0 0.0
        %3062 = vmatpush1.msra.mxu0 0.0
        %3063 = vmatprep.subr.mxu0 0.0
        %3064 = vmatpush1.msra.mxu0 0.0
        %3065 = vmatprep.subr.mxu0 0.0
        %3066 = vmatpush1.msra.mxu0 0.0
        %3067 = vmatprep.subr.mxu0 0.0
        %3068 = vmatpush1.msra.mxu0 0.0
        %3069 = vmatprep.subr.mxu0 0.0
        %3070 = vmatpush1.msra.mxu0 0.0
        %3071 = vmatprep.subr.mxu0 0.0
        %3072 = vmatpush1.msra.mxu0 0.0
        %3073 = vmatprep.subr.mxu0 0.0
        %3074 = vmatpush1.msra.mxu0 0.0
        %3075 = vmatprep.subr.mxu0 0.0
        %3076 = vmatpush1.msra.mxu0 %v820
        %3077 = vmatprep.subr.mxu0 0.0
        %3078 = vmatpush2.msra.mxu0 0.0
        %3079 = vmatprep.subr.mxu0 0.0
        %3080 = vmatpush2.msra.mxu0 0.0
        %3081 = vmatprep.subr.mxu0 0.0
        %3082 = vmatpush2.msra.mxu0 0.0
        %3083 = vmatprep.subr.mxu0 0.0
        %3084 = vmatpush2.msra.mxu0 0.0
        %3085 = vmatprep.subr.mxu0 0.0
        %3086 = vmatpush2.msra.mxu0 0.0
        %3087 = vmatprep.subr.mxu0 0.0
        %3088 = vmatpush2.msra.mxu0 0.0
        %3089 = vmatprep.subr.mxu0 0.0
        %3090 = vmatpush2.msra.mxu0 0.0
        %3091 = vmatprep.subr.mxu0 0.0
        %3092 = vmatpush2.msra.mxu0 0.0
        %3093 = vmatprep.subr.mxu0 0.0
        %3094 = vmatpush2.msra.mxu0 0.0
        %3095 = vmatprep.subr.mxu0 0.0
        %3096 = vmatpush2.msra.mxu0 0.0
        %3097 = vmatprep.subr.mxu0 0.0
        %3098 = vmatpush2.msra.mxu0 0.0
        %3099 = vmatprep.subr.mxu0 0.0
        %3100 = vmatpush2.msra.mxu0 0.0
        %3101 = vmatprep.subr.mxu0 0.0
        %3102 = vmatpush2.msra.mxu0 0.0
        %3103 = vmatprep.subr.mxu0 0.0
        %3104 = vmatpush2.msra.mxu0 0.0
        %3105 = vmatprep.subr.mxu0 0.0
        %3106 = vmatpush2.msra.mxu0 0.0
        %3107 = vmatprep.subr.mxu0 0.0
        %3108 = vmatpush2.msra.mxu0 0.0
        %3109 = vmatprep.mubr.f32.mxu0 0.0
        %3110 = vmatmul.mubr.f32.gmra.mxu0 %v3022
        %v3111 = vpop.f32.mrf.mxu0
        %v3112 = vadd.f32 0.0, %v3111
        %v3113 = vpop.f32.mrf.mxu0
        %3114 = vmatprep.mubr.f32.mxu0 0.0
        %3115 = vmatmul.mubr.f32.gmra.mxu0 %v3025
        %v3116 = vpop.f32.mrf.mxu0
        %v3117 = vadd.f32 0.0, %v3116
        %v3118 = vpop.f32.mrf.mxu0
        %3119 = vmatprep.mubr.f32.mxu0 0.0
        %3120 = vmatmul.mubr.f32.gmra.mxu0 %v3028
        %v3121 = vpop.f32.mrf.mxu0
        %v3122 = vadd.f32 0.0, %v3121
        %v3123 = vpop.f32.mrf.mxu0
        %3124 = vmatprep.mubr.f32.mxu0 0.0
        %3125 = vmatmul.mubr.f32.gmra.mxu0 %v3031
        %v3126 = vpop.f32.mrf.mxu0
        %v3127 = vadd.f32 0.0, %v3126
        %v3128 = vpop.f32.mrf.mxu0
        %3129 = vmatprep.mubr.f32.mxu0 0.0
        %3130 = vmatmul.mubr.f32.gmra.mxu0 %v3034
        %v3131 = vpop.f32.mrf.mxu0
        %v3132 = vadd.f32 0.0, %v3131
        %v3133 = vpop.f32.mrf.mxu0
        %3134 = vmatprep.mubr.f32.mxu0 0.0
        %3135 = vmatmul.mubr.f32.gmra.mxu0 %v3037
        %v3136 = vpop.f32.mrf.mxu0
        %v3137 = vadd.f32 0.0, %v3136
        %v3138 = vpop.f32.mrf.mxu0
        %3139 = vmatprep.mubr.f32.mxu0 0.0
        %3140 = vmatmul.mubr.f32.gmra.mxu0 %v3040
        %v3141 = vpop.f32.mrf.mxu0
        %v3142 = vadd.f32 0.0, %v3141
        %v3143 = vpop.f32.mrf.mxu0
        %3144 = vmatprep.mubr.f32.mxu0 0.0
        %3145 = vmatmul.mubr.f32.gmra.mxu0 %v3043
        %v3146 = vpop.f32.mrf.mxu0
        %v3147 = vadd.f32 0.0, %v3146
        %v3148 = vpop.f32.mrf.mxu0
        %3149 = vdwg.mxu0
        %v3151 = vsel %vm1343, %v1295, 0
        %v3154 = vsel %vm1343, %v1296, 0
        %v3157 = vsel %vm1343, %v1297, 0
        %v3160 = vsel %vm1343, %v1298, 0
        %v3163 = vsel %vm1343, %v1299, 0
        %v3166 = vsel %vm1343, %v1300, 0
        %v3169 = vsel %vm1343, %v1301, 0
        %v3172 = vsel %vm1343, %v1302, 0
        %3174 = vmatprep.subr.mxu0 0.0
        %3175 = vmatpush1.msra.mxu0 0.0
        %3176 = vmatprep.subr.mxu0 0.0
        %3177 = vmatpush1.msra.mxu0 0.0
        %3178 = vmatprep.subr.mxu0 0.0
        %3179 = vmatpush1.msra.mxu0 0.0
        %3180 = vmatprep.subr.mxu0 0.0
        %3181 = vmatpush1.msra.mxu0 0.0
        %3182 = vmatprep.subr.mxu0 0.0
        %3183 = vmatpush1.msra.mxu0 0.0
        %3184 = vmatprep.subr.mxu0 0.0
        %3185 = vmatpush1.msra.mxu0 0.0
        %3186 = vmatprep.subr.mxu0 0.0
        %3187 = vmatpush1.msra.mxu0 0.0
        %3188 = vmatprep.subr.mxu0 0.0
        %3189 = vmatpush1.msra.mxu0 0.0
        %3190 = vmatprep.subr.mxu0 0.0
        %3191 = vmatpush1.msra.mxu0 0.0
        %3192 = vmatprep.subr.mxu0 0.0
        %3193 = vmatpush1.msra.mxu0 0.0
        %3194 = vmatprep.subr.mxu0 0.0
        %3195 = vmatpush1.msra.mxu0 0.0
        %3196 = vmatprep.subr.mxu0 0.0
        %3197 = vmatpush1.msra.mxu0 0.0
        %3198 = vmatprep.subr.mxu0 0.0
        %3199 = vmatpush1.msra.mxu0 0.0
        %3200 = vmatprep.subr.mxu0 0.0
        %3201 = vmatpush1.msra.mxu0 0.0
        %3202 = vmatprep.subr.mxu0 0.0
        %3203 = vmatpush1.msra.mxu0 0.0
        %3204 = vmatprep.subr.mxu0 0.0
        %3205 = vmatpush1.msra.mxu0 %v821
        %3206 = vmatprep.subr.mxu0 0.0
        %3207 = vmatpush2.msra.mxu0 0.0
        %3208 = vmatprep.subr.mxu0 0.0
        %3209 = vmatpush2.msra.mxu0 0.0
        %3210 = vmatprep.subr.mxu0 0.0
        %3211 = vmatpush2.msra.mxu0 0.0
        %3212 = vmatprep.subr.mxu0 0.0
        %3213 = vmatpush2.msra.mxu0 0.0
        %3214 = vmatprep.subr.mxu0 0.0
        %3215 = vmatpush2.msra.mxu0 0.0
        %3216 = vmatprep.subr.mxu0 0.0
        %3217 = vmatpush2.msra.mxu0 0.0
        %3218 = vmatprep.subr.mxu0 0.0
        %3219 = vmatpush2.msra.mxu0 0.0
        %3220 = vmatprep.subr.mxu0 0.0
        %3221 = vmatpush2.msra.mxu0 0.0
        %3222 = vmatprep.subr.mxu0 0.0
        %3223 = vmatpush2.msra.mxu0 0.0
        %3224 = vmatprep.subr.mxu0 0.0
        %3225 = vmatpush2.msra.mxu0 0.0
        %3226 = vmatprep.subr.mxu0 0.0
        %3227 = vmatpush2.msra.mxu0 0.0
        %3228 = vmatprep.subr.mxu0 0.0
        %3229 = vmatpush2.msra.mxu0 0.0
        %3230 = vmatprep.subr.mxu0 0.0
        %3231 = vmatpush2.msra.mxu0 0.0
        %3232 = vmatprep.subr.mxu0 0.0
        %3233 = vmatpush2.msra.mxu0 0.0
        %3234 = vmatprep.subr.mxu0 0.0
        %3235 = vmatpush2.msra.mxu0 0.0
        %3236 = vmatprep.subr.mxu0 0.0
        %3237 = vmatpush2.msra.mxu0 0.0
        %3238 = vmatprep.mubr.f32.mxu0 0.0
        %3239 = vmatmul.mubr.f32.gmra.mxu0 %v3151
        %v3240 = vpop.f32.mrf.mxu0
        %v3241 = vadd.f32 0.0, %v3240
        %v3242 = vpop.f32.mrf.mxu0
        %3243 = vmatprep.mubr.f32.mxu0 0.0
        %3244 = vmatmul.mubr.f32.gmra.mxu0 %v3154
        %v3245 = vpop.f32.mrf.mxu0
        %v3246 = vadd.f32 0.0, %v3245
        %v3247 = vpop.f32.mrf.mxu0
        %3248 = vmatprep.mubr.f32.mxu0 0.0
        %3249 = vmatmul.mubr.f32.gmra.mxu0 %v3157
        %v3250 = vpop.f32.mrf.mxu0
        %v3251 = vadd.f32 0.0, %v3250
        %v3252 = vpop.f32.mrf.mxu0
        %3253 = vmatprep.mubr.f32.mxu0 0.0
        %3254 = vmatmul.mubr.f32.gmra.mxu0 %v3160
        %v3255 = vpop.f32.mrf.mxu0
        %v3256 = vadd.f32 0.0, %v3255
        %v3257 = vpop.f32.mrf.mxu0
        %3258 = vmatprep.mubr.f32.mxu0 0.0
        %3259 = vmatmul.mubr.f32.gmra.mxu0 %v3163
        %v3260 = vpop.f32.mrf.mxu0
        %v3261 = vadd.f32 0.0, %v3260
        %v3262 = vpop.f32.mrf.mxu0
        %3263 = vmatprep.mubr.f32.mxu0 0.0
        %3264 = vmatmul.mubr.f32.gmra.mxu0 %v3166
        %v3265 = vpop.f32.mrf.mxu0
        %v3266 = vadd.f32 0.0, %v3265
        %v3267 = vpop.f32.mrf.mxu0
        %3268 = vmatprep.mubr.f32.mxu0 0.0
        %3269 = vmatmul.mubr.f32.gmra.mxu0 %v3169
        %v3270 = vpop.f32.mrf.mxu0
        %v3271 = vadd.f32 0.0, %v3270
        %v3272 = vpop.f32.mrf.mxu0
        %3273 = vmatprep.mubr.f32.mxu0 0.0
        %3274 = vmatmul.mubr.f32.gmra.mxu0 %v3172
        %v3275 = vpop.f32.mrf.mxu0
        %v3276 = vadd.f32 0.0, %v3275
        %v3277 = vpop.f32.mrf.mxu0
        %3278 = vdwg.mxu0
        %v3280 = vsel %vm1343, %v1327, 0
        %v3283 = vsel %vm1343, %v1328, 0
        %v3286 = vsel %vm1343, %v1329, 0
        %v3289 = vsel %vm1343, %v1330, 0
        %v3292 = vsel %vm1343, %v1331, 0
        %v3295 = vsel %vm1343, %v1332, 0
        %v3298 = vsel %vm1343, %v1333, 0
        %v3301 = vsel %vm1343, %v1334, 0
        %3303 = vmatprep.subr.mxu0 0.0
        %3304 = vmatpush1.msra.mxu0 0.0
        %3305 = vmatprep.subr.mxu0 0.0
        %3306 = vmatpush1.msra.mxu0 0.0
        %3307 = vmatprep.subr.mxu0 0.0
        %3308 = vmatpush1.msra.mxu0 0.0
        %3309 = vmatprep.subr.mxu0 0.0
        %3310 = vmatpush1.msra.mxu0 0.0
        %3311 = vmatprep.subr.mxu0 0.0
        %3312 = vmatpush1.msra.mxu0 0.0
        %3313 = vmatprep.subr.mxu0 0.0
        %3314 = vmatpush1.msra.mxu0 0.0
        %3315 = vmatprep.subr.mxu0 0.0
        %3316 = vmatpush1.msra.mxu0 0.0
        %3317 = vmatprep.subr.mxu0 0.0
        %3318 = vmatpush1.msra.mxu0 0.0
        %3319 = vmatprep.subr.mxu0 0.0
        %3320 = vmatpush1.msra.mxu0 0.0
        %3321 = vmatprep.subr.mxu0 0.0
        %3322 = vmatpush1.msra.mxu0 0.0
        %3323 = vmatprep.subr.mxu0 0.0
        %3324 = vmatpush1.msra.mxu0 0.0
        %3325 = vmatprep.subr.mxu0 0.0
        %3326 = vmatpush1.msra.mxu0 0.0
        %3327 = vmatprep.subr.mxu0 0.0
        %3328 = vmatpush1.msra.mxu0 0.0
        %3329 = vmatprep.subr.mxu0 0.0
        %3330 = vmatpush1.msra.mxu0 0.0
        %3331 = vmatprep.subr.mxu0 0.0
        %3332 = vmatpush1.msra.mxu0 0.0
        %3333 = vmatprep.subr.mxu0 0.0
        %3334 = vmatpush1.msra.mxu0 %v822
        %3335 = vmatprep.subr.mxu0 0.0
        %3336 = vmatpush2.msra.mxu0 0.0
        %3337 = vmatprep.subr.mxu0 0.0
        %3338 = vmatpush2.msra.mxu0 0.0
        %3339 = vmatprep.subr.mxu0 0.0
        %3340 = vmatpush2.msra.mxu0 0.0
        %3341 = vmatprep.subr.mxu0 0.0
        %3342 = vmatpush2.msra.mxu0 0.0
        %3343 = vmatprep.subr.mxu0 0.0
        %3344 = vmatpush2.msra.mxu0 0.0
        %3345 = vmatprep.subr.mxu0 0.0
        %3346 = vmatpush2.msra.mxu0 0.0
        %3347 = vmatprep.subr.mxu0 0.0
        %3348 = vmatpush2.msra.mxu0 0.0
        %3349 = vmatprep.subr.mxu0 0.0
        %3350 = vmatpush2.msra.mxu0 0.0
        %3351 = vmatprep.subr.mxu0 0.0
        %3352 = vmatpush2.msra.mxu0 0.0
        %3353 = vmatprep.subr.mxu0 0.0
        %3354 = vmatpush2.msra.mxu0 0.0
        %3355 = vmatprep.subr.mxu0 0.0
        %3356 = vmatpush2.msra.mxu0 0.0
        %3357 = vmatprep.subr.mxu0 0.0
        %3358 = vmatpush2.msra.mxu0 0.0
        %3359 = vmatprep.subr.mxu0 0.0
        %3360 = vmatpush2.msra.mxu0 0.0
        %3361 = vmatprep.subr.mxu0 0.0
        %3362 = vmatpush2.msra.mxu0 0.0
        %3363 = vmatprep.subr.mxu0 0.0
        %3364 = vmatpush2.msra.mxu0 0.0
        %3365 = vmatprep.subr.mxu0 0.0
        %3366 = vmatpush2.msra.mxu0 0.0
        %3367 = vmatprep.mubr.f32.mxu0 0.0
        %3368 = vmatmul.mubr.f32.gmra.mxu0 %v3280
        %v3369 = vpop.f32.mrf.mxu0
        %v3370 = vadd.f32 0.0, %v3369
        %v3371 = vpop.f32.mrf.mxu0
        %3372 = vmatprep.mubr.f32.mxu0 0.0
        %3373 = vmatmul.mubr.f32.gmra.mxu0 %v3283
        %v3374 = vpop.f32.mrf.mxu0
        %v3375 = vadd.f32 0.0, %v3374
        %v3376 = vpop.f32.mrf.mxu0
        %3377 = vmatprep.mubr.f32.mxu0 0.0
        %3378 = vmatmul.mubr.f32.gmra.mxu0 %v3286
        %v3379 = vpop.f32.mrf.mxu0
        %v3380 = vadd.f32 0.0, %v3379
        %v3381 = vpop.f32.mrf.mxu0
        %3382 = vmatprep.mubr.f32.mxu0 0.0
        %3383 = vmatmul.mubr.f32.gmra.mxu0 %v3289
        %v3384 = vpop.f32.mrf.mxu0
        %v3385 = vadd.f32 0.0, %v3384
        %v3386 = vpop.f32.mrf.mxu0
        %3387 = vmatprep.mubr.f32.mxu0 0.0
        %3388 = vmatmul.mubr.f32.gmra.mxu0 %v3292
        %v3389 = vpop.f32.mrf.mxu0
        %v3390 = vadd.f32 0.0, %v3389
        %v3391 = vpop.f32.mrf.mxu0
        %3392 = vmatprep.mubr.f32.mxu0 0.0
        %3393 = vmatmul.mubr.f32.gmra.mxu0 %v3295
        %v3394 = vpop.f32.mrf.mxu0
        %v3395 = vadd.f32 0.0, %v3394
        %v3396 = vpop.f32.mrf.mxu0
        %3397 = vmatprep.mubr.f32.mxu0 0.0
        %3398 = vmatmul.mubr.f32.gmra.mxu0 %v3298
        %v3399 = vpop.f32.mrf.mxu0
        %v3400 = vadd.f32 0.0, %v3399
        %v3401 = vpop.f32.mrf.mxu0
        %3402 = vmatprep.mubr.f32.mxu0 0.0
        %3403 = vmatmul.mubr.f32.gmra.mxu0 %v3301
        %v3404 = vpop.f32.mrf.mxu0
        %v3405 = vadd.f32 0.0, %v3404
        %v3406 = vpop.f32.mrf.mxu0
        %3407 = vdwg.mxu0
        %v3408 = vmul.f32 %v1435, 0.35355338
        %v3409 = vmul.f32 %v1440, 0.35355338
        %v3410 = vmul.f32 %v1445, 0.35355338
        %v3411 = vmul.f32 %v1450, 0.35355338
        %v3412 = vmul.f32 %v1455, 0.35355338
        %v3413 = vmul.f32 %v1460, 0.35355338
        %v3414 = vmul.f32 %v1465, 0.35355338
        %v3415 = vmul.f32 %v1470, 0.35355338
        %v3416 = vmul.f32 %v1564, 0.35355338
        %v3417 = vmul.f32 %v1569, 0.35355338
        %v3418 = vmul.f32 %v1574, 0.35355338
        %v3419 = vmul.f32 %v1579, 0.35355338
        %v3420 = vmul.f32 %v1584, 0.35355338
        %v3421 = vmul.f32 %v1589, 0.35355338
        %v3422 = vmul.f32 %v1594, 0.35355338
        %v3423 = vmul.f32 %v1599, 0.35355338
        %v3424 = vmul.f32 %v1693, 0.35355338
        %v3425 = vmul.f32 %v1698, 0.35355338
        %v3426 = vmul.f32 %v1703, 0.35355338
        %v3427 = vmul.f32 %v1708, 0.35355338
        %v3428 = vmul.f32 %v1713, 0.35355338
        %v3429 = vmul.f32 %v1718, 0.35355338
        %v3430 = vmul.f32 %v1723, 0.35355338
        %v3431 = vmul.f32 %v1728, 0.35355338
        %v3432 = vmul.f32 %v1822, 0.35355338
        %v3433 = vmul.f32 %v1827, 0.35355338
        %v3434 = vmul.f32 %v1832, 0.35355338
        %v3435 = vmul.f32 %v1837, 0.35355338
        %v3436 = vmul.f32 %v1842, 0.35355338
        %v3437 = vmul.f32 %v1847, 0.35355338
        %v3438 = vmul.f32 %v1852, 0.35355338
        %v3439 = vmul.f32 %v1857, 0.35355338
        %v3440 = vmul.f32 %v1951, 0.35355338
        %v3441 = vmul.f32 %v1956, 0.35355338
        %v3442 = vmul.f32 %v1961, 0.35355338
        %v3443 = vmul.f32 %v1966, 0.35355338
        %v3444 = vmul.f32 %v1971, 0.35355338
        %v3445 = vmul.f32 %v1976, 0.35355338
        %v3446 = vmul.f32 %v1981, 0.35355338
        %v3447 = vmul.f32 %v1986, 0.35355338
        %v3448 = vmul.f32 %v2080, 0.35355338
        %v3449 = vmul.f32 %v2085, 0.35355338
        %v3450 = vmul.f32 %v2090, 0.35355338
        %v3451 = vmul.f32 %v2095, 0.35355338
        %v3452 = vmul.f32 %v2100, 0.35355338
        %v3453 = vmul.f32 %v2105, 0.35355338
        %v3454 = vmul.f32 %v2110, 0.35355338
        %v3455 = vmul.f32 %v2115, 0.35355338
        %v3456 = vmul.f32 %v2209, 0.35355338
        %v3457 = vmul.f32 %v2214, 0.35355338
        %v3458 = vmul.f32 %v2219, 0.35355338
        %v3459 = vmul.f32 %v2224, 0.35355338
        %v3460 = vmul.f32 %v2229, 0.35355338
        %v3461 = vmul.f32 %v2234, 0.35355338
        %v3462 = vmul.f32 %v2239, 0.35355338
        %v3463 = vmul.f32 %v2244, 0.35355338
        %v3464 = vmul.f32 %v2338, 0.35355338
        %v3465 = vmul.f32 %v2343, 0.35355338
        %v3466 = vmul.f32 %v2348, 0.35355338
        %v3467 = vmul.f32 %v2353, 0.35355338
        %v3468 = vmul.f32 %v2358, 0.35355338
        %v3469 = vmul.f32 %v2363, 0.35355338
        %v3470 = vmul.f32 %v2368, 0.35355338
        %v3471 = vmul.f32 %v2373, 0.35355338
        %v3472 = vmul.f32 %v2467, 0.35355338
        %v3473 = vmul.f32 %v2472, 0.35355338
        %v3474 = vmul.f32 %v2477, 0.35355338
        %v3475 = vmul.f32 %v2482, 0.35355338
        %v3476 = vmul.f32 %v2487, 0.35355338
        %v3477 = vmul.f32 %v2492, 0.35355338
        %v3478 = vmul.f32 %v2497, 0.35355338
        %v3479 = vmul.f32 %v2502, 0.35355338
        %v3480 = vmul.f32 %v2596, 0.35355338
        %v3481 = vmul.f32 %v2601, 0.35355338
        %v3482 = vmul.f32 %v2606, 0.35355338
        %v3483 = vmul.f32 %v2611, 0.35355338
        %v3484 = vmul.f32 %v2616, 0.35355338
        %v3485 = vmul.f32 %v2621, 0.35355338
        %v3486 = vmul.f32 %v2626, 0.35355338
        %v3487 = vmul.f32 %v2631, 0.35355338
        %v3488 = vmul.f32 %v2725, 0.35355338
        %v3489 = vmul.f32 %v2730, 0.35355338
        %v3490 = vmul.f32 %v2735, 0.35355338
        %v3491 = vmul.f32 %v2740, 0.35355338
        %v3492 = vmul.f32 %v2745, 0.35355338
        %v3493 = vmul.f32 %v2750, 0.35355338
        %v3494 = vmul.f32 %v2755, 0.35355338
        %v3495 = vmul.f32 %v2760, 0.35355338
        %v3496 = vmul.f32 %v2854, 0.35355338
        %v3497 = vmul.f32 %v2859, 0.35355338
        %v3498 = vmul.f32 %v2864, 0.35355338
        %v3499 = vmul.f32 %v2869, 0.35355338
        %v3500 = vmul.f32 %v2874, 0.35355338
        %v3501 = vmul.f32 %v2879, 0.35355338
        %v3502 = vmul.f32 %v2884, 0.35355338
        %v3503 = vmul.f32 %v2889, 0.35355338
        %v3504 = vmul.f32 %v2983, 0.35355338
        %v3505 = vmul.f32 %v2988, 0.35355338
        %v3506 = vmul.f32 %v2993, 0.35355338
        %v3507 = vmul.f32 %v2998, 0.35355338
        %v3508 = vmul.f32 %v3003, 0.35355338
        %v3509 = vmul.f32 %v3008, 0.35355338
        %v3510 = vmul.f32 %v3013, 0.35355338
        %v3511 = vmul.f32 %v3018, 0.35355338
        %v3512 = vmul.f32 %v3112, 0.35355338
        %v3513 = vmul.f32 %v3117, 0.35355338
        %v3514 = vmul.f32 %v3122, 0.35355338
        %v3515 = vmul.f32 %v3127, 0.35355338
        %v3516 = vmul.f32 %v3132, 0.35355338
        %v3517 = vmul.f32 %v3137, 0.35355338
        %v3518 = vmul.f32 %v3142, 0.35355338
        %v3519 = vmul.f32 %v3147, 0.35355338
        %v3520 = vmul.f32 %v3241, 0.35355338
        %v3521 = vmul.f32 %v3246, 0.35355338
        %v3522 = vmul.f32 %v3251, 0.35355338
        %v3523 = vmul.f32 %v3256, 0.35355338
        %v3524 = vmul.f32 %v3261, 0.35355338
        %v3525 = vmul.f32 %v3266, 0.35355338
        %v3526 = vmul.f32 %v3271, 0.35355338
        %v3527 = vmul.f32 %v3276, 0.35355338
        %v3528 = vmul.f32 %v3370, 0.35355338
        %v3529 = vmul.f32 %v3375, 0.35355338
        %v3530 = vmul.f32 %v3380, 0.35355338
        %v3531 = vmul.f32 %v3385, 0.35355338
        %v3532 = vmul.f32 %v3390, 0.35355338
        %v3533 = vmul.f32 %v3395, 0.35355338
        %v3534 = vmul.f32 %v3400, 0.35355338
        %v3535 = vmul.f32 %v3405, 0.35355338
        %v3536 = vld [vmem:[#allocation7] sm:$0xff]
        %v3537 = vld [vmem:[#allocation7 + $0x8] sm:$0xff]
        %v3538 = vld [vmem:[#allocation7 + $0x10] sm:$0xff]
        %v3539 = vld [vmem:[#allocation7 + $0x18] sm:$0xff]
        %v3540 = vld [vmem:[#allocation7 + $0x20] sm:$0xff]
        %v3541 = vld [vmem:[#allocation7 + $0x28] sm:$0xff]
        %v3542 = vld [vmem:[#allocation7 + $0x30] sm:$0xff]
        %v3543 = vld [vmem:[#allocation7 + $0x38] sm:$0xff]
        %v3544 = vld [vmem:[#allocation7 + $0x40] sm:$0xff]
        %v3545 = vld [vmem:[#allocation7 + $0x48] sm:$0xff]
        %v3546 = vld [vmem:[#allocation7 + $0x50] sm:$0xff]
        %v3547 = vld [vmem:[#allocation7 + $0x58] sm:$0xff]
        %v3548 = vld [vmem:[#allocation7 + $0x60] sm:$0xff]
        %v3549 = vld [vmem:[#allocation7 + $0x68] sm:$0xff]
        %v3550 = vld [vmem:[#allocation7 + $0x70] sm:$0xff]
        %v3551 = vld [vmem:[#allocation7 + $0x78] sm:$0xff]
        %v3552 = vld [vmem:[#allocation7 + $0x80] sm:$0xff]
        %v3553 = vld [vmem:[#allocation7 + $0x88] sm:$0xff]
        %v3554 = vld [vmem:[#allocation7 + $0x90] sm:$0xff]
        %v3555 = vld [vmem:[#allocation7 + $0x98] sm:$0xff]
        %v3556 = vld [vmem:[#allocation7 + $0xa0] sm:$0xff]
        %v3557 = vld [vmem:[#allocation7 + $0xa8] sm:$0xff]
        %v3558 = vld [vmem:[#allocation7 + $0xb0] sm:$0xff]
        %v3559 = vld [vmem:[#allocation7 + $0xb8] sm:$0xff]
        %v3560 = vld [vmem:[#allocation7 + $0xc0] sm:$0xff]
        %v3561 = vld [vmem:[#allocation7 + $0xc8] sm:$0xff]
        %v3562 = vld [vmem:[#allocation7 + $0xd0] sm:$0xff]
        %v3563 = vld [vmem:[#allocation7 + $0xd8] sm:$0xff]
        %v3564 = vld [vmem:[#allocation7 + $0xe0] sm:$0xff]
        %v3565 = vld [vmem:[#allocation7 + $0xe8] sm:$0xff]
        %v3566 = vld [vmem:[#allocation7 + $0xf0] sm:$0xff]
        %v3567 = vld [vmem:[#allocation7 + $0xf8] sm:$0xff]
        %v3568 = vadd.f32 %v3408, %v3536
        %v3569 = vadd.f32 %v3409, %v3537
        %v3570 = vadd.f32 %v3410, %v3538
        %v3571 = vadd.f32 %v3411, %v3539
        %v3572 = vadd.f32 %v3412, %v3540
        %v3573 = vadd.f32 %v3413, %v3541
        %v3574 = vadd.f32 %v3414, %v3542
        %v3575 = vadd.f32 %v3415, %v3543
        %v3576 = vadd.f32 %v3416, %v3544
        %v3577 = vadd.f32 %v3417, %v3545
        %v3578 = vadd.f32 %v3418, %v3546
        %v3579 = vadd.f32 %v3419, %v3547
        %v3580 = vadd.f32 %v3420, %v3548
        %v3581 = vadd.f32 %v3421, %v3549
        %v3582 = vadd.f32 %v3422, %v3550
        %v3583 = vadd.f32 %v3423, %v3551
        %v3584 = vadd.f32 %v3424, %v3552
        %v3585 = vadd.f32 %v3425, %v3553
        %v3586 = vadd.f32 %v3426, %v3554
        %v3587 = vadd.f32 %v3427, %v3555
        %v3588 = vadd.f32 %v3428, %v3556
        %v3589 = vadd.f32 %v3429, %v3557
        %v3590 = vadd.f32 %v3430, %v3558
        %v3591 = vadd.f32 %v3431, %v3559
        %v3592 = vadd.f32 %v3432, %v3560
        %v3593 = vadd.f32 %v3433, %v3561
        %v3594 = vadd.f32 %v3434, %v3562
        %v3595 = vadd.f32 %v3435, %v3563
        %v3596 = vadd.f32 %v3436, %v3564
        %v3597 = vadd.f32 %v3437, %v3565
        %v3598 = vadd.f32 %v3438, %v3566
        %v3599 = vadd.f32 %v3439, %v3567
        %v3600 = vadd.f32 %v3440, %v3536
        %v3601 = vadd.f32 %v3441, %v3537
        %v3602 = vadd.f32 %v3442, %v3538
        %v3603 = vadd.f32 %v3443, %v3539
        %v3604 = vadd.f32 %v3444, %v3540
        %v3605 = vadd.f32 %v3445, %v3541
        %v3606 = vadd.f32 %v3446, %v3542
        %v3607 = vadd.f32 %v3447, %v3543
        %v3608 = vadd.f32 %v3448, %v3544
        %v3609 = vadd.f32 %v3449, %v3545
        %v3610 = vadd.f32 %v3450, %v3546
        %v3611 = vadd.f32 %v3451, %v3547
        %v3612 = vadd.f32 %v3452, %v3548
        %v3613 = vadd.f32 %v3453, %v3549
        %v3614 = vadd.f32 %v3454, %v3550
        %v3615 = vadd.f32 %v3455, %v3551
        %v3616 = vadd.f32 %v3456, %v3552
        %v3617 = vadd.f32 %v3457, %v3553
        %v3618 = vadd.f32 %v3458, %v3554
        %v3619 = vadd.f32 %v3459, %v3555
        %v3620 = vadd.f32 %v3460, %v3556
        %v3621 = vadd.f32 %v3461, %v3557
        %v3622 = vadd.f32 %v3462, %v3558
        %v3623 = vadd.f32 %v3463, %v3559
        %v3624 = vadd.f32 %v3464, %v3560
        %v3625 = vadd.f32 %v3465, %v3561
        %v3626 = vadd.f32 %v3466, %v3562
        %v3627 = vadd.f32 %v3467, %v3563
        %v3628 = vadd.f32 %v3468, %v3564
        %v3629 = vadd.f32 %v3469, %v3565
        %v3630 = vadd.f32 %v3470, %v3566
        %v3631 = vadd.f32 %v3471, %v3567
        %v3632 = vadd.f32 %v3472, %v3536
        %v3633 = vadd.f32 %v3473, %v3537
        %v3634 = vadd.f32 %v3474, %v3538
        %v3635 = vadd.f32 %v3475, %v3539
        %v3636 = vadd.f32 %v3476, %v3540
        %v3637 = vadd.f32 %v3477, %v3541
        %v3638 = vadd.f32 %v3478, %v3542
        %v3639 = vadd.f32 %v3479, %v3543
        %v3640 = vadd.f32 %v3480, %v3544
        %v3641 = vadd.f32 %v3481, %v3545
        %v3642 = vadd.f32 %v3482, %v3546
        %v3643 = vadd.f32 %v3483, %v3547
        %v3644 = vadd.f32 %v3484, %v3548
        %v3645 = vadd.f32 %v3485, %v3549
        %v3646 = vadd.f32 %v3486, %v3550
        %v3647 = vadd.f32 %v3487, %v3551
        %v3648 = vadd.f32 %v3488, %v3552
        %v3649 = vadd.f32 %v3489, %v3553
        %v3650 = vadd.f32 %v3490, %v3554
        %v3651 = vadd.f32 %v3491, %v3555
        %v3652 = vadd.f32 %v3492, %v3556
        %v3653 = vadd.f32 %v3493, %v3557
        %v3654 = vadd.f32 %v3494, %v3558
        %v3655 = vadd.f32 %v3495, %v3559
        %v3656 = vadd.f32 %v3496, %v3560
        %v3657 = vadd.f32 %v3497, %v3561
        %v3658 = vadd.f32 %v3498, %v3562
        %v3659 = vadd.f32 %v3499, %v3563
        %v3660 = vadd.f32 %v3500, %v3564
        %v3661 = vadd.f32 %v3501, %v3565
        %v3662 = vadd.f32 %v3502, %v3566
        %v3663 = vadd.f32 %v3503, %v3567
        %v3664 = vadd.f32 %v3504, %v3536
        %v3665 = vadd.f32 %v3505, %v3537
        %v3666 = vadd.f32 %v3506, %v3538
        %v3667 = vadd.f32 %v3507, %v3539
        %v3668 = vadd.f32 %v3508, %v3540
        %v3669 = vadd.f32 %v3509, %v3541
        %v3670 = vadd.f32 %v3510, %v3542
        %v3671 = vadd.f32 %v3511, %v3543
        %v3672 = vadd.f32 %v3512, %v3544
        %v3673 = vadd.f32 %v3513, %v3545
        %v3674 = vadd.f32 %v3514, %v3546
        %v3675 = vadd.f32 %v3515, %v3547
        %v3676 = vadd.f32 %v3516, %v3548
        %v3677 = vadd.f32 %v3517, %v3549
        %v3678 = vadd.f32 %v3518, %v3550
        %v3679 = vadd.f32 %v3519, %v3551
        %v3680 = vadd.f32 %v3520, %v3552
        %v3681 = vadd.f32 %v3521, %v3553
        %v3682 = vadd.f32 %v3522, %v3554
        %v3683 = vadd.f32 %v3523, %v3555
        %v3684 = vadd.f32 %v3524, %v3556
        %v3685 = vadd.f32 %v3525, %v3557
        %v3686 = vadd.f32 %v3526, %v3558
        %v3687 = vadd.f32 %v3527, %v3559
        %v3688 = vadd.f32 %v3528, %v3560
        %v3689 = vadd.f32 %v3529, %v3561
        %v3690 = vadd.f32 %v3530, %v3562
        %v3691 = vadd.f32 %v3531, %v3563
        %v3692 = vadd.f32 %v3532, %v3564
        %v3693 = vadd.f32 %v3533, %v3565
        %v3694 = vadd.f32 %v3534, %v3566
        %v3695 = vadd.f32 %v3535, %v3567
        %vm3696 = vcmask 523264
        %v3697 = vsel %vm3696, %v3568, 0.0
        %v3698 = vsel %vm3696, %v3576, 0.0
        %v3699 = vadd.f32 %v3697, %v3698
        %v3700 = vsel %vm3696, %v3584, 0.0
        %v3701 = vadd.f32 %v3699, %v3700
        %v3702 = vsel %vm3696, %v3592, 0.0
        %v3703 = vadd.f32 %v3701, %v3702
        %v3704 = vsel %vm3696, %v3569, 0.0
        %v3705 = vsel %vm3696, %v3577, 0.0
        %v3706 = vadd.f32 %v3704, %v3705
        %v3707 = vsel %vm3696, %v3585, 0.0
        %v3708 = vadd.f32 %v3706, %v3707
        %v3709 = vsel %vm3696, %v3593, 0.0
        %v3710 = vadd.f32 %v3708, %v3709
        %v3711 = vsel %vm3696, %v3570, 0.0
        %v3712 = vsel %vm3696, %v3578, 0.0
        %v3713 = vadd.f32 %v3711, %v3712
        %v3714 = vsel %vm3696, %v3586, 0.0
        %v3715 = vadd.f32 %v3713, %v3714
        %v3716 = vsel %vm3696, %v3594, 0.0
        %v3717 = vadd.f32 %v3715, %v3716
        %v3718 = vsel %vm3696, %v3571, 0.0
        %v3719 = vsel %vm3696, %v3579, 0.0
        %v3720 = vadd.f32 %v3718, %v3719
        %v3721 = vsel %vm3696, %v3587, 0.0
        %v3722 = vadd.f32 %v3720, %v3721
        %v3723 = vsel %vm3696, %v3595, 0.0
        %v3724 = vadd.f32 %v3722, %v3723
        %v3725 = vsel %vm3696, %v3572, 0.0
        %v3726 = vsel %vm3696, %v3580, 0.0
        %v3727 = vadd.f32 %v3725, %v3726
        %v3728 = vsel %vm3696, %v3588, 0.0
        %v3729 = vadd.f32 %v3727, %v3728
        %v3730 = vsel %vm3696, %v3596, 0.0
        %v3731 = vadd.f32 %v3729, %v3730
        %v3732 = vsel %vm3696, %v3573, 0.0
        %v3733 = vsel %vm3696, %v3581, 0.0
        %v3734 = vadd.f32 %v3732, %v3733
        %v3735 = vsel %vm3696, %v3589, 0.0
        %v3736 = vadd.f32 %v3734, %v3735
        %v3737 = vsel %vm3696, %v3597, 0.0
        %v3738 = vadd.f32 %v3736, %v3737
        %v3739 = vsel %vm3696, %v3574, 0.0
        %v3740 = vsel %vm3696, %v3582, 0.0
        %v3741 = vadd.f32 %v3739, %v3740
        %v3742 = vsel %vm3696, %v3590, 0.0
        %v3743 = vadd.f32 %v3741, %v3742
        %v3744 = vsel %vm3696, %v3598, 0.0
        %v3745 = vadd.f32 %v3743, %v3744
        %v3746 = vsel %vm3696, %v3575, 0.0
        %v3747 = vsel %vm3696, %v3583, 0.0
        %v3748 = vadd.f32 %v3746, %v3747
        %v3749 = vsel %vm3696, %v3591, 0.0
        %v3750 = vadd.f32 %v3748, %v3749
        %v3751 = vsel %vm3696, %v3599, 0.0
        %v3752 = vadd.f32 %v3750, %v3751
        %v3753 = vsel %vm3696, %v3600, 0.0
        %v3754 = vsel %vm3696, %v3608, 0.0
        %v3755 = vadd.f32 %v3753, %v3754
        %v3756 = vsel %vm3696, %v3616, 0.0
        %v3757 = vadd.f32 %v3755, %v3756
        %v3758 = vsel %vm3696, %v3624, 0.0
        %v3759 = vadd.f32 %v3757, %v3758
        %v3760 = vsel %vm3696, %v3601, 0.0
        %v3761 = vsel %vm3696, %v3609, 0.0
        %v3762 = vadd.f32 %v3760, %v3761
        %v3763 = vsel %vm3696, %v3617, 0.0
        %v3764 = vadd.f32 %v3762, %v3763
        %v3765 = vsel %vm3696, %v3625, 0.0
        %v3766 = vadd.f32 %v3764, %v3765
        %v3767 = vsel %vm3696, %v3602, 0.0
        %v3768 = vsel %vm3696, %v3610, 0.0
        %v3769 = vadd.f32 %v3767, %v3768
        %v3770 = vsel %vm3696, %v3618, 0.0
        %v3771 = vadd.f32 %v3769, %v3770
        %v3772 = vsel %vm3696, %v3626, 0.0
        %v3773 = vadd.f32 %v3771, %v3772
        %v3774 = vsel %vm3696, %v3603, 0.0
        %v3775 = vsel %vm3696, %v3611, 0.0
        %v3776 = vadd.f32 %v3774, %v3775
        %v3777 = vsel %vm3696, %v3619, 0.0
        %v3778 = vadd.f32 %v3776, %v3777
        %v3779 = vsel %vm3696, %v3627, 0.0
        %v3780 = vadd.f32 %v3778, %v3779
        %v3781 = vsel %vm3696, %v3604, 0.0
        %v3782 = vsel %vm3696, %v3612, 0.0
        %v3783 = vadd.f32 %v3781, %v3782
        %v3784 = vsel %vm3696, %v3620, 0.0
        %v3785 = vadd.f32 %v3783, %v3784
        %v3786 = vsel %vm3696, %v3628, 0.0
        %v3787 = vadd.f32 %v3785, %v3786
        %v3788 = vsel %vm3696, %v3605, 0.0
        %v3789 = vsel %vm3696, %v3613, 0.0
        %v3790 = vadd.f32 %v3788, %v3789
        %v3791 = vsel %vm3696, %v3621, 0.0
        %v3792 = vadd.f32 %v3790, %v3791
        %v3793 = vsel %vm3696, %v3629, 0.0
        %v3794 = vadd.f32 %v3792, %v3793
        %v3795 = vsel %vm3696, %v3606, 0.0
        %v3796 = vsel %vm3696, %v3614, 0.0
        %v3797 = vadd.f32 %v3795, %v3796
        %v3798 = vsel %vm3696, %v3622, 0.0
        %v3799 = vadd.f32 %v3797, %v3798
        %v3800 = vsel %vm3696, %v3630, 0.0
        %v3801 = vadd.f32 %v3799, %v3800
        %v3802 = vsel %vm3696, %v3607, 0.0
        %v3803 = vsel %vm3696, %v3615, 0.0
        %v3804 = vadd.f32 %v3802, %v3803
        %v3805 = vsel %vm3696, %v3623, 0.0
        %v3806 = vadd.f32 %v3804, %v3805
        %v3807 = vsel %vm3696, %v3631, 0.0
        %v3808 = vadd.f32 %v3806, %v3807
        %v3809 = vsel %vm3696, %v3632, 0.0
        %v3810 = vsel %vm3696, %v3640, 0.0
        %v3811 = vadd.f32 %v3809, %v3810
        %v3812 = vsel %vm3696, %v3648, 0.0
        %v3813 = vadd.f32 %v3811, %v3812
        %v3814 = vsel %vm3696, %v3656, 0.0
        %v3815 = vadd.f32 %v3813, %v3814
        %v3816 = vsel %vm3696, %v3633, 0.0
        %v3817 = vsel %vm3696, %v3641, 0.0
        %v3818 = vadd.f32 %v3816, %v3817
        %v3819 = vsel %vm3696, %v3649, 0.0
        %v3820 = vadd.f32 %v3818, %v3819
        %v3821 = vsel %vm3696, %v3657, 0.0
        %v3822 = vadd.f32 %v3820, %v3821
        %v3823 = vsel %vm3696, %v3634, 0.0
        %v3824 = vsel %vm3696, %v3642, 0.0
        %v3825 = vadd.f32 %v3823, %v3824
        %v3826 = vsel %vm3696, %v3650, 0.0
        %v3827 = vadd.f32 %v3825, %v3826
        %v3828 = vsel %vm3696, %v3658, 0.0
        %v3829 = vadd.f32 %v3827, %v3828
        %v3830 = vsel %vm3696, %v3635, 0.0
        %v3831 = vsel %vm3696, %v3643, 0.0
        %v3832 = vadd.f32 %v3830, %v3831
        %v3833 = vsel %vm3696, %v3651, 0.0
        %v3834 = vadd.f32 %v3832, %v3833
        %v3835 = vsel %vm3696, %v3659, 0.0
        %v3836 = vadd.f32 %v3834, %v3835
        %v3837 = vsel %vm3696, %v3636, 0.0
        %v3838 = vsel %vm3696, %v3644, 0.0
        %v3839 = vadd.f32 %v3837, %v3838
        %v3840 = vsel %vm3696, %v3652, 0.0
        %v3841 = vadd.f32 %v3839, %v3840
        %v3842 = vsel %vm3696, %v3660, 0.0
        %v3843 = vadd.f32 %v3841, %v3842
        %v3844 = vsel %vm3696, %v3637, 0.0
        %v3845 = vsel %vm3696, %v3645, 0.0
        %v3846 = vadd.f32 %v3844, %v3845
        %v3847 = vsel %vm3696, %v3653, 0.0
        %v3848 = vadd.f32 %v3846, %v3847
        %v3849 = vsel %vm3696, %v3661, 0.0
        %v3850 = vadd.f32 %v3848, %v3849
        %v3851 = vsel %vm3696, %v3638, 0.0
        %v3852 = vsel %vm3696, %v3646, 0.0
        %v3853 = vadd.f32 %v3851, %v3852
        %v3854 = vsel %vm3696, %v3654, 0.0
        %v3855 = vadd.f32 %v3853, %v3854
        %v3856 = vsel %vm3696, %v3662, 0.0
        %v3857 = vadd.f32 %v3855, %v3856
        %v3858 = vsel %vm3696, %v3639, 0.0
        %v3859 = vsel %vm3696, %v3647, 0.0
        %v3860 = vadd.f32 %v3858, %v3859
        %v3861 = vsel %vm3696, %v3655, 0.0
        %v3862 = vadd.f32 %v3860, %v3861
        %v3863 = vsel %vm3696, %v3663, 0.0
        %v3864 = vadd.f32 %v3862, %v3863
        %v3865 = vsel %vm3696, %v3664, 0.0
        %v3866 = vsel %vm3696, %v3672, 0.0
        %v3867 = vadd.f32 %v3865, %v3866
        %v3868 = vsel %vm3696, %v3680, 0.0
        %v3869 = vadd.f32 %v3867, %v3868
        %v3870 = vsel %vm3696, %v3688, 0.0
        %v3871 = vadd.f32 %v3869, %v3870
        %v3872 = vsel %vm3696, %v3665, 0.0
        %v3873 = vsel %vm3696, %v3673, 0.0
        %v3874 = vadd.f32 %v3872, %v3873
        %v3875 = vsel %vm3696, %v3681, 0.0
        %v3876 = vadd.f32 %v3874, %v3875
        %v3877 = vsel %vm3696, %v3689, 0.0
        %v3878 = vadd.f32 %v3876, %v3877
        %v3879 = vsel %vm3696, %v3666, 0.0
        %v3880 = vsel %vm3696, %v3674, 0.0
        %v3881 = vadd.f32 %v3879, %v3880
        %v3882 = vsel %vm3696, %v3682, 0.0
        %v3883 = vadd.f32 %v3881, %v3882
        %v3884 = vsel %vm3696, %v3690, 0.0
        %v3885 = vadd.f32 %v3883, %v3884
        %v3886 = vsel %vm3696, %v3667, 0.0
        %v3887 = vsel %vm3696, %v3675, 0.0
        %v3888 = vadd.f32 %v3886, %v3887
        %v3889 = vsel %vm3696, %v3683, 0.0
        %v3890 = vadd.f32 %v3888, %v3889
        %v3891 = vsel %vm3696, %v3691, 0.0
        %v3892 = vadd.f32 %v3890, %v3891
        %v3893 = vsel %vm3696, %v3668, 0.0
        %v3894 = vsel %vm3696, %v3676, 0.0
        %v3895 = vadd.f32 %v3893, %v3894
        %v3896 = vsel %vm3696, %v3684, 0.0
        %v3897 = vadd.f32 %v3895, %v3896
        %v3898 = vsel %vm3696, %v3692, 0.0
        %v3899 = vadd.f32 %v3897, %v3898
        %v3900 = vsel %vm3696, %v3669, 0.0
        %v3901 = vsel %vm3696, %v3677, 0.0
        %v3902 = vadd.f32 %v3900, %v3901
        %v3903 = vsel %vm3696, %v3685, 0.0
        %v3904 = vadd.f32 %v3902, %v3903
        %v3905 = vsel %vm3696, %v3693, 0.0
        %v3906 = vadd.f32 %v3904, %v3905
        %v3907 = vsel %vm3696, %v3670, 0.0
        %v3908 = vsel %vm3696, %v3678, 0.0
        %v3909 = vadd.f32 %v3907, %v3908
        %v3910 = vsel %vm3696, %v3686, 0.0
        %v3911 = vadd.f32 %v3909, %v3910
        %v3912 = vsel %vm3696, %v3694, 0.0
        %v3913 = vadd.f32 %v3911, %v3912
        %v3914 = vsel %vm3696, %v3671, 0.0
        %v3915 = vsel %vm3696, %v3679, 0.0
        %v3916 = vadd.f32 %v3914, %v3915
        %v3917 = vsel %vm3696, %v3687, 0.0
        %v3918 = vadd.f32 %v3916, %v3917
        %v3919 = vsel %vm3696, %v3695, 0.0
        %v3920 = vadd.f32 %v3918, %v3919
        %v3921 = vsel %vm3696, %v3703, 0.0
        %v3922 = vsel %vm3696, %v3710, 0.0
        %v3923 = vadd.f32 %v3921, %v3922
        %v3924 = vsel %vm3696, %v3717, 0.0
        %v3925 = vadd.f32 %v3923, %v3924
        %v3926 = vsel %vm3696, %v3724, 0.0
        %v3927 = vadd.f32 %v3925, %v3926
        %v3928 = vsel %vm3696, %v3731, 0.0
        %v3929 = vadd.f32 %v3927, %v3928
        %v3930 = vsel %vm3696, %v3738, 0.0
        %v3931 = vadd.f32 %v3929, %v3930
        %v3932 = vsel %vm3696, %v3745, 0.0
        %v3933 = vadd.f32 %v3931, %v3932
        %v3934 = vsel %vm3696, %v3752, 0.0
        %v3935 = vadd.f32 %v3933, %v3934
        %v3936 = vrot.slane %v3935, 4
        %v3937 = vadd.f32 %v3935, %v3936
        %v3938 = vrot.slane %v3937, 2
        %v3939 = vadd.f32 %v3937, %v3938
        %v3940 = vrot.slane %v3939, 1
        %v3941 = vadd.f32 %v3939, %v3940
        %v3942 = vsel %vm3696, %v3759, 0.0
        %v3943 = vsel %vm3696, %v3766, 0.0
        %v3944 = vadd.f32 %v3942, %v3943
        %v3945 = vsel %vm3696, %v3773, 0.0
        %v3946 = vadd.f32 %v3944, %v3945
        %v3947 = vsel %vm3696, %v3780, 0.0
        %v3948 = vadd.f32 %v3946, %v3947
        %v3949 = vsel %vm3696, %v3787, 0.0
        %v3950 = vadd.f32 %v3948, %v3949
        %v3951 = vsel %vm3696, %v3794, 0.0
        %v3952 = vadd.f32 %v3950, %v3951
        %v3953 = vsel %vm3696, %v3801, 0.0
        %v3954 = vadd.f32 %v3952, %v3953
        %v3955 = vsel %vm3696, %v3808, 0.0
        %v3956 = vadd.f32 %v3954, %v3955
        %v3957 = vrot.slane %v3956, 4
        %v3958 = vadd.f32 %v3956, %v3957
        %v3959 = vrot.slane %v3958, 2
        %v3960 = vadd.f32 %v3958, %v3959
        %v3961 = vrot.slane %v3960, 1
        %v3962 = vadd.f32 %v3960, %v3961
        %v3963 = vsel %vm3696, %v3815, 0.0
        %v3964 = vsel %vm3696, %v3822, 0.0
        %v3965 = vadd.f32 %v3963, %v3964
        %v3966 = vsel %vm3696, %v3829, 0.0
        %v3967 = vadd.f32 %v3965, %v3966
        %v3968 = vsel %vm3696, %v3836, 0.0
        %v3969 = vadd.f32 %v3967, %v3968
        %v3970 = vsel %vm3696, %v3843, 0.0
        %v3971 = vadd.f32 %v3969, %v3970
        %v3972 = vsel %vm3696, %v3850, 0.0
        %v3973 = vadd.f32 %v3971, %v3972
        %v3974 = vsel %vm3696, %v3857, 0.0
        %v3975 = vadd.f32 %v3973, %v3974
        %v3976 = vsel %vm3696, %v3864, 0.0
        %v3977 = vadd.f32 %v3975, %v3976
        %v3978 = vrot.slane %v3977, 4
        %v3979 = vadd.f32 %v3977, %v3978
        %v3980 = vrot.slane %v3979, 2
        %v3981 = vadd.f32 %v3979, %v3980
        %v3982 = vrot.slane %v3981, 1
        %v3983 = vadd.f32 %v3981, %v3982
        %v3984 = vsel %vm3696, %v3871, 0.0
        %v3985 = vsel %vm3696, %v3878, 0.0
        %v3986 = vadd.f32 %v3984, %v3985
        %v3987 = vsel %vm3696, %v3885, 0.0
        %v3988 = vadd.f32 %v3986, %v3987
        %v3989 = vsel %vm3696, %v3892, 0.0
        %v3990 = vadd.f32 %v3988, %v3989
        %v3991 = vsel %vm3696, %v3899, 0.0
        %v3992 = vadd.f32 %v3990, %v3991
        %v3993 = vsel %vm3696, %v3906, 0.0
        %v3994 = vadd.f32 %v3992, %v3993
        %v3995 = vsel %vm3696, %v3913, 0.0
        %v3996 = vadd.f32 %v3994, %v3995
        %v3997 = vsel %vm3696, %v3920, 0.0
        %v3998 = vadd.f32 %v3996, %v3997
        %v3999 = vrot.slane %v3998, 4
        %v4000 = vadd.f32 %v3998, %v3999
        %v4001 = vrot.slane %v4000, 2
        %v4002 = vadd.f32 %v4000, %v4001
        %v4003 = vrot.slane %v4002, 1
        %v4004 = vadd.f32 %v4002, %v4003
        %v4005 = vmul.f32 %v3941, 0.00390625
        %v4006 = vmul.f32 %v3962, 0.00390625
        %v4007 = vmul.f32 %v3983, 0.00390625
        %v4008 = vmul.f32 %v4004, 0.00390625
        %vm4009 = vcmask 516096
        %4010 = vst.msk [vmem:[%s302] sm:$0x1] %vm4009, %v4005
        %4011 = vst.msk [vmem:[%s302 + $0x1] sm:$0x1] %vm4009, %v4006
        %4012 = vst.msk [vmem:[%s302 + $0x2] sm:$0x1] %vm4009, %v4007
        %4013 = vst.msk [vmem:[%s302 + $0x3] sm:$0x1] %vm4009, %v4008
        %v4014 = vsel %vm3696, %v3568, -inf
        %4015 = vmax.xlane.f32.xlu0 %v4014
        %v4016 = vpop.xlane.xlu0 %4015
        %v4017 = vsel %vm3696, %v3569, -inf
        %4018 = vmax.xlane.f32.xlu0 %v4017
        %v4019 = vpop.xlane.xlu0 %4018
        %v4020 = vsel %vm3696, %v3570, -inf
        %4021 = vmax.xlane.f32.xlu0 %v4020
        %v4022 = vpop.xlane.xlu0 %4021
        %v4023 = vsel %vm3696, %v3571, -inf
        %4024 = vmax.xlane.f32.xlu0 %v4023
        %v4025 = vpop.xlane.xlu0 %4024
        %v4026 = vsel %vm3696, %v3572, -inf
        %4027 = vmax.xlane.f32.xlu0 %v4026
        %v4028 = vpop.xlane.xlu0 %4027
        %v4029 = vsel %vm3696, %v3573, -inf
        %4030 = vmax.xlane.f32.xlu0 %v4029
        %v4031 = vpop.xlane.xlu0 %4030
        %v4032 = vsel %vm3696, %v3574, -inf
        %4033 = vmax.xlane.f32.xlu0 %v4032
        %v4034 = vpop.xlane.xlu0 %4033
        %v4035 = vsel %vm3696, %v3575, -inf
        %4036 = vmax.xlane.f32.xlu0 %v4035
        %v4037 = vpop.xlane.xlu0 %4036
        %v4038 = vsel %vm3696, %v3576, -inf
        %4039 = vmax.xlane.f32.xlu0 %v4038
        %v4040 = vpop.xlane.xlu0 %4039
        %v4041 = vsel %vm3696, %v3577, -inf
        %4042 = vmax.xlane.f32.xlu0 %v4041
        %v4043 = vpop.xlane.xlu0 %4042
        %v4044 = vsel %vm3696, %v3578, -inf
        %4045 = vmax.xlane.f32.xlu0 %v4044
        %v4046 = vpop.xlane.xlu0 %4045
        %v4047 = vsel %vm3696, %v3579, -inf
        %4048 = vmax.xlane.f32.xlu0 %v4047
        %v4049 = vpop.xlane.xlu0 %4048
        %v4050 = vsel %vm3696, %v3580, -inf
        %4051 = vmax.xlane.f32.xlu0 %v4050
        %v4052 = vpop.xlane.xlu0 %4051
        %v4053 = vsel %vm3696, %v3581, -inf
        %4054 = vmax.xlane.f32.xlu0 %v4053
        %v4055 = vpop.xlane.xlu0 %4054
        %v4056 = vsel %vm3696, %v3582, -inf
        %4057 = vmax.xlane.f32.xlu0 %v4056
        %v4058 = vpop.xlane.xlu0 %4057
        %v4059 = vsel %vm3696, %v3583, -inf
        %4060 = vmax.xlane.f32.xlu0 %v4059
        %v4061 = vpop.xlane.xlu0 %4060
        %v4062 = vsel %vm3696, %v3584, -inf
        %4063 = vmax.xlane.f32.xlu0 %v4062
        %v4064 = vpop.xlane.xlu0 %4063
        %v4065 = vsel %vm3696, %v3585, -inf
        %4066 = vmax.xlane.f32.xlu0 %v4065
        %v4067 = vpop.xlane.xlu0 %4066
        %v4068 = vsel %vm3696, %v3586, -inf
        %4069 = vmax.xlane.f32.xlu0 %v4068
        %v4070 = vpop.xlane.xlu0 %4069
        %v4071 = vsel %vm3696, %v3587, -inf
        %4072 = vmax.xlane.f32.xlu0 %v4071
        %v4073 = vpop.xlane.xlu0 %4072
        %v4074 = vsel %vm3696, %v3588, -inf
        %4075 = vmax.xlane.f32.xlu0 %v4074
        %v4076 = vpop.xlane.xlu0 %4075
        %v4077 = vsel %vm3696, %v3589, -inf
        %4078 = vmax.xlane.f32.xlu0 %v4077
        %v4079 = vpop.xlane.xlu0 %4078
        %v4080 = vsel %vm3696, %v3590, -inf
        %4081 = vmax.xlane.f32.xlu0 %v4080
        %v4082 = vpop.xlane.xlu0 %4081
        %v4083 = vsel %vm3696, %v3591, -inf
        %4084 = vmax.xlane.f32.xlu0 %v4083
        %v4085 = vpop.xlane.xlu0 %4084
        %v4086 = vsel %vm3696, %v3592, -inf
        %4087 = vmax.xlane.f32.xlu0 %v4086
        %v4088 = vpop.xlane.xlu0 %4087
        %v4089 = vsel %vm3696, %v3593, -inf
        %4090 = vmax.xlane.f32.xlu0 %v4089
        %v4091 = vpop.xlane.xlu0 %4090
        %v4092 = vsel %vm3696, %v3594, -inf
        %4093 = vmax.xlane.f32.xlu0 %v4092
        %v4094 = vpop.xlane.xlu0 %4093
        %v4095 = vsel %vm3696, %v3595, -inf
        %4096 = vmax.xlane.f32.xlu0 %v4095
        %v4097 = vpop.xlane.xlu0 %4096
        %v4098 = vsel %vm3696, %v3596, -inf
        %4099 = vmax.xlane.f32.xlu0 %v4098
        %v4100 = vpop.xlane.xlu0 %4099
        %v4101 = vsel %vm3696, %v3597, -inf
        %4102 = vmax.xlane.f32.xlu0 %v4101
        %v4103 = vpop.xlane.xlu0 %4102
        %v4104 = vsel %vm3696, %v3598, -inf
        %4105 = vmax.xlane.f32.xlu0 %v4104
        %v4106 = vpop.xlane.xlu0 %4105
        %v4107 = vsel %vm3696, %v3599, -inf
        %4108 = vmax.xlane.f32.xlu0 %v4107
        %v4109 = vpop.xlane.xlu0 %4108
        %v4110 = vsel %vm3696, %v3600, -inf
        %4111 = vmax.xlane.f32.xlu0 %v4110
        %v4112 = vpop.xlane.xlu0 %4111
        %v4113 = vsel %vm3696, %v3601, -inf
        %4114 = vmax.xlane.f32.xlu0 %v4113
        %v4115 = vpop.xlane.xlu0 %4114
        %v4116 = vsel %vm3696, %v3602, -inf
        %4117 = vmax.xlane.f32.xlu0 %v4116
        %v4118 = vpop.xlane.xlu0 %4117
        %v4119 = vsel %vm3696, %v3603, -inf
        %4120 = vmax.xlane.f32.xlu0 %v4119
        %v4121 = vpop.xlane.xlu0 %4120
        %v4122 = vsel %vm3696, %v3604, -inf
        %4123 = vmax.xlane.f32.xlu0 %v4122
        %v4124 = vpop.xlane.xlu0 %4123
        %v4125 = vsel %vm3696, %v3605, -inf
        %4126 = vmax.xlane.f32.xlu0 %v4125
        %v4127 = vpop.xlane.xlu0 %4126
        %v4128 = vsel %vm3696, %v3606, -inf
        %4129 = vmax.xlane.f32.xlu0 %v4128
        %v4130 = vpop.xlane.xlu0 %4129
        %v4131 = vsel %vm3696, %v3607, -inf
        %4132 = vmax.xlane.f32.xlu0 %v4131
        %v4133 = vpop.xlane.xlu0 %4132
        %v4134 = vsel %vm3696, %v3608, -inf
        %4135 = vmax.xlane.f32.xlu0 %v4134
        %v4136 = vpop.xlane.xlu0 %4135
        %v4137 = vsel %vm3696, %v3609, -inf
        %4138 = vmax.xlane.f32.xlu0 %v4137
        %v4139 = vpop.xlane.xlu0 %4138
        %v4140 = vsel %vm3696, %v3610, -inf
        %4141 = vmax.xlane.f32.xlu0 %v4140
        %v4142 = vpop.xlane.xlu0 %4141
        %v4143 = vsel %vm3696, %v3611, -inf
        %4144 = vmax.xlane.f32.xlu0 %v4143
        %v4145 = vpop.xlane.xlu0 %4144
        %v4146 = vsel %vm3696, %v3612, -inf
        %4147 = vmax.xlane.f32.xlu0 %v4146
        %v4148 = vpop.xlane.xlu0 %4147
        %v4149 = vsel %vm3696, %v3613, -inf
        %4150 = vmax.xlane.f32.xlu0 %v4149
        %v4151 = vpop.xlane.xlu0 %4150
        %v4152 = vsel %vm3696, %v3614, -inf
        %4153 = vmax.xlane.f32.xlu0 %v4152
        %v4154 = vpop.xlane.xlu0 %4153
        %v4155 = vsel %vm3696, %v3615, -inf
        %4156 = vmax.xlane.f32.xlu0 %v4155
        %v4157 = vpop.xlane.xlu0 %4156
        %v4158 = vsel %vm3696, %v3616, -inf
        %4159 = vmax.xlane.f32.xlu0 %v4158
        %v4160 = vpop.xlane.xlu0 %4159
        %v4161 = vsel %vm3696, %v3617, -inf
        %4162 = vmax.xlane.f32.xlu0 %v4161
        %v4163 = vpop.xlane.xlu0 %4162
        %v4164 = vsel %vm3696, %v3618, -inf
        %4165 = vmax.xlane.f32.xlu0 %v4164
        %v4166 = vpop.xlane.xlu0 %4165
        %v4167 = vsel %vm3696, %v3619, -inf
        %4168 = vmax.xlane.f32.xlu0 %v4167
        %v4169 = vpop.xlane.xlu0 %4168
        %v4170 = vsel %vm3696, %v3620, -inf
        %4171 = vmax.xlane.f32.xlu0 %v4170
        %v4172 = vpop.xlane.xlu0 %4171
        %v4173 = vsel %vm3696, %v3621, -inf
        %4174 = vmax.xlane.f32.xlu0 %v4173
        %v4175 = vpop.xlane.xlu0 %4174
        %v4176 = vsel %vm3696, %v3622, -inf
        %4177 = vmax.xlane.f32.xlu0 %v4176
        %v4178 = vpop.xlane.xlu0 %4177
        %v4179 = vsel %vm3696, %v3623, -inf
        %4180 = vmax.xlane.f32.xlu0 %v4179
        %v4181 = vpop.xlane.xlu0 %4180
        %v4182 = vsel %vm3696, %v3624, -inf
        %4183 = vmax.xlane.f32.xlu0 %v4182
        %v4184 = vpop.xlane.xlu0 %4183
        %v4185 = vsel %vm3696, %v3625, -inf
        %4186 = vmax.xlane.f32.xlu0 %v4185
        %v4187 = vpop.xlane.xlu0 %4186
        %v4188 = vsel %vm3696, %v3626, -inf
        %4189 = vmax.xlane.f32.xlu0 %v4188
        %v4190 = vpop.xlane.xlu0 %4189
        %v4191 = vsel %vm3696, %v3627, -inf
        %4192 = vmax.xlane.f32.xlu0 %v4191
        %v4193 = vpop.xlane.xlu0 %4192
        %v4194 = vsel %vm3696, %v3628, -inf
        %4195 = vmax.xlane.f32.xlu0 %v4194
        %v4196 = vpop.xlane.xlu0 %4195
        %v4197 = vsel %vm3696, %v3629, -inf
        %4198 = vmax.xlane.f32.xlu0 %v4197
        %v4199 = vpop.xlane.xlu0 %4198
        %v4200 = vsel %vm3696, %v3630, -inf
        %4201 = vmax.xlane.f32.xlu0 %v4200
        %v4202 = vpop.xlane.xlu0 %4201
        %v4203 = vsel %vm3696, %v3631, -inf
        %4204 = vmax.xlane.f32.xlu0 %v4203
        %v4205 = vpop.xlane.xlu0 %4204
        %v4206 = vsel %vm3696, %v3632, -inf
        %4207 = vmax.xlane.f32.xlu0 %v4206
        %v4208 = vpop.xlane.xlu0 %4207
        %v4209 = vsel %vm3696, %v3633, -inf
        %4210 = vmax.xlane.f32.xlu0 %v4209
        %v4211 = vpop.xlane.xlu0 %4210
        %v4212 = vsel %vm3696, %v3634, -inf
        %4213 = vmax.xlane.f32.xlu0 %v4212
        %v4214 = vpop.xlane.xlu0 %4213
        %v4215 = vsel %vm3696, %v3635, -inf
        %4216 = vmax.xlane.f32.xlu0 %v4215
        %v4217 = vpop.xlane.xlu0 %4216
        %v4218 = vsel %vm3696, %v3636, -inf
        %4219 = vmax.xlane.f32.xlu0 %v4218
        %v4220 = vpop.xlane.xlu0 %4219
        %v4221 = vsel %vm3696, %v3637, -inf
        %4222 = vmax.xlane.f32.xlu0 %v4221
        %v4223 = vpop.xlane.xlu0 %4222
        %v4224 = vsel %vm3696, %v3638, -inf
        %4225 = vmax.xlane.f32.xlu0 %v4224
        %v4226 = vpop.xlane.xlu0 %4225
        %v4227 = vsel %vm3696, %v3639, -inf
        %4228 = vmax.xlane.f32.xlu0 %v4227
        %v4229 = vpop.xlane.xlu0 %4228
        %v4230 = vsel %vm3696, %v3640, -inf
        %4231 = vmax.xlane.f32.xlu0 %v4230
        %v4232 = vpop.xlane.xlu0 %4231
        %v4233 = vsel %vm3696, %v3641, -inf
        %4234 = vmax.xlane.f32.xlu0 %v4233
        %v4235 = vpop.xlane.xlu0 %4234
        %v4236 = vsel %vm3696, %v3642, -inf
        %4237 = vmax.xlane.f32.xlu0 %v4236
        %v4238 = vpop.xlane.xlu0 %4237
        %v4239 = vsel %vm3696, %v3643, -inf
        %4240 = vmax.xlane.f32.xlu0 %v4239
        %v4241 = vpop.xlane.xlu0 %4240
        %v4242 = vsel %vm3696, %v3644, -inf
        %4243 = vmax.xlane.f32.xlu0 %v4242
        %v4244 = vpop.xlane.xlu0 %4243
        %v4245 = vsel %vm3696, %v3645, -inf
        %4246 = vmax.xlane.f32.xlu0 %v4245
        %v4247 = vpop.xlane.xlu0 %4246
        %v4248 = vsel %vm3696, %v3646, -inf
        %4249 = vmax.xlane.f32.xlu0 %v4248
        %v4250 = vpop.xlane.xlu0 %4249
        %v4251 = vsel %vm3696, %v3647, -inf
        %4252 = vmax.xlane.f32.xlu0 %v4251
        %v4253 = vpop.xlane.xlu0 %4252
        %v4254 = vsel %vm3696, %v3648, -inf
        %4255 = vmax.xlane.f32.xlu0 %v4254
        %v4256 = vpop.xlane.xlu0 %4255
        %v4257 = vsel %vm3696, %v3649, -inf
        %4258 = vmax.xlane.f32.xlu0 %v4257
        %v4259 = vpop.xlane.xlu0 %4258
        %v4260 = vsel %vm3696, %v3650, -inf
        %4261 = vmax.xlane.f32.xlu0 %v4260
        %v4262 = vpop.xlane.xlu0 %4261
        %v4263 = vsel %vm3696, %v3651, -inf
        %4264 = vmax.xlane.f32.xlu0 %v4263
        %v4265 = vpop.xlane.xlu0 %4264
        %v4266 = vsel %vm3696, %v3652, -inf
        %4267 = vmax.xlane.f32.xlu0 %v4266
        %v4268 = vpop.xlane.xlu0 %4267
        %v4269 = vsel %vm3696, %v3653, -inf
        %4270 = vmax.xlane.f32.xlu0 %v4269
        %v4271 = vpop.xlane.xlu0 %4270
        %v4272 = vsel %vm3696, %v3654, -inf
        %4273 = vmax.xlane.f32.xlu0 %v4272
        %v4274 = vpop.xlane.xlu0 %4273
        %v4275 = vsel %vm3696, %v3655, -inf
        %4276 = vmax.xlane.f32.xlu0 %v4275
        %v4277 = vpop.xlane.xlu0 %4276
        %v4278 = vsel %vm3696, %v3656, -inf
        %4279 = vmax.xlane.f32.xlu0 %v4278
        %v4280 = vpop.xlane.xlu0 %4279
        %v4281 = vsel %vm3696, %v3657, -inf
        %4282 = vmax.xlane.f32.xlu0 %v4281
        %v4283 = vpop.xlane.xlu0 %4282
        %v4284 = vsel %vm3696, %v3658, -inf
        %4285 = vmax.xlane.f32.xlu0 %v4284
        %v4286 = vpop.xlane.xlu0 %4285
        %v4287 = vsel %vm3696, %v3659, -inf
        %4288 = vmax.xlane.f32.xlu0 %v4287
        %v4289 = vpop.xlane.xlu0 %4288
        %v4290 = vsel %vm3696, %v3660, -inf
        %4291 = vmax.xlane.f32.xlu0 %v4290
        %v4292 = vpop.xlane.xlu0 %4291
        %v4293 = vsel %vm3696, %v3661, -inf
        %4294 = vmax.xlane.f32.xlu0 %v4293
        %v4295 = vpop.xlane.xlu0 %4294
        %v4296 = vsel %vm3696, %v3662, -inf
        %4297 = vmax.xlane.f32.xlu0 %v4296
        %v4298 = vpop.xlane.xlu0 %4297
        %v4299 = vsel %vm3696, %v3663, -inf
        %4300 = vmax.xlane.f32.xlu0 %v4299
        %v4301 = vpop.xlane.xlu0 %4300
        %v4302 = vsel %vm3696, %v3664, -inf
        %4303 = vmax.xlane.f32.xlu0 %v4302
        %v4304 = vpop.xlane.xlu0 %4303
        %v4305 = vsel %vm3696, %v3665, -inf
        %4306 = vmax.xlane.f32.xlu0 %v4305
        %v4307 = vpop.xlane.xlu0 %4306
        %v4308 = vsel %vm3696, %v3666, -inf
        %4309 = vmax.xlane.f32.xlu0 %v4308
        %v4310 = vpop.xlane.xlu0 %4309
        %v4311 = vsel %vm3696, %v3667, -inf
        %4312 = vmax.xlane.f32.xlu0 %v4311
        %v4313 = vpop.xlane.xlu0 %4312
        %v4314 = vsel %vm3696, %v3668, -inf
        %4315 = vmax.xlane.f32.xlu0 %v4314
        %v4316 = vpop.xlane.xlu0 %4315
        %v4317 = vsel %vm3696, %v3669, -inf
        %4318 = vmax.xlane.f32.xlu0 %v4317
        %v4319 = vpop.xlane.xlu0 %4318
        %v4320 = vsel %vm3696, %v3670, -inf
        %4321 = vmax.xlane.f32.xlu0 %v4320
        %v4322 = vpop.xlane.xlu0 %4321
        %v4323 = vsel %vm3696, %v3671, -inf
        %4324 = vmax.xlane.f32.xlu0 %v4323
        %v4325 = vpop.xlane.xlu0 %4324
        %v4326 = vsel %vm3696, %v3672, -inf
        %4327 = vmax.xlane.f32.xlu0 %v4326
        %v4328 = vpop.xlane.xlu0 %4327
        %v4329 = vsel %vm3696, %v3673, -inf
        %4330 = vmax.xlane.f32.xlu0 %v4329
        %v4331 = vpop.xlane.xlu0 %4330
        %v4332 = vsel %vm3696, %v3674, -inf
        %4333 = vmax.xlane.f32.xlu0 %v4332
        %v4334 = vpop.xlane.xlu0 %4333
        %v4335 = vsel %vm3696, %v3675, -inf
        %4336 = vmax.xlane.f32.xlu0 %v4335
        %v4337 = vpop.xlane.xlu0 %4336
        %v4338 = vsel %vm3696, %v3676, -inf
        %4339 = vmax.xlane.f32.xlu0 %v4338
        %v4340 = vpop.xlane.xlu0 %4339
        %v4341 = vsel %vm3696, %v3677, -inf
        %4342 = vmax.xlane.f32.xlu0 %v4341
        %v4343 = vpop.xlane.xlu0 %4342
        %v4344 = vsel %vm3696, %v3678, -inf
        %4345 = vmax.xlane.f32.xlu0 %v4344
        %v4346 = vpop.xlane.xlu0 %4345
        %v4347 = vsel %vm3696, %v3679, -inf
        %4348 = vmax.xlane.f32.xlu0 %v4347
        %v4349 = vpop.xlane.xlu0 %4348
        %v4350 = vsel %vm3696, %v3680, -inf
        %4351 = vmax.xlane.f32.xlu0 %v4350
        %v4352 = vpop.xlane.xlu0 %4351
        %v4353 = vsel %vm3696, %v3681, -inf
        %4354 = vmax.xlane.f32.xlu0 %v4353
        %v4355 = vpop.xlane.xlu0 %4354
        %v4356 = vsel %vm3696, %v3682, -inf
        %4357 = vmax.xlane.f32.xlu0 %v4356
        %v4358 = vpop.xlane.xlu0 %4357
        %v4359 = vsel %vm3696, %v3683, -inf
        %4360 = vmax.xlane.f32.xlu0 %v4359
        %v4361 = vpop.xlane.xlu0 %4360
        %v4362 = vsel %vm3696, %v3684, -inf
        %4363 = vmax.xlane.f32.xlu0 %v4362
        %v4364 = vpop.xlane.xlu0 %4363
        %v4365 = vsel %vm3696, %v3685, -inf
        %4366 = vmax.xlane.f32.xlu0 %v4365
        %v4367 = vpop.xlane.xlu0 %4366
        %v4368 = vsel %vm3696, %v3686, -inf
        %4369 = vmax.xlane.f32.xlu0 %v4368
        %v4370 = vpop.xlane.xlu0 %4369
        %v4371 = vsel %vm3696, %v3687, -inf
        %4372 = vmax.xlane.f32.xlu0 %v4371
        %v4373 = vpop.xlane.xlu0 %4372
        %v4374 = vsel %vm3696, %v3688, -inf
        %4375 = vmax.xlane.f32.xlu0 %v4374
        %v4376 = vpop.xlane.xlu0 %4375
        %v4377 = vsel %vm3696, %v3689, -inf
        %4378 = vmax.xlane.f32.xlu0 %v4377
        %v4379 = vpop.xlane.xlu0 %4378
        %v4380 = vsel %vm3696, %v3690, -inf
        %4381 = vmax.xlane.f32.xlu0 %v4380
        %v4382 = vpop.xlane.xlu0 %4381
        %v4383 = vsel %vm3696, %v3691, -inf
        %4384 = vmax.xlane.f32.xlu0 %v4383
        %v4385 = vpop.xlane.xlu0 %4384
        %v4386 = vsel %vm3696, %v3692, -inf
        %4387 = vmax.xlane.f32.xlu0 %v4386
        %v4388 = vpop.xlane.xlu0 %4387
        %v4389 = vsel %vm3696, %v3693, -inf
        %4390 = vmax.xlane.f32.xlu0 %v4389
        %v4391 = vpop.xlane.xlu0 %4390
        %v4392 = vsel %vm3696, %v3694, -inf
        %4393 = vmax.xlane.f32.xlu0 %v4392
        %v4394 = vpop.xlane.xlu0 %4393
        %v4395 = vsel %vm3696, %v3695, -inf
        %4396 = vmax.xlane.f32.xlu0 %v4395
        %v4397 = vpop.xlane.xlu0 %4396
        %v4398 = vsub.f32 %v3568, %v4016
        %v4399 = vsub.f32 %v3569, %v4019
        %v4400 = vsub.f32 %v3570, %v4022
        %v4401 = vsub.f32 %v3571, %v4025
        %v4402 = vsub.f32 %v3572, %v4028
        %v4403 = vsub.f32 %v3573, %v4031
        %v4404 = vsub.f32 %v3574, %v4034
        %v4405 = vsub.f32 %v3575, %v4037
        %v4406 = vsub.f32 %v3576, %v4040
        %v4407 = vsub.f32 %v3577, %v4043
        %v4408 = vsub.f32 %v3578, %v4046
        %v4409 = vsub.f32 %v3579, %v4049
        %v4410 = vsub.f32 %v3580, %v4052
        %v4411 = vsub.f32 %v3581, %v4055
        %v4412 = vsub.f32 %v3582, %v4058
        %v4413 = vsub.f32 %v3583, %v4061
        %v4414 = vsub.f32 %v3584, %v4064
        %v4415 = vsub.f32 %v3585, %v4067
        %v4416 = vsub.f32 %v3586, %v4070
        %v4417 = vsub.f32 %v3587, %v4073
        %v4418 = vsub.f32 %v3588, %v4076
        %v4419 = vsub.f32 %v3589, %v4079
        %v4420 = vsub.f32 %v3590, %v4082
        %v4421 = vsub.f32 %v3591, %v4085
        %v4422 = vsub.f32 %v3592, %v4088
        %v4423 = vsub.f32 %v3593, %v4091
        %v4424 = vsub.f32 %v3594, %v4094
        %v4425 = vsub.f32 %v3595, %v4097
        %v4426 = vsub.f32 %v3596, %v4100
        %v4427 = vsub.f32 %v3597, %v4103
        %v4428 = vsub.f32 %v3598, %v4106
        %v4429 = vsub.f32 %v3599, %v4109
        %v4430 = vsub.f32 %v3600, %v4112
        %v4431 = vsub.f32 %v3601, %v4115
        %v4432 = vsub.f32 %v3602, %v4118
        %v4433 = vsub.f32 %v3603, %v4121
        %v4434 = vsub.f32 %v3604, %v4124
        %v4435 = vsub.f32 %v3605, %v4127
        %v4436 = vsub.f32 %v3606, %v4130
        %v4437 = vsub.f32 %v3607, %v4133
        %v4438 = vsub.f32 %v3608, %v4136
        %v4439 = vsub.f32 %v3609, %v4139
        %v4440 = vsub.f32 %v3610, %v4142
        %v4441 = vsub.f32 %v3611, %v4145
        %v4442 = vsub.f32 %v3612, %v4148
        %v4443 = vsub.f32 %v3613, %v4151
        %v4444 = vsub.f32 %v3614, %v4154
        %v4445 = vsub.f32 %v3615, %v4157
        %v4446 = vsub.f32 %v3616, %v4160
        %v4447 = vsub.f32 %v3617, %v4163
        %v4448 = vsub.f32 %v3618, %v4166
        %v4449 = vsub.f32 %v3619, %v4169
        %v4450 = vsub.f32 %v3620, %v4172
        %v4451 = vsub.f32 %v3621, %v4175
        %v4452 = vsub.f32 %v3622, %v4178
        %v4453 = vsub.f32 %v3623, %v4181
        %v4454 = vsub.f32 %v3624, %v4184
        %v4455 = vsub.f32 %v3625, %v4187
        %v4456 = vsub.f32 %v3626, %v4190
        %v4457 = vsub.f32 %v3627, %v4193
        %v4458 = vsub.f32 %v3628, %v4196
        %v4459 = vsub.f32 %v3629, %v4199
        %v4460 = vsub.f32 %v3630, %v4202
        %v4461 = vsub.f32 %v3631, %v4205
        %v4462 = vsub.f32 %v3632, %v4208
        %v4463 = vsub.f32 %v3633, %v4211
        %v4464 = vsub.f32 %v3634, %v4214
        %v4465 = vsub.f32 %v3635, %v4217
        %v4466 = vsub.f32 %v3636, %v4220
        %v4467 = vsub.f32 %v3637, %v4223
        %v4468 = vsub.f32 %v3638, %v4226
        %v4469 = vsub.f32 %v3639, %v4229
        %v4470 = vsub.f32 %v3640, %v4232
        %v4471 = vsub.f32 %v3641, %v4235
        %v4472 = vsub.f32 %v3642, %v4238
        %v4473 = vsub.f32 %v3643, %v4241
        %v4474 = vsub.f32 %v3644, %v4244
        %v4475 = vsub.f32 %v3645, %v4247
        %v4476 = vsub.f32 %v3646, %v4250
        %v4477 = vsub.f32 %v3647, %v4253
        %v4478 = vsub.f32 %v3648, %v4256
        %v4479 = vsub.f32 %v3649, %v4259
        %v4480 = vsub.f32 %v3650, %v4262
        %v4481 = vsub.f32 %v3651, %v4265
        %v4482 = vsub.f32 %v3652, %v4268
        %v4483 = vsub.f32 %v3653, %v4271
        %v4484 = vsub.f32 %v3654, %v4274
        %v4485 = vsub.f32 %v3655, %v4277
        %v4486 = vsub.f32 %v3656, %v4280
        %v4487 = vsub.f32 %v3657, %v4283
        %v4488 = vsub.f32 %v3658, %v4286
        %v4489 = vsub.f32 %v3659, %v4289
        %v4490 = vsub.f32 %v3660, %v4292
        %v4491 = vsub.f32 %v3661, %v4295
        %v4492 = vsub.f32 %v3662, %v4298
        %v4493 = vsub.f32 %v3663, %v4301
        %v4494 = vsub.f32 %v3664, %v4304
        %v4495 = vsub.f32 %v3665, %v4307
        %v4496 = vsub.f32 %v3666, %v4310
        %v4497 = vsub.f32 %v3667, %v4313
        %v4498 = vsub.f32 %v3668, %v4316
        %v4499 = vsub.f32 %v3669, %v4319
        %v4500 = vsub.f32 %v3670, %v4322
        %v4501 = vsub.f32 %v3671, %v4325
        %v4502 = vsub.f32 %v3672, %v4328
        %v4503 = vsub.f32 %v3673, %v4331
        %v4504 = vsub.f32 %v3674, %v4334
        %v4505 = vsub.f32 %v3675, %v4337
        %v4506 = vsub.f32 %v3676, %v4340
        %v4507 = vsub.f32 %v3677, %v4343
        %v4508 = vsub.f32 %v3678, %v4346
        %v4509 = vsub.f32 %v3679, %v4349
        %v4510 = vsub.f32 %v3680, %v4352
        %v4511 = vsub.f32 %v3681, %v4355
        %v4512 = vsub.f32 %v3682, %v4358
        %v4513 = vsub.f32 %v3683, %v4361
        %v4514 = vsub.f32 %v3684, %v4364
        %v4515 = vsub.f32 %v3685, %v4367
        %v4516 = vsub.f32 %v3686, %v4370
        %v4517 = vsub.f32 %v3687, %v4373
        %v4518 = vsub.f32 %v3688, %v4376
        %v4519 = vsub.f32 %v3689, %v4379
        %v4520 = vsub.f32 %v3690, %v4382
        %v4521 = vsub.f32 %v3691, %v4385
        %v4522 = vsub.f32 %v3692, %v4388
        %v4523 = vsub.f32 %v3693, %v4391
        %v4524 = vsub.f32 %v3694, %v4394
        %v4525 = vsub.f32 %v3695, %v4397
        %v4526 = vmul.f32 %v4398, 1.442695
        %v4527 = vpow.pop %v4526
        %v4528 = vmul.f32 %v4399, 1.442695
        %v4529 = vpow.pop %v4528
        %v4530 = vmul.f32 %v4400, 1.442695
        %v4531 = vpow.pop %v4530
        %v4532 = vmul.f32 %v4401, 1.442695
        %v4533 = vpow.pop %v4532
        %v4534 = vmul.f32 %v4402, 1.442695
        %v4535 = vpow.pop %v4534
        %v4536 = vmul.f32 %v4403, 1.442695
        %v4537 = vpow.pop %v4536
        %v4538 = vmul.f32 %v4404, 1.442695
        %v4539 = vpow.pop %v4538
        %v4540 = vmul.f32 %v4405, 1.442695
        %v4541 = vpow.pop %v4540
        %v4542 = vmul.f32 %v4406, 1.442695
        %v4543 = vpow.pop %v4542
        %v4544 = vmul.f32 %v4407, 1.442695
        %v4545 = vpow.pop %v4544
        %v4546 = vmul.f32 %v4408, 1.442695
        %v4547 = vpow.pop %v4546
        %v4548 = vmul.f32 %v4409, 1.442695
        %v4549 = vpow.pop %v4548
        %v4550 = vmul.f32 %v4410, 1.442695
        %v4551 = vpow.pop %v4550
        %v4552 = vmul.f32 %v4411, 1.442695
        %v4553 = vpow.pop %v4552
        %v4554 = vmul.f32 %v4412, 1.442695
        %v4555 = vpow.pop %v4554
        %v4556 = vmul.f32 %v4413, 1.442695
        %v4557 = vpow.pop %v4556
        %v4558 = vmul.f32 %v4414, 1.442695
        %v4559 = vpow.pop %v4558
        %v4560 = vmul.f32 %v4415, 1.442695
        %v4561 = vpow.pop %v4560
        %v4562 = vmul.f32 %v4416, 1.442695
        %v4563 = vpow.pop %v4562
        %v4564 = vmul.f32 %v4417, 1.442695
        %v4565 = vpow.pop %v4564
        %v4566 = vmul.f32 %v4418, 1.442695
        %v4567 = vpow.pop %v4566
        %v4568 = vmul.f32 %v4419, 1.442695
        %v4569 = vpow.pop %v4568
        %v4570 = vmul.f32 %v4420, 1.442695
        %v4571 = vpow.pop %v4570
        %v4572 = vmul.f32 %v4421, 1.442695
        %v4573 = vpow.pop %v4572
        %v4574 = vmul.f32 %v4422, 1.442695
        %v4575 = vpow.pop %v4574
        %v4576 = vmul.f32 %v4423, 1.442695
        %v4577 = vpow.pop %v4576
        %v4578 = vmul.f32 %v4424, 1.442695
        %v4579 = vpow.pop %v4578
        %v4580 = vmul.f32 %v4425, 1.442695
        %v4581 = vpow.pop %v4580
        %v4582 = vmul.f32 %v4426, 1.442695
        %v4583 = vpow.pop %v4582
        %v4584 = vmul.f32 %v4427, 1.442695
        %v4585 = vpow.pop %v4584
        %v4586 = vmul.f32 %v4428, 1.442695
        %v4587 = vpow.pop %v4586
        %v4588 = vmul.f32 %v4429, 1.442695
        %v4589 = vpow.pop %v4588
        %v4590 = vmul.f32 %v4430, 1.442695
        %v4591 = vpow.pop %v4590
        %v4592 = vmul.f32 %v4431, 1.442695
        %v4593 = vpow.pop %v4592
        %v4594 = vmul.f32 %v4432, 1.442695
        %v4595 = vpow.pop %v4594
        %v4596 = vmul.f32 %v4433, 1.442695
        %v4597 = vpow.pop %v4596
        %v4598 = vmul.f32 %v4434, 1.442695
        %v4599 = vpow.pop %v4598
        %v4600 = vmul.f32 %v4435, 1.442695
        %v4601 = vpow.pop %v4600
        %v4602 = vmul.f32 %v4436, 1.442695
        %v4603 = vpow.pop %v4602
        %v4604 = vmul.f32 %v4437, 1.442695
        %v4605 = vpow.pop %v4604
        %v4606 = vmul.f32 %v4438, 1.442695
        %v4607 = vpow.pop %v4606
        %v4608 = vmul.f32 %v4439, 1.442695
        %v4609 = vpow.pop %v4608
        %v4610 = vmul.f32 %v4440, 1.442695
        %v4611 = vpow.pop %v4610
        %v4612 = vmul.f32 %v4441, 1.442695
        %v4613 = vpow.pop %v4612
        %v4614 = vmul.f32 %v4442, 1.442695
        %v4615 = vpow.pop %v4614
        %v4616 = vmul.f32 %v4443, 1.442695
        %v4617 = vpow.pop %v4616
        %v4618 = vmul.f32 %v4444, 1.442695
        %v4619 = vpow.pop %v4618
        %v4620 = vmul.f32 %v4445, 1.442695
        %v4621 = vpow.pop %v4620
        %v4622 = vmul.f32 %v4446, 1.442695
        %v4623 = vpow.pop %v4622
        %v4624 = vmul.f32 %v4447, 1.442695
        %v4625 = vpow.pop %v4624
        %v4626 = vmul.f32 %v4448, 1.442695
        %v4627 = vpow.pop %v4626
        %v4628 = vmul.f32 %v4449, 1.442695
        %v4629 = vpow.pop %v4628
        %v4630 = vmul.f32 %v4450, 1.442695
        %v4631 = vpow.pop %v4630
        %v4632 = vmul.f32 %v4451, 1.442695
        %v4633 = vpow.pop %v4632
        %v4634 = vmul.f32 %v4452, 1.442695
        %v4635 = vpow.pop %v4634
        %v4636 = vmul.f32 %v4453, 1.442695
        %v4637 = vpow.pop %v4636
        %v4638 = vmul.f32 %v4454, 1.442695
        %v4639 = vpow.pop %v4638
        %v4640 = vmul.f32 %v4455, 1.442695
        %v4641 = vpow.pop %v4640
        %v4642 = vmul.f32 %v4456, 1.442695
        %v4643 = vpow.pop %v4642
        %v4644 = vmul.f32 %v4457, 1.442695
        %v4645 = vpow.pop %v4644
        %v4646 = vmul.f32 %v4458, 1.442695
        %v4647 = vpow.pop %v4646
        %v4648 = vmul.f32 %v4459, 1.442695
        %v4649 = vpow.pop %v4648
        %v4650 = vmul.f32 %v4460, 1.442695
        %v4651 = vpow.pop %v4650
        %v4652 = vmul.f32 %v4461, 1.442695
        %v4653 = vpow.pop %v4652
        %v4654 = vmul.f32 %v4462, 1.442695
        %v4655 = vpow.pop %v4654
        %v4656 = vmul.f32 %v4463, 1.442695
        %v4657 = vpow.pop %v4656
        %v4658 = vmul.f32 %v4464, 1.442695
        %v4659 = vpow.pop %v4658
        %v4660 = vmul.f32 %v4465, 1.442695
        %v4661 = vpow.pop %v4660
        %v4662 = vmul.f32 %v4466, 1.442695
        %v4663 = vpow.pop %v4662
        %v4664 = vmul.f32 %v4467, 1.442695
        %v4665 = vpow.pop %v4664
        %v4666 = vmul.f32 %v4468, 1.442695
        %v4667 = vpow.pop %v4666
        %v4668 = vmul.f32 %v4469, 1.442695
        %v4669 = vpow.pop %v4668
        %v4670 = vmul.f32 %v4470, 1.442695
        %v4671 = vpow.pop %v4670
        %v4672 = vmul.f32 %v4471, 1.442695
        %v4673 = vpow.pop %v4672
        %v4674 = vmul.f32 %v4472, 1.442695
        %v4675 = vpow.pop %v4674
        %v4676 = vmul.f32 %v4473, 1.442695
        %v4677 = vpow.pop %v4676
        %v4678 = vmul.f32 %v4474, 1.442695
        %v4679 = vpow.pop %v4678
        %v4680 = vmul.f32 %v4475, 1.442695
        %v4681 = vpow.pop %v4680
        %v4682 = vmul.f32 %v4476, 1.442695
        %v4683 = vpow.pop %v4682
        %v4684 = vmul.f32 %v4477, 1.442695
        %v4685 = vpow.pop %v4684
        %v4686 = vmul.f32 %v4478, 1.442695
        %v4687 = vpow.pop %v4686
        %v4688 = vmul.f32 %v4479, 1.442695
        %v4689 = vpow.pop %v4688
        %v4690 = vmul.f32 %v4480, 1.442695
        %v4691 = vpow.pop %v4690
        %v4692 = vmul.f32 %v4481, 1.442695
        %v4693 = vpow.pop %v4692
        %v4694 = vmul.f32 %v4482, 1.442695
        %v4695 = vpow.pop %v4694
        %v4696 = vmul.f32 %v4483, 1.442695
        %v4697 = vpow.pop %v4696
        %v4698 = vmul.f32 %v4484, 1.442695
        %v4699 = vpow.pop %v4698
        %v4700 = vmul.f32 %v4485, 1.442695
        %v4701 = vpow.pop %v4700
        %v4702 = vmul.f32 %v4486, 1.442695
        %v4703 = vpow.pop %v4702
        %v4704 = vmul.f32 %v4487, 1.442695
        %v4705 = vpow.pop %v4704
        %v4706 = vmul.f32 %v4488, 1.442695
        %v4707 = vpow.pop %v4706
        %v4708 = vmul.f32 %v4489, 1.442695
        %v4709 = vpow.pop %v4708
        %v4710 = vmul.f32 %v4490, 1.442695
        %v4711 = vpow.pop %v4710
        %v4712 = vmul.f32 %v4491, 1.442695
        %v4713 = vpow.pop %v4712
        %v4714 = vmul.f32 %v4492, 1.442695
        %v4715 = vpow.pop %v4714
        %v4716 = vmul.f32 %v4493, 1.442695
        %v4717 = vpow.pop %v4716
        %v4718 = vmul.f32 %v4494, 1.442695
        %v4719 = vpow.pop %v4718
        %v4720 = vmul.f32 %v4495, 1.442695
        %v4721 = vpow.pop %v4720
        %v4722 = vmul.f32 %v4496, 1.442695
        %v4723 = vpow.pop %v4722
        %v4724 = vmul.f32 %v4497, 1.442695
        %v4725 = vpow.pop %v4724
        %v4726 = vmul.f32 %v4498, 1.442695
        %v4727 = vpow.pop %v4726
        %v4728 = vmul.f32 %v4499, 1.442695
        %v4729 = vpow.pop %v4728
        %v4730 = vmul.f32 %v4500, 1.442695
        %v4731 = vpow.pop %v4730
        %v4732 = vmul.f32 %v4501, 1.442695
        %v4733 = vpow.pop %v4732
        %v4734 = vmul.f32 %v4502, 1.442695
        %v4735 = vpow.pop %v4734
        %v4736 = vmul.f32 %v4503, 1.442695
        %v4737 = vpow.pop %v4736
        %v4738 = vmul.f32 %v4504, 1.442695
        %v4739 = vpow.pop %v4738
        %v4740 = vmul.f32 %v4505, 1.442695
        %v4741 = vpow.pop %v4740
        %v4742 = vmul.f32 %v4506, 1.442695
        %v4743 = vpow.pop %v4742
        %v4744 = vmul.f32 %v4507, 1.442695
        %v4745 = vpow.pop %v4744
        %v4746 = vmul.f32 %v4508, 1.442695
        %v4747 = vpow.pop %v4746
        %v4748 = vmul.f32 %v4509, 1.442695
        %v4749 = vpow.pop %v4748
        %v4750 = vmul.f32 %v4510, 1.442695
        %v4751 = vpow.pop %v4750
        %v4752 = vmul.f32 %v4511, 1.442695
        %v4753 = vpow.pop %v4752
        %v4754 = vmul.f32 %v4512, 1.442695
        %v4755 = vpow.pop %v4754
        %v4756 = vmul.f32 %v4513, 1.442695
        %v4757 = vpow.pop %v4756
        %v4758 = vmul.f32 %v4514, 1.442695
        %v4759 = vpow.pop %v4758
        %v4760 = vmul.f32 %v4515, 1.442695
        %v4761 = vpow.pop %v4760
        %v4762 = vmul.f32 %v4516, 1.442695
        %v4763 = vpow.pop %v4762
        %v4764 = vmul.f32 %v4517, 1.442695
        %v4765 = vpow.pop %v4764
        %v4766 = vmul.f32 %v4518, 1.442695
        %v4767 = vpow.pop %v4766
        %v4768 = vmul.f32 %v4519, 1.442695
        %v4769 = vpow.pop %v4768
        %v4770 = vmul.f32 %v4520, 1.442695
        %v4771 = vpow.pop %v4770
        %v4772 = vmul.f32 %v4521, 1.442695
        %v4773 = vpow.pop %v4772
        %v4774 = vmul.f32 %v4522, 1.442695
        %v4775 = vpow.pop %v4774
        %v4776 = vmul.f32 %v4523, 1.442695
        %v4777 = vpow.pop %v4776
        %v4778 = vmul.f32 %v4524, 1.442695
        %v4779 = vpow.pop %v4778
        %v4780 = vmul.f32 %v4525, 1.442695
        %v4781 = vpow.pop %v4780
        %v4782 = vsel %vm3696, %v4527, 0.0
        %4783 = vadd.xlane.f32.xlu0 %v4782
        %v4784 = vpop.xlane.xlu0 %4783
        %v4785 = vsel %vm3696, %v4529, 0.0
        %4786 = vadd.xlane.f32.xlu0 %v4785
        %v4787 = vpop.xlane.xlu0 %4786
        %v4788 = vsel %vm3696, %v4531, 0.0
        %4789 = vadd.xlane.f32.xlu0 %v4788
        %v4790 = vpop.xlane.xlu0 %4789
        %v4791 = vsel %vm3696, %v4533, 0.0
        %4792 = vadd.xlane.f32.xlu0 %v4791
        %v4793 = vpop.xlane.xlu0 %4792
        %v4794 = vsel %vm3696, %v4535, 0.0
        %4795 = vadd.xlane.f32.xlu0 %v4794
        %v4796 = vpop.xlane.xlu0 %4795
        %v4797 = vsel %vm3696, %v4537, 0.0
        %4798 = vadd.xlane.f32.xlu0 %v4797
        %v4799 = vpop.xlane.xlu0 %4798
        %v4800 = vsel %vm3696, %v4539, 0.0
        %4801 = vadd.xlane.f32.xlu0 %v4800
        %v4802 = vpop.xlane.xlu0 %4801
        %v4803 = vsel %vm3696, %v4541, 0.0
        %4804 = vadd.xlane.f32.xlu0 %v4803
        %v4805 = vpop.xlane.xlu0 %4804
        %v4806 = vsel %vm3696, %v4543, 0.0
        %4807 = vadd.xlane.f32.xlu0 %v4806
        %v4808 = vpop.xlane.xlu0 %4807
        %v4809 = vsel %vm3696, %v4545, 0.0
        %4810 = vadd.xlane.f32.xlu0 %v4809
        %v4811 = vpop.xlane.xlu0 %4810
        %v4812 = vsel %vm3696, %v4547, 0.0
        %4813 = vadd.xlane.f32.xlu0 %v4812
        %v4814 = vpop.xlane.xlu0 %4813
        %v4815 = vsel %vm3696, %v4549, 0.0
        %4816 = vadd.xlane.f32.xlu0 %v4815
        %v4817 = vpop.xlane.xlu0 %4816
        %v4818 = vsel %vm3696, %v4551, 0.0
        %4819 = vadd.xlane.f32.xlu0 %v4818
        %v4820 = vpop.xlane.xlu0 %4819
        %v4821 = vsel %vm3696, %v4553, 0.0
        %4822 = vadd.xlane.f32.xlu0 %v4821
        %v4823 = vpop.xlane.xlu0 %4822
        %v4824 = vsel %vm3696, %v4555, 0.0
        %4825 = vadd.xlane.f32.xlu0 %v4824
        %v4826 = vpop.xlane.xlu0 %4825
        %v4827 = vsel %vm3696, %v4557, 0.0
        %4828 = vadd.xlane.f32.xlu0 %v4827
        %v4829 = vpop.xlane.xlu0 %4828
        %v4830 = vsel %vm3696, %v4559, 0.0
        %4831 = vadd.xlane.f32.xlu0 %v4830
        %v4832 = vpop.xlane.xlu0 %4831
        %v4833 = vsel %vm3696, %v4561, 0.0
        %4834 = vadd.xlane.f32.xlu0 %v4833
        %v4835 = vpop.xlane.xlu0 %4834
        %v4836 = vsel %vm3696, %v4563, 0.0
        %4837 = vadd.xlane.f32.xlu0 %v4836
        %v4838 = vpop.xlane.xlu0 %4837
        %v4839 = vsel %vm3696, %v4565, 0.0
        %4840 = vadd.xlane.f32.xlu0 %v4839
        %v4841 = vpop.xlane.xlu0 %4840
        %v4842 = vsel %vm3696, %v4567, 0.0
        %4843 = vadd.xlane.f32.xlu0 %v4842
        %v4844 = vpop.xlane.xlu0 %4843
        %v4845 = vsel %vm3696, %v4569, 0.0
        %4846 = vadd.xlane.f32.xlu0 %v4845
        %v4847 = vpop.xlane.xlu0 %4846
        %v4848 = vsel %vm3696, %v4571, 0.0
        %4849 = vadd.xlane.f32.xlu0 %v4848
        %v4850 = vpop.xlane.xlu0 %4849
        %v4851 = vsel %vm3696, %v4573, 0.0
        %4852 = vadd.xlane.f32.xlu0 %v4851
        %v4853 = vpop.xlane.xlu0 %4852
        %v4854 = vsel %vm3696, %v4575, 0.0
        %4855 = vadd.xlane.f32.xlu0 %v4854
        %v4856 = vpop.xlane.xlu0 %4855
        %v4857 = vsel %vm3696, %v4577, 0.0
        %4858 = vadd.xlane.f32.xlu0 %v4857
        %v4859 = vpop.xlane.xlu0 %4858
        %v4860 = vsel %vm3696, %v4579, 0.0
        %4861 = vadd.xlane.f32.xlu0 %v4860
        %v4862 = vpop.xlane.xlu0 %4861
        %v4863 = vsel %vm3696, %v4581, 0.0
        %4864 = vadd.xlane.f32.xlu0 %v4863
        %v4865 = vpop.xlane.xlu0 %4864
        %v4866 = vsel %vm3696, %v4583, 0.0
        %4867 = vadd.xlane.f32.xlu0 %v4866
        %v4868 = vpop.xlane.xlu0 %4867
        %v4869 = vsel %vm3696, %v4585, 0.0
        %4870 = vadd.xlane.f32.xlu0 %v4869
        %v4871 = vpop.xlane.xlu0 %4870
        %v4872 = vsel %vm3696, %v4587, 0.0
        %4873 = vadd.xlane.f32.xlu0 %v4872
        %v4874 = vpop.xlane.xlu0 %4873
        %v4875 = vsel %vm3696, %v4589, 0.0
        %4876 = vadd.xlane.f32.xlu0 %v4875
        %v4877 = vpop.xlane.xlu0 %4876
        %v4878 = vsel %vm3696, %v4591, 0.0
        %4879 = vadd.xlane.f32.xlu0 %v4878
        %v4880 = vpop.xlane.xlu0 %4879
        %v4881 = vsel %vm3696, %v4593, 0.0
        %4882 = vadd.xlane.f32.xlu0 %v4881
        %v4883 = vpop.xlane.xlu0 %4882
        %v4884 = vsel %vm3696, %v4595, 0.0
        %4885 = vadd.xlane.f32.xlu0 %v4884
        %v4886 = vpop.xlane.xlu0 %4885
        %v4887 = vsel %vm3696, %v4597, 0.0
        %4888 = vadd.xlane.f32.xlu0 %v4887
        %v4889 = vpop.xlane.xlu0 %4888
        %v4890 = vsel %vm3696, %v4599, 0.0
        %4891 = vadd.xlane.f32.xlu0 %v4890
        %v4892 = vpop.xlane.xlu0 %4891
        %v4893 = vsel %vm3696, %v4601, 0.0
        %4894 = vadd.xlane.f32.xlu0 %v4893
        %v4895 = vpop.xlane.xlu0 %4894
        %v4896 = vsel %vm3696, %v4603, 0.0
        %4897 = vadd.xlane.f32.xlu0 %v4896
        %v4898 = vpop.xlane.xlu0 %4897
        %v4899 = vsel %vm3696, %v4605, 0.0
        %4900 = vadd.xlane.f32.xlu0 %v4899
        %v4901 = vpop.xlane.xlu0 %4900
        %v4902 = vsel %vm3696, %v4607, 0.0
        %4903 = vadd.xlane.f32.xlu0 %v4902
        %v4904 = vpop.xlane.xlu0 %4903
        %v4905 = vsel %vm3696, %v4609, 0.0
        %4906 = vadd.xlane.f32.xlu0 %v4905
        %v4907 = vpop.xlane.xlu0 %4906
        %v4908 = vsel %vm3696, %v4611, 0.0
        %4909 = vadd.xlane.f32.xlu0 %v4908
        %v4910 = vpop.xlane.xlu0 %4909
        %v4911 = vsel %vm3696, %v4613, 0.0
        %4912 = vadd.xlane.f32.xlu0 %v4911
        %v4913 = vpop.xlane.xlu0 %4912
        %v4914 = vsel %vm3696, %v4615, 0.0
        %4915 = vadd.xlane.f32.xlu0 %v4914
        %v4916 = vpop.xlane.xlu0 %4915
        %v4917 = vsel %vm3696, %v4617, 0.0
        %4918 = vadd.xlane.f32.xlu0 %v4917
        %v4919 = vpop.xlane.xlu0 %4918
        %v4920 = vsel %vm3696, %v4619, 0.0
        %4921 = vadd.xlane.f32.xlu0 %v4920
        %v4922 = vpop.xlane.xlu0 %4921
        %v4923 = vsel %vm3696, %v4621, 0.0
        %4924 = vadd.xlane.f32.xlu0 %v4923
        %v4925 = vpop.xlane.xlu0 %4924
        %v4926 = vsel %vm3696, %v4623, 0.0
        %4927 = vadd.xlane.f32.xlu0 %v4926
        %v4928 = vpop.xlane.xlu0 %4927
        %v4929 = vsel %vm3696, %v4625, 0.0
        %4930 = vadd.xlane.f32.xlu0 %v4929
        %v4931 = vpop.xlane.xlu0 %4930
        %v4932 = vsel %vm3696, %v4627, 0.0
        %4933 = vadd.xlane.f32.xlu0 %v4932
        %v4934 = vpop.xlane.xlu0 %4933
        %v4935 = vsel %vm3696, %v4629, 0.0
        %4936 = vadd.xlane.f32.xlu0 %v4935
        %v4937 = vpop.xlane.xlu0 %4936
        %v4938 = vsel %vm3696, %v4631, 0.0
        %4939 = vadd.xlane.f32.xlu0 %v4938
        %v4940 = vpop.xlane.xlu0 %4939
        %v4941 = vsel %vm3696, %v4633, 0.0
        %4942 = vadd.xlane.f32.xlu0 %v4941
        %v4943 = vpop.xlane.xlu0 %4942
        %v4944 = vsel %vm3696, %v4635, 0.0
        %4945 = vadd.xlane.f32.xlu0 %v4944
        %v4946 = vpop.xlane.xlu0 %4945
        %v4947 = vsel %vm3696, %v4637, 0.0
        %4948 = vadd.xlane.f32.xlu0 %v4947
        %v4949 = vpop.xlane.xlu0 %4948
        %v4950 = vsel %vm3696, %v4639, 0.0
        %4951 = vadd.xlane.f32.xlu0 %v4950
        %v4952 = vpop.xlane.xlu0 %4951
        %v4953 = vsel %vm3696, %v4641, 0.0
        %4954 = vadd.xlane.f32.xlu0 %v4953
        %v4955 = vpop.xlane.xlu0 %4954
        %v4956 = vsel %vm3696, %v4643, 0.0
        %4957 = vadd.xlane.f32.xlu0 %v4956
        %v4958 = vpop.xlane.xlu0 %4957
        %v4959 = vsel %vm3696, %v4645, 0.0
        %4960 = vadd.xlane.f32.xlu0 %v4959
        %v4961 = vpop.xlane.xlu0 %4960
        %v4962 = vsel %vm3696, %v4647, 0.0
        %4963 = vadd.xlane.f32.xlu0 %v4962
        %v4964 = vpop.xlane.xlu0 %4963
        %v4965 = vsel %vm3696, %v4649, 0.0
        %4966 = vadd.xlane.f32.xlu0 %v4965
        %v4967 = vpop.xlane.xlu0 %4966
        %v4968 = vsel %vm3696, %v4651, 0.0
        %4969 = vadd.xlane.f32.xlu0 %v4968
        %v4970 = vpop.xlane.xlu0 %4969
        %v4971 = vsel %vm3696, %v4653, 0.0
        %4972 = vadd.xlane.f32.xlu0 %v4971
        %v4973 = vpop.xlane.xlu0 %4972
        %v4974 = vsel %vm3696, %v4655, 0.0
        %4975 = vadd.xlane.f32.xlu0 %v4974
        %v4976 = vpop.xlane.xlu0 %4975
        %v4977 = vsel %vm3696, %v4657, 0.0
        %4978 = vadd.xlane.f32.xlu0 %v4977
        %v4979 = vpop.xlane.xlu0 %4978
        %v4980 = vsel %vm3696, %v4659, 0.0
        %4981 = vadd.xlane.f32.xlu0 %v4980
        %v4982 = vpop.xlane.xlu0 %4981
        %v4983 = vsel %vm3696, %v4661, 0.0
        %4984 = vadd.xlane.f32.xlu0 %v4983
        %v4985 = vpop.xlane.xlu0 %4984
        %v4986 = vsel %vm3696, %v4663, 0.0
        %4987 = vadd.xlane.f32.xlu0 %v4986
        %v4988 = vpop.xlane.xlu0 %4987
        %v4989 = vsel %vm3696, %v4665, 0.0
        %4990 = vadd.xlane.f32.xlu0 %v4989
        %v4991 = vpop.xlane.xlu0 %4990
        %v4992 = vsel %vm3696, %v4667, 0.0
        %4993 = vadd.xlane.f32.xlu0 %v4992
        %v4994 = vpop.xlane.xlu0 %4993
        %v4995 = vsel %vm3696, %v4669, 0.0
        %4996 = vadd.xlane.f32.xlu0 %v4995
        %v4997 = vpop.xlane.xlu0 %4996
        %v4998 = vsel %vm3696, %v4671, 0.0
        %4999 = vadd.xlane.f32.xlu0 %v4998
        %v5000 = vpop.xlane.xlu0 %4999
        %v5001 = vsel %vm3696, %v4673, 0.0
        %5002 = vadd.xlane.f32.xlu0 %v5001
        %v5003 = vpop.xlane.xlu0 %5002
        %v5004 = vsel %vm3696, %v4675, 0.0
        %5005 = vadd.xlane.f32.xlu0 %v5004
        %v5006 = vpop.xlane.xlu0 %5005
        %v5007 = vsel %vm3696, %v4677, 0.0
        %5008 = vadd.xlane.f32.xlu0 %v5007
        %v5009 = vpop.xlane.xlu0 %5008
        %v5010 = vsel %vm3696, %v4679, 0.0
        %5011 = vadd.xlane.f32.xlu0 %v5010
        %v5012 = vpop.xlane.xlu0 %5011
        %v5013 = vsel %vm3696, %v4681, 0.0
        %5014 = vadd.xlane.f32.xlu0 %v5013
        %v5015 = vpop.xlane.xlu0 %5014
        %v5016 = vsel %vm3696, %v4683, 0.0
        %5017 = vadd.xlane.f32.xlu0 %v5016
        %v5018 = vpop.xlane.xlu0 %5017
        %v5019 = vsel %vm3696, %v4685, 0.0
        %5020 = vadd.xlane.f32.xlu0 %v5019
        %v5021 = vpop.xlane.xlu0 %5020
        %v5022 = vsel %vm3696, %v4687, 0.0
        %5023 = vadd.xlane.f32.xlu0 %v5022
        %v5024 = vpop.xlane.xlu0 %5023
        %v5025 = vsel %vm3696, %v4689, 0.0
        %5026 = vadd.xlane.f32.xlu0 %v5025
        %v5027 = vpop.xlane.xlu0 %5026
        %v5028 = vsel %vm3696, %v4691, 0.0
        %5029 = vadd.xlane.f32.xlu0 %v5028
        %v5030 = vpop.xlane.xlu0 %5029
        %v5031 = vsel %vm3696, %v4693, 0.0
        %5032 = vadd.xlane.f32.xlu0 %v5031
        %v5033 = vpop.xlane.xlu0 %5032
        %v5034 = vsel %vm3696, %v4695, 0.0
        %5035 = vadd.xlane.f32.xlu0 %v5034
        %v5036 = vpop.xlane.xlu0 %5035
        %v5037 = vsel %vm3696, %v4697, 0.0
        %5038 = vadd.xlane.f32.xlu0 %v5037
        %v5039 = vpop.xlane.xlu0 %5038
        %v5040 = vsel %vm3696, %v4699, 0.0
        %5041 = vadd.xlane.f32.xlu0 %v5040
        %v5042 = vpop.xlane.xlu0 %5041
        %v5043 = vsel %vm3696, %v4701, 0.0
        %5044 = vadd.xlane.f32.xlu0 %v5043
        %v5045 = vpop.xlane.xlu0 %5044
        %v5046 = vsel %vm3696, %v4703, 0.0
        %5047 = vadd.xlane.f32.xlu0 %v5046
        %v5048 = vpop.xlane.xlu0 %5047
        %v5049 = vsel %vm3696, %v4705, 0.0
        %5050 = vadd.xlane.f32.xlu0 %v5049
        %v5051 = vpop.xlane.xlu0 %5050
        %v5052 = vsel %vm3696, %v4707, 0.0
        %5053 = vadd.xlane.f32.xlu0 %v5052
        %v5054 = vpop.xlane.xlu0 %5053
        %v5055 = vsel %vm3696, %v4709, 0.0
        %5056 = vadd.xlane.f32.xlu0 %v5055
        %v5057 = vpop.xlane.xlu0 %5056
        %v5058 = vsel %vm3696, %v4711, 0.0
        %5059 = vadd.xlane.f32.xlu0 %v5058
        %v5060 = vpop.xlane.xlu0 %5059
        %v5061 = vsel %vm3696, %v4713, 0.0
        %5062 = vadd.xlane.f32.xlu0 %v5061
        %v5063 = vpop.xlane.xlu0 %5062
        %v5064 = vsel %vm3696, %v4715, 0.0
        %5065 = vadd.xlane.f32.xlu0 %v5064
        %v5066 = vpop.xlane.xlu0 %5065
        %v5067 = vsel %vm3696, %v4717, 0.0
        %5068 = vadd.xlane.f32.xlu0 %v5067
        %v5069 = vpop.xlane.xlu0 %5068
        %v5070 = vsel %vm3696, %v4719, 0.0
        %5071 = vadd.xlane.f32.xlu0 %v5070
        %v5072 = vpop.xlane.xlu0 %5071
        %v5073 = vsel %vm3696, %v4721, 0.0
        %5074 = vadd.xlane.f32.xlu0 %v5073
        %v5075 = vpop.xlane.xlu0 %5074
        %v5076 = vsel %vm3696, %v4723, 0.0
        %5077 = vadd.xlane.f32.xlu0 %v5076
        %v5078 = vpop.xlane.xlu0 %5077
        %v5079 = vsel %vm3696, %v4725, 0.0
        %5080 = vadd.xlane.f32.xlu0 %v5079
        %v5081 = vpop.xlane.xlu0 %5080
        %v5082 = vsel %vm3696, %v4727, 0.0
        %5083 = vadd.xlane.f32.xlu0 %v5082
        %v5084 = vpop.xlane.xlu0 %5083
        %v5085 = vsel %vm3696, %v4729, 0.0
        %5086 = vadd.xlane.f32.xlu0 %v5085
        %v5087 = vpop.xlane.xlu0 %5086
        %v5088 = vsel %vm3696, %v4731, 0.0
        %5089 = vadd.xlane.f32.xlu0 %v5088
        %v5090 = vpop.xlane.xlu0 %5089
        %v5091 = vsel %vm3696, %v4733, 0.0
        %5092 = vadd.xlane.f32.xlu0 %v5091
        %v5093 = vpop.xlane.xlu0 %5092
        %v5094 = vsel %vm3696, %v4735, 0.0
        %5095 = vadd.xlane.f32.xlu0 %v5094
        %v5096 = vpop.xlane.xlu0 %5095
        %v5097 = vsel %vm3696, %v4737, 0.0
        %5098 = vadd.xlane.f32.xlu0 %v5097
        %v5099 = vpop.xlane.xlu0 %5098
        %v5100 = vsel %vm3696, %v4739, 0.0
        %5101 = vadd.xlane.f32.xlu0 %v5100
        %v5102 = vpop.xlane.xlu0 %5101
        %v5103 = vsel %vm3696, %v4741, 0.0
        %5104 = vadd.xlane.f32.xlu0 %v5103
        %v5105 = vpop.xlane.xlu0 %5104
        %v5106 = vsel %vm3696, %v4743, 0.0
        %5107 = vadd.xlane.f32.xlu0 %v5106
        %v5108 = vpop.xlane.xlu0 %5107
        %v5109 = vsel %vm3696, %v4745, 0.0
        %5110 = vadd.xlane.f32.xlu0 %v5109
        %v5111 = vpop.xlane.xlu0 %5110
        %v5112 = vsel %vm3696, %v4747, 0.0
        %5113 = vadd.xlane.f32.xlu0 %v5112
        %v5114 = vpop.xlane.xlu0 %5113
        %v5115 = vsel %vm3696, %v4749, 0.0
        %5116 = vadd.xlane.f32.xlu0 %v5115
        %v5117 = vpop.xlane.xlu0 %5116
        %v5118 = vsel %vm3696, %v4751, 0.0
        %5119 = vadd.xlane.f32.xlu0 %v5118
        %v5120 = vpop.xlane.xlu0 %5119
        %v5121 = vsel %vm3696, %v4753, 0.0
        %5122 = vadd.xlane.f32.xlu0 %v5121
        %v5123 = vpop.xlane.xlu0 %5122
        %v5124 = vsel %vm3696, %v4755, 0.0
        %5125 = vadd.xlane.f32.xlu0 %v5124
        %v5126 = vpop.xlane.xlu0 %5125
        %v5127 = vsel %vm3696, %v4757, 0.0
        %5128 = vadd.xlane.f32.xlu0 %v5127
        %v5129 = vpop.xlane.xlu0 %5128
        %v5130 = vsel %vm3696, %v4759, 0.0
        %5131 = vadd.xlane.f32.xlu0 %v5130
        %v5132 = vpop.xlane.xlu0 %5131
        %v5133 = vsel %vm3696, %v4761, 0.0
        %5134 = vadd.xlane.f32.xlu0 %v5133
        %v5135 = vpop.xlane.xlu0 %5134
        %v5136 = vsel %vm3696, %v4763, 0.0
        %5137 = vadd.xlane.f32.xlu0 %v5136
        %v5138 = vpop.xlane.xlu0 %5137
        %v5139 = vsel %vm3696, %v4765, 0.0
        %5140 = vadd.xlane.f32.xlu0 %v5139
        %v5141 = vpop.xlane.xlu0 %5140
        %v5142 = vsel %vm3696, %v4767, 0.0
        %5143 = vadd.xlane.f32.xlu0 %v5142
        %v5144 = vpop.xlane.xlu0 %5143
        %v5145 = vsel %vm3696, %v4769, 0.0
        %5146 = vadd.xlane.f32.xlu0 %v5145
        %v5147 = vpop.xlane.xlu0 %5146
        %v5148 = vsel %vm3696, %v4771, 0.0
        %5149 = vadd.xlane.f32.xlu0 %v5148
        %v5150 = vpop.xlane.xlu0 %5149
        %v5151 = vsel %vm3696, %v4773, 0.0
        %5152 = vadd.xlane.f32.xlu0 %v5151
        %v5153 = vpop.xlane.xlu0 %5152
        %v5154 = vsel %vm3696, %v4775, 0.0
        %5155 = vadd.xlane.f32.xlu0 %v5154
        %v5156 = vpop.xlane.xlu0 %5155
        %v5157 = vsel %vm3696, %v4777, 0.0
        %5158 = vadd.xlane.f32.xlu0 %v5157
        %v5159 = vpop.xlane.xlu0 %5158
        %v5160 = vsel %vm3696, %v4779, 0.0
        %5161 = vadd.xlane.f32.xlu0 %v5160
        %v5162 = vpop.xlane.xlu0 %5161
        %v5163 = vsel %vm3696, %v4781, 0.0
        %5164 = vadd.xlane.f32.xlu0 %v5163
        %v5165 = vpop.xlane.xlu0 %5164
        %v5166 = vrcp.pop %v4784
        %v5167 = vrcp.pop %v4787
        %v5168 = vrcp.pop %v4790
        %v5169 = vrcp.pop %v4793
        %v5170 = vrcp.pop %v4796
        %v5171 = vrcp.pop %v4799
        %v5172 = vrcp.pop %v4802
        %v5173 = vrcp.pop %v4805
        %v5174 = vrcp.pop %v4808
        %v5175 = vrcp.pop %v4811
        %v5176 = vrcp.pop %v4814
        %v5177 = vrcp.pop %v4817
        %v5178 = vrcp.pop %v4820
        %v5179 = vrcp.pop %v4823
        %v5180 = vrcp.pop %v4826
        %v5181 = vrcp.pop %v4829
        %v5182 = vrcp.pop %v4832
        %v5183 = vrcp.pop %v4835
        %v5184 = vrcp.pop %v4838
        %v5185 = vrcp.pop %v4841
        %v5186 = vrcp.pop %v4844
        %v5187 = vrcp.pop %v4847
        %v5188 = vrcp.pop %v4850
        %v5189 = vrcp.pop %v4853
        %v5190 = vrcp.pop %v4856
        %v5191 = vrcp.pop %v4859
        %v5192 = vrcp.pop %v4862
        %v5193 = vrcp.pop %v4865
        %v5194 = vrcp.pop %v4868
        %v5195 = vrcp.pop %v4871
        %v5196 = vrcp.pop %v4874
        %v5197 = vrcp.pop %v4877
        %v5198 = vrcp.pop %v4880
        %v5199 = vrcp.pop %v4883
        %v5200 = vrcp.pop %v4886
        %v5201 = vrcp.pop %v4889
        %v5202 = vrcp.pop %v4892
        %v5203 = vrcp.pop %v4895
        %v5204 = vrcp.pop %v4898
        %v5205 = vrcp.pop %v4901
        %v5206 = vrcp.pop %v4904
        %v5207 = vrcp.pop %v4907
        %v5208 = vrcp.pop %v4910
        %v5209 = vrcp.pop %v4913
        %v5210 = vrcp.pop %v4916
        %v5211 = vrcp.pop %v4919
        %v5212 = vrcp.pop %v4922
        %v5213 = vrcp.pop %v4925
        %v5214 = vrcp.pop %v4928
        %v5215 = vrcp.pop %v4931
        %v5216 = vrcp.pop %v4934
        %v5217 = vrcp.pop %v4937
        %v5218 = vrcp.pop %v4940
        %v5219 = vrcp.pop %v4943
        %v5220 = vrcp.pop %v4946
        %v5221 = vrcp.pop %v4949
        %v5222 = vrcp.pop %v4952
        %v5223 = vrcp.pop %v4955
        %v5224 = vrcp.pop %v4958
        %v5225 = vrcp.pop %v4961
        %v5226 = vrcp.pop %v4964
        %v5227 = vrcp.pop %v4967
        %v5228 = vrcp.pop %v4970
        %v5229 = vrcp.pop %v4973
        %v5230 = vrcp.pop %v4976
        %v5231 = vrcp.pop %v4979
        %v5232 = vrcp.pop %v4982
        %v5233 = vrcp.pop %v4985
        %v5234 = vrcp.pop %v4988
        %v5235 = vrcp.pop %v4991
        %v5236 = vrcp.pop %v4994
        %v5237 = vrcp.pop %v4997
        %v5238 = vrcp.pop %v5000
        %v5239 = vrcp.pop %v5003
        %v5240 = vrcp.pop %v5006
        %v5241 = vrcp.pop %v5009
        %v5242 = vrcp.pop %v5012
        %v5243 = vrcp.pop %v5015
        %v5244 = vrcp.pop %v5018
        %v5245 = vrcp.pop %v5021
        %v5246 = vrcp.pop %v5024
        %v5247 = vrcp.pop %v5027
        %v5248 = vrcp.pop %v5030
        %v5249 = vrcp.pop %v5033
        %v5250 = vrcp.pop %v5036
        %v5251 = vrcp.pop %v5039
        %v5252 = vrcp.pop %v5042
        %v5253 = vrcp.pop %v5045
        %v5254 = vrcp.pop %v5048
        %v5255 = vrcp.pop %v5051
        %v5256 = vrcp.pop %v5054
        %v5257 = vrcp.pop %v5057
        %v5258 = vrcp.pop %v5060
        %v5259 = vrcp.pop %v5063
        %v5260 = vrcp.pop %v5066
        %v5261 = vrcp.pop %v5069
        %v5262 = vrcp.pop %v5072
        %v5263 = vrcp.pop %v5075
        %v5264 = vrcp.pop %v5078
        %v5265 = vrcp.pop %v5081
        %v5266 = vrcp.pop %v5084
        %v5267 = vrcp.pop %v5087
        %v5268 = vrcp.pop %v5090
        %v5269 = vrcp.pop %v5093
        %v5270 = vrcp.pop %v5096
        %v5271 = vrcp.pop %v5099
        %v5272 = vrcp.pop %v5102
        %v5273 = vrcp.pop %v5105
        %v5274 = vrcp.pop %v5108
        %v5275 = vrcp.pop %v5111
        %v5276 = vrcp.pop %v5114
        %v5277 = vrcp.pop %v5117
        %v5278 = vrcp.pop %v5120
        %v5279 = vrcp.pop %v5123
        %v5280 = vrcp.pop %v5126
        %v5281 = vrcp.pop %v5129
        %v5282 = vrcp.pop %v5132
        %v5283 = vrcp.pop %v5135
        %v5284 = vrcp.pop %v5138
        %v5285 = vrcp.pop %v5141
        %v5286 = vrcp.pop %v5144
        %v5287 = vrcp.pop %v5147
        %v5288 = vrcp.pop %v5150
        %v5289 = vrcp.pop %v5153
        %v5290 = vrcp.pop %v5156
        %v5291 = vrcp.pop %v5159
        %v5292 = vrcp.pop %v5162
        %v5293 = vrcp.pop %v5165
        %v5294 = vmul.f32 %v4527, %v5166
        %v5295 = vmul.f32 %v4529, %v5167
        %v5296 = vmul.f32 %v4531, %v5168
        %v5297 = vmul.f32 %v4533, %v5169
        %v5298 = vmul.f32 %v4535, %v5170
        %v5299 = vmul.f32 %v4537, %v5171
        %v5300 = vmul.f32 %v4539, %v5172
        %v5301 = vmul.f32 %v4541, %v5173
        %v5302 = vmul.f32 %v4543, %v5174
        %v5303 = vmul.f32 %v4545, %v5175
        %v5304 = vmul.f32 %v4547, %v5176
        %v5305 = vmul.f32 %v4549, %v5177
        %v5306 = vmul.f32 %v4551, %v5178
        %v5307 = vmul.f32 %v4553, %v5179
        %v5308 = vmul.f32 %v4555, %v5180
        %v5309 = vmul.f32 %v4557, %v5181
        %v5310 = vmul.f32 %v4559, %v5182
        %v5311 = vmul.f32 %v4561, %v5183
        %v5312 = vmul.f32 %v4563, %v5184
        %v5313 = vmul.f32 %v4565, %v5185
        %v5314 = vmul.f32 %v4567, %v5186
        %v5315 = vmul.f32 %v4569, %v5187
        %v5316 = vmul.f32 %v4571, %v5188
        %v5317 = vmul.f32 %v4573, %v5189
        %v5318 = vmul.f32 %v4575, %v5190
        %v5319 = vmul.f32 %v4577, %v5191
        %v5320 = vmul.f32 %v4579, %v5192
        %v5321 = vmul.f32 %v4581, %v5193
        %v5322 = vmul.f32 %v4583, %v5194
        %v5323 = vmul.f32 %v4585, %v5195
        %v5324 = vmul.f32 %v4587, %v5196
        %v5325 = vmul.f32 %v4589, %v5197
        %v5326 = vmul.f32 %v4591, %v5198
        %v5327 = vmul.f32 %v4593, %v5199
        %v5328 = vmul.f32 %v4595, %v5200
        %v5329 = vmul.f32 %v4597, %v5201
        %v5330 = vmul.f32 %v4599, %v5202
        %v5331 = vmul.f32 %v4601, %v5203
        %v5332 = vmul.f32 %v4603, %v5204
        %v5333 = vmul.f32 %v4605, %v5205
        %v5334 = vmul.f32 %v4607, %v5206
        %v5335 = vmul.f32 %v4609, %v5207
        %v5336 = vmul.f32 %v4611, %v5208
        %v5337 = vmul.f32 %v4613, %v5209
        %v5338 = vmul.f32 %v4615, %v5210
        %v5339 = vmul.f32 %v4617, %v5211
        %v5340 = vmul.f32 %v4619, %v5212
        %v5341 = vmul.f32 %v4621, %v5213
        %v5342 = vmul.f32 %v4623, %v5214
        %v5343 = vmul.f32 %v4625, %v5215
        %v5344 = vmul.f32 %v4627, %v5216
        %v5345 = vmul.f32 %v4629, %v5217
        %v5346 = vmul.f32 %v4631, %v5218
        %v5347 = vmul.f32 %v4633, %v5219
        %v5348 = vmul.f32 %v4635, %v5220
        %v5349 = vmul.f32 %v4637, %v5221
        %v5350 = vmul.f32 %v4639, %v5222
        %v5351 = vmul.f32 %v4641, %v5223
        %v5352 = vmul.f32 %v4643, %v5224
        %v5353 = vmul.f32 %v4645, %v5225
        %v5354 = vmul.f32 %v4647, %v5226
        %v5355 = vmul.f32 %v4649, %v5227
        %v5356 = vmul.f32 %v4651, %v5228
        %v5357 = vmul.f32 %v4653, %v5229
        %v5358 = vmul.f32 %v4655, %v5230
        %v5359 = vmul.f32 %v4657, %v5231
        %v5360 = vmul.f32 %v4659, %v5232
        %v5361 = vmul.f32 %v4661, %v5233
        %v5362 = vmul.f32 %v4663, %v5234
        %v5363 = vmul.f32 %v4665, %v5235
        %v5364 = vmul.f32 %v4667, %v5236
        %v5365 = vmul.f32 %v4669, %v5237
        %v5366 = vmul.f32 %v4671, %v5238
        %v5367 = vmul.f32 %v4673, %v5239
        %v5368 = vmul.f32 %v4675, %v5240
        %v5369 = vmul.f32 %v4677, %v5241
        %v5370 = vmul.f32 %v4679, %v5242
        %v5371 = vmul.f32 %v4681, %v5243
        %v5372 = vmul.f32 %v4683, %v5244
        %v5373 = vmul.f32 %v4685, %v5245
        %v5374 = vmul.f32 %v4687, %v5246
        %v5375 = vmul.f32 %v4689, %v5247
        %v5376 = vmul.f32 %v4691, %v5248
        %v5377 = vmul.f32 %v4693, %v5249
        %v5378 = vmul.f32 %v4695, %v5250
        %v5379 = vmul.f32 %v4697, %v5251
        %v5380 = vmul.f32 %v4699, %v5252
        %v5381 = vmul.f32 %v4701, %v5253
        %v5382 = vmul.f32 %v4703, %v5254
        %v5383 = vmul.f32 %v4705, %v5255
        %v5384 = vmul.f32 %v4707, %v5256
        %v5385 = vmul.f32 %v4709, %v5257
        %v5386 = vmul.f32 %v4711, %v5258
        %v5387 = vmul.f32 %v4713, %v5259
        %v5388 = vmul.f32 %v4715, %v5260
        %v5389 = vmul.f32 %v4717, %v5261
        %v5390 = vmul.f32 %v4719, %v5262
        %v5391 = vmul.f32 %v4721, %v5263
        %v5392 = vmul.f32 %v4723, %v5264
        %v5393 = vmul.f32 %v4725, %v5265
        %v5394 = vmul.f32 %v4727, %v5266
        %v5395 = vmul.f32 %v4729, %v5267
        %v5396 = vmul.f32 %v4731, %v5268
        %v5397 = vmul.f32 %v4733, %v5269
        %v5398 = vmul.f32 %v4735, %v5270
        %v5399 = vmul.f32 %v4737, %v5271
        %v5400 = vmul.f32 %v4739, %v5272
        %v5401 = vmul.f32 %v4741, %v5273
        %v5402 = vmul.f32 %v4743, %v5274
        %v5403 = vmul.f32 %v4745, %v5275
        %v5404 = vmul.f32 %v4747, %v5276
        %v5405 = vmul.f32 %v4749, %v5277
        %v5406 = vmul.f32 %v4751, %v5278
        %v5407 = vmul.f32 %v4753, %v5279
        %v5408 = vmul.f32 %v4755, %v5280
        %v5409 = vmul.f32 %v4757, %v5281
        %v5410 = vmul.f32 %v4759, %v5282
        %v5411 = vmul.f32 %v4761, %v5283
        %v5412 = vmul.f32 %v4763, %v5284
        %v5413 = vmul.f32 %v4765, %v5285
        %v5414 = vmul.f32 %v4767, %v5286
        %v5415 = vmul.f32 %v4769, %v5287
        %v5416 = vmul.f32 %v4771, %v5288
        %v5417 = vmul.f32 %v4773, %v5289
        %v5418 = vmul.f32 %v4775, %v5290
        %v5419 = vmul.f32 %v4777, %v5291
        %v5420 = vmul.f32 %v4779, %v5292
        %v5421 = vmul.f32 %v4781, %v5293
        %5422 = vst.msk [vmem:[%s295] sm:$0xff] %vm3696, %v5294
        %5423 = vst.msk [vmem:[%s295 + $0x8] sm:$0xff] %vm3696, %v5295
        %5424 = vst.msk [vmem:[%s295 + $0x10] sm:$0xff] %vm3696, %v5296
        %5425 = vst.msk [vmem:[%s295 + $0x18] sm:$0xff] %vm3696, %v5297
        %5426 = vst.msk [vmem:[%s295 + $0x20] sm:$0xff] %vm3696, %v5298
        %5427 = vst.msk [vmem:[%s295 + $0x28] sm:$0xff] %vm3696, %v5299
        %5428 = vst.msk [vmem:[%s295 + $0x30] sm:$0xff] %vm3696, %v5300
        %5429 = vst.msk [vmem:[%s295 + $0x38] sm:$0xff] %vm3696, %v5301
        %5430 = vst.msk [vmem:[%s295 + $0x40] sm:$0xff] %vm3696, %v5302
        %5431 = vst.msk [vmem:[%s295 + $0x48] sm:$0xff] %vm3696, %v5303
        %5432 = vst.msk [vmem:[%s295 + $0x50] sm:$0xff] %vm3696, %v5304
        %5433 = vst.msk [vmem:[%s295 + $0x58] sm:$0xff] %vm3696, %v5305
        %5434 = vst.msk [vmem:[%s295 + $0x60] sm:$0xff] %vm3696, %v5306
        %5435 = vst.msk [vmem:[%s295 + $0x68] sm:$0xff] %vm3696, %v5307
        %5436 = vst.msk [vmem:[%s295 + $0x70] sm:$0xff] %vm3696, %v5308
        %5437 = vst.msk [vmem:[%s295 + $0x78] sm:$0xff] %vm3696, %v5309
        %5438 = vst.msk [vmem:[%s295 + $0x80] sm:$0xff] %vm3696, %v5310
        %5439 = vst.msk [vmem:[%s295 + $0x88] sm:$0xff] %vm3696, %v5311
        %5440 = vst.msk [vmem:[%s295 + $0x90] sm:$0xff] %vm3696, %v5312
        %5441 = vst.msk [vmem:[%s295 + $0x98] sm:$0xff] %vm3696, %v5313
        %5442 = vst.msk [vmem:[%s295 + $0xa0] sm:$0xff] %vm3696, %v5314
        %5443 = vst.msk [vmem:[%s295 + $0xa8] sm:$0xff] %vm3696, %v5315
        %5444 = vst.msk [vmem:[%s295 + $0xb0] sm:$0xff] %vm3696, %v5316
        %5445 = vst.msk [vmem:[%s295 + $0xb8] sm:$0xff] %vm3696, %v5317
        %5446 = vst.msk [vmem:[%s295 + $0xc0] sm:$0xff] %vm3696, %v5318
        %5447 = vst.msk [vmem:[%s295 + $0xc8] sm:$0xff] %vm3696, %v5319
        %5448 = vst.msk [vmem:[%s295 + $0xd0] sm:$0xff] %vm3696, %v5320
        %5449 = vst.msk [vmem:[%s295 + $0xd8] sm:$0xff] %vm3696, %v5321
        %5450 = vst.msk [vmem:[%s295 + $0xe0] sm:$0xff] %vm3696, %v5322
        %5451 = vst.msk [vmem:[%s295 + $0xe8] sm:$0xff] %vm3696, %v5323
        %5452 = vst.msk [vmem:[%s295 + $0xf0] sm:$0xff] %vm3696, %v5324
        %5453 = vst.msk [vmem:[%s295 + $0xf8] sm:$0xff] %vm3696, %v5325
        %5454 = vst.msk [vmem:[%s295 + $0x100] sm:$0xff] %vm3696, %v5326
        %5455 = vst.msk [vmem:[%s295 + $0x108] sm:$0xff] %vm3696, %v5327
        %5456 = vst.msk [vmem:[%s295 + $0x110] sm:$0xff] %vm3696, %v5328
        %5457 = vst.msk [vmem:[%s295 + $0x118] sm:$0xff] %vm3696, %v5329
        %5458 = vst.msk [vmem:[%s295 + $0x120] sm:$0xff] %vm3696, %v5330
        %5459 = vst.msk [vmem:[%s295 + $0x128] sm:$0xff] %vm3696, %v5331
        %5460 = vst.msk [vmem:[%s295 + $0x130] sm:$0xff] %vm3696, %v5332
        %5461 = vst.msk [vmem:[%s295 + $0x138] sm:$0xff] %vm3696, %v5333
        %5462 = vst.msk [vmem:[%s295 + $0x140] sm:$0xff] %vm3696, %v5334
        %5463 = vst.msk [vmem:[%s295 + $0x148] sm:$0xff] %vm3696, %v5335
        %5464 = vst.msk [vmem:[%s295 + $0x150] sm:$0xff] %vm3696, %v5336
        %5465 = vst.msk [vmem:[%s295 + $0x158] sm:$0xff] %vm3696, %v5337
        %5466 = vst.msk [vmem:[%s295 + $0x160] sm:$0xff] %vm3696, %v5338
        %5467 = vst.msk [vmem:[%s295 + $0x168] sm:$0xff] %vm3696, %v5339
        %5468 = vst.msk [vmem:[%s295 + $0x170] sm:$0xff] %vm3696, %v5340
        %5469 = vst.msk [vmem:[%s295 + $0x178] sm:$0xff] %vm3696, %v5341
        %5470 = vst.msk [vmem:[%s295 + $0x180] sm:$0xff] %vm3696, %v5342
        %5471 = vst.msk [vmem:[%s295 + $0x188] sm:$0xff] %vm3696, %v5343
        %5472 = vst.msk [vmem:[%s295 + $0x190] sm:$0xff] %vm3696, %v5344
        %5473 = vst.msk [vmem:[%s295 + $0x198] sm:$0xff] %vm3696, %v5345
        %5474 = vst.msk [vmem:[%s295 + $0x1a0] sm:$0xff] %vm3696, %v5346
        %5475 = vst.msk [vmem:[%s295 + $0x1a8] sm:$0xff] %vm3696, %v5347
        %5476 = vst.msk [vmem:[%s295 + $0x1b0] sm:$0xff] %vm3696, %v5348
        %5477 = vst.msk [vmem:[%s295 + $0x1b8] sm:$0xff] %vm3696, %v5349
        %5478 = vst.msk [vmem:[%s295 + $0x1c0] sm:$0xff] %vm3696, %v5350
        %5479 = vst.msk [vmem:[%s295 + $0x1c8] sm:$0xff] %vm3696, %v5351
        %5480 = vst.msk [vmem:[%s295 + $0x1d0] sm:$0xff] %vm3696, %v5352
        %5481 = vst.msk [vmem:[%s295 + $0x1d8] sm:$0xff] %vm3696, %v5353
        %5482 = vst.msk [vmem:[%s295 + $0x1e0] sm:$0xff] %vm3696, %v5354
        %5483 = vst.msk [vmem:[%s295 + $0x1e8] sm:$0xff] %vm3696, %v5355
        %5484 = vst.msk [vmem:[%s295 + $0x1f0] sm:$0xff] %vm3696, %v5356
        %5485 = vst.msk [vmem:[%s295 + $0x1f8] sm:$0xff] %vm3696, %v5357
        %5486 = vst.msk [vmem:[%s295 + $0x200] sm:$0xff] %vm3696, %v5358
        %5487 = vst.msk [vmem:[%s295 + $0x208] sm:$0xff] %vm3696, %v5359
        %5488 = vst.msk [vmem:[%s295 + $0x210] sm:$0xff] %vm3696, %v5360
        %5489 = vst.msk [vmem:[%s295 + $0x218] sm:$0xff] %vm3696, %v5361
        %5490 = vst.msk [vmem:[%s295 + $0x220] sm:$0xff] %vm3696, %v5362
        %5491 = vst.msk [vmem:[%s295 + $0x228] sm:$0xff] %vm3696, %v5363
        %5492 = vst.msk [vmem:[%s295 + $0x230] sm:$0xff] %vm3696, %v5364
        %5493 = vst.msk [vmem:[%s295 + $0x238] sm:$0xff] %vm3696, %v5365
        %5494 = vst.msk [vmem:[%s295 + $0x240] sm:$0xff] %vm3696, %v5366
        %5495 = vst.msk [vmem:[%s295 + $0x248] sm:$0xff] %vm3696, %v5367
        %5496 = vst.msk [vmem:[%s295 + $0x250] sm:$0xff] %vm3696, %v5368
        %5497 = vst.msk [vmem:[%s295 + $0x258] sm:$0xff] %vm3696, %v5369
        %5498 = vst.msk [vmem:[%s295 + $0x260] sm:$0xff] %vm3696, %v5370
        %5499 = vst.msk [vmem:[%s295 + $0x268] sm:$0xff] %vm3696, %v5371
        %5500 = vst.msk [vmem:[%s295 + $0x270] sm:$0xff] %vm3696, %v5372
        %5501 = vst.msk [vmem:[%s295 + $0x278] sm:$0xff] %vm3696, %v5373
        %5502 = vst.msk [vmem:[%s295 + $0x280] sm:$0xff] %vm3696, %v5374
        %5503 = vst.msk [vmem:[%s295 + $0x288] sm:$0xff] %vm3696, %v5375
        %5504 = vst.msk [vmem:[%s295 + $0x290] sm:$0xff] %vm3696, %v5376
        %5505 = vst.msk [vmem:[%s295 + $0x298] sm:$0xff] %vm3696, %v5377
        %5506 = vst.msk [vmem:[%s295 + $0x2a0] sm:$0xff] %vm3696, %v5378
        %5507 = vst.msk [vmem:[%s295 + $0x2a8] sm:$0xff] %vm3696, %v5379
        %5508 = vst.msk [vmem:[%s295 + $0x2b0] sm:$0xff] %vm3696, %v5380
        %5509 = vst.msk [vmem:[%s295 + $0x2b8] sm:$0xff] %vm3696, %v5381
        %5510 = vst.msk [vmem:[%s295 + $0x2c0] sm:$0xff] %vm3696, %v5382
        %5511 = vst.msk [vmem:[%s295 + $0x2c8] sm:$0xff] %vm3696, %v5383
        %5512 = vst.msk [vmem:[%s295 + $0x2d0] sm:$0xff] %vm3696, %v5384
        %5513 = vst.msk [vmem:[%s295 + $0x2d8] sm:$0xff] %vm3696, %v5385
        %5514 = vst.msk [vmem:[%s295 + $0x2e0] sm:$0xff] %vm3696, %v5386
        %5515 = vst.msk [vmem:[%s295 + $0x2e8] sm:$0xff] %vm3696, %v5387
        %5516 = vst.msk [vmem:[%s295 + $0x2f0] sm:$0xff] %vm3696, %v5388
        %5517 = vst.msk [vmem:[%s295 + $0x2f8] sm:$0xff] %vm3696, %v5389
        %5518 = vst.msk [vmem:[%s295 + $0x300] sm:$0xff] %vm3696, %v5390
        %5519 = vst.msk [vmem:[%s295 + $0x308] sm:$0xff] %vm3696, %v5391
        %5520 = vst.msk [vmem:[%s295 + $0x310] sm:$0xff] %vm3696, %v5392
        %5521 = vst.msk [vmem:[%s295 + $0x318] sm:$0xff] %vm3696, %v5393
        %5522 = vst.msk [vmem:[%s295 + $0x320] sm:$0xff] %vm3696, %v5394
        %5523 = vst.msk [vmem:[%s295 + $0x328] sm:$0xff] %vm3696, %v5395
        %5524 = vst.msk [vmem:[%s295 + $0x330] sm:$0xff] %vm3696, %v5396
        %5525 = vst.msk [vmem:[%s295 + $0x338] sm:$0xff] %vm3696, %v5397
        %5526 = vst.msk [vmem:[%s295 + $0x340] sm:$0xff] %vm3696, %v5398
        %5527 = vst.msk [vmem:[%s295 + $0x348] sm:$0xff] %vm3696, %v5399
        %5528 = vst.msk [vmem:[%s295 + $0x350] sm:$0xff] %vm3696, %v5400
        %5529 = vst.msk [vmem:[%s295 + $0x358] sm:$0xff] %vm3696, %v5401
        %5530 = vst.msk [vmem:[%s295 + $0x360] sm:$0xff] %vm3696, %v5402
        %5531 = vst.msk [vmem:[%s295 + $0x368] sm:$0xff] %vm3696, %v5403
        %5532 = vst.msk [vmem:[%s295 + $0x370] sm:$0xff] %vm3696, %v5404
        %5533 = vst.msk [vmem:[%s295 + $0x378] sm:$0xff] %vm3696, %v5405
        %5534 = vst.msk [vmem:[%s295 + $0x380] sm:$0xff] %vm3696, %v5406
        %5535 = vst.msk [vmem:[%s295 + $0x388] sm:$0xff] %vm3696, %v5407
        %5536 = vst.msk [vmem:[%s295 + $0x390] sm:$0xff] %vm3696, %v5408
        %5537 = vst.msk [vmem:[%s295 + $0x398] sm:$0xff] %vm3696, %v5409
        %5538 = vst.msk [vmem:[%s295 + $0x3a0] sm:$0xff] %vm3696, %v5410
        %5539 = vst.msk [vmem:[%s295 + $0x3a8] sm:$0xff] %vm3696, %v5411
        %5540 = vst.msk [vmem:[%s295 + $0x3b0] sm:$0xff] %vm3696, %v5412
        %5541 = vst.msk [vmem:[%s295 + $0x3b8] sm:$0xff] %vm3696, %v5413
        %5542 = vst.msk [vmem:[%s295 + $0x3c0] sm:$0xff] %vm3696, %v5414
        %5543 = vst.msk [vmem:[%s295 + $0x3c8] sm:$0xff] %vm3696, %v5415
        %5544 = vst.msk [vmem:[%s295 + $0x3d0] sm:$0xff] %vm3696, %v5416
        %5545 = vst.msk [vmem:[%s295 + $0x3d8] sm:$0xff] %vm3696, %v5417
        %5546 = vst.msk [vmem:[%s295 + $0x3e0] sm:$0xff] %vm3696, %v5418
        %5547 = vst.msk [vmem:[%s295 + $0x3e8] sm:$0xff] %vm3696, %v5419
        %5548 = vst.msk [vmem:[%s295 + $0x3f0] sm:$0xff] %vm3696, %v5420
        %5549 = vst.msk [vmem:[%s295 + $0x3f8] sm:$0xff] %vm3696, %v5421
        %s5550 = sand.u32 %s140, 1
        %s5551 = scalar_lea.sflag [#allocation4], %s5550
        %s5552 = sand.u32 %s140, 1
        %s5553 = smul.addr %s5552, 1024
        %s5554 = scalar_lea.vmem [#allocation8], %s5553
        %s5555 = sand.u32 %s168, 1
        %s5556 = scalar_lea.sflag [#allocation10], %s5555
        %s5557 = sand.u32 %s168, 1
        %s5558 = smul.addr %s5557, 4
        %s5559 = scalar_lea.vmem [#allocation9], %s5558
        // Predicated region
        $region49: #{pre_attention.1} parent=35 // pred_check
          %p5560 = pneg %p150
        $region50: #{pre_attention.1} parent=35 // pred_check_branch
          %5562 = sbr.rel (%p5560) target = $region52
        $region51: #{pre_attention.1} parent=35 // pred_region
          #allocation12 [shape = 'u32[6]{0}', space=smem, size = 0x18, scoped, tag = 'DMA stride descriptor']
          %s5563 = smul.u32 4, %s31
          %s5565 = ssub.s32 16384, 16384
          %5566 = vsyncadd %s5551, %s5565
          %s5567 = smul.addr %s32, 32
          %s5568 = smul.addr %s5563, 64
          %s5569 = sadd.s32 %s5567, %s5568
          %s5570 = smul.addr %s5569, 128
          %s5571 = scalar_lea.hbm %s4, %s5570
          %s5573 = sshll.u32 1, 14
          %s5574 = sxor.u32 4294967295, %s5573
          %s5577 = sshll.u32 7, 18
          %s5578 = sxor.u32 4294967295, %s5577
          %s5579 = sand.u32 0, %s5578
          %s5581 = sor.u32 %s5579, 0
          %s5582 = sshll.u32 %s5554, 4
          %s5583 = int_to_ptr.vmem [resolvable:$true] %s5582
          %5589 = sst [smem:[#allocation12]] 4096
          %s5590 = scalar_lea.smem [#allocation12], 1
          %5591 = sst [smem:[%s5590]] 8192
          %s5592 = scalar_lea.smem [#allocation12], 2
          %5593 = sst [smem:[%s5592]] 32
          %s5594 = scalar_lea.smem [#allocation12], 3
          %5595 = sst [smem:[%s5594]] 128
          %s5596 = scalar_lea.smem [#allocation12], 4
          %5597 = sst [smem:[%s5596]] 128
          %s5598 = scalar_lea.smem [#allocation12], 5
          %5599 = sst [smem:[%s5598]] 8
          %5601 = dma.general %s5583, 16384, %s5571, %s5551, 131072, [#allocation12], %s5581, 0
        $region52: #{pre_attention.1} parent=35 // pred_fallthru
          _
        // Predicated region
        $region53: #{pre_attention.1} parent=35 // pred_check
          %p5602 = pneg %p178
        $region54: #{pre_attention.1} parent=35 // pred_check_branch
          %5604 = sbr.rel (%p5602) target = $region56
        $region55: #{pre_attention.1} parent=35 // pred_region
          %s5605 = smul.u32 4, %s31
          %s5607 = ssub.s32 64, 64
          %5608 = vsyncadd %s5556, %s5607
          %s5609 = smul.addr %s5605, 2
          %s5610 = sadd.s32 %s32, %s5609
          %s5611 = smul.addr %s5610, 16
          %s5612 = scalar_lea.hbm %s5, %s5611
          %s5613 = sshll.u32 %s5559, 4
          %s5614 = int_to_ptr.vmem [resolvable:$true] %s5613
          %5619 = dma.vmem_to_hbm [thread:$0]  %s5614, 64, %s5612, %s5556, 16, 32, 1
        $region56: #{pre_attention.1} parent=35 // pred_fallthru
          _
      $region36: #{pre_attention.1} parent=5 // pred_fallthru
        _
      %p5620 = scmp.le.s32.totalorder 2, %s22
      // Predicated region
      $region57: #{pre_attention.1} parent=5 // pred_check
        %p5621 = pneg %p5620
      $region58: #{pre_attention.1} parent=5 // pred_check_branch
        %5623 = sbr.rel (%p5621) target = $region60
      $region59: #{pre_attention.1} parent=5 // pred_region
        %s5624 = ssub.s32 %s22, 2
        // Predicated region
        $region61: #{pre_attention.1} parent=59 // pred_check
          %p5625 = pneg %p156
        $region62: #{pre_attention.1} parent=59 // pred_check_branch
          %5627 = sbr.rel (%p5625) target = $region64
        $region63: #{pre_attention.1} parent=59 // pred_region
          %s5628 = sand.u32 %s141, 1
          %s5629 = scalar_lea.sflag [#allocation4], %s5628
          %s5630 = sand.u32 %s141, 1
          %s5631 = smul.addr %s5630, 1024
          %s5632 = scalar_lea.vmem [#allocation8], %s5631
          %5633 = dma.done %s5629, 16384
        $region64: #{pre_attention.1} parent=59 // pred_fallthru
          _
        // Predicated region
        $region65: #{pre_attention.1} parent=59 // pred_check
          %p5634 = pneg %p184
        $region66: #{pre_attention.1} parent=59 // pred_check_branch
          %5636 = sbr.rel (%p5634) target = $region68
        $region67: #{pre_attention.1} parent=59 // pred_region
          %s5637 = sand.u32 %s169, 1
          %s5638 = scalar_lea.sflag [#allocation10], %s5637
          %s5639 = sand.u32 %s169, 1
          %s5640 = smul.addr %s5639, 4
          %s5641 = scalar_lea.vmem [#allocation9], %s5640
          %5642 = dma.done %s5638, 64
        $region68: #{pre_attention.1} parent=59 // pred_fallthru
          _
      $region60: #{pre_attention.1} parent=5 // pred_fallthru
        _
    $region6: #{pre_attention.1} parent=1 // loop_footer
      %s26 = sadd.s32 1, %s22
    $region7: #{pre_attention.1} parent=1 // loop_footer_branch
      %21 = sbr.rel target = $region3
    $region8: #{pre_attention.1} parent=1 // loop_exit
      _
    %5643 = vsyncpa [#allocation3], 1
    %s5644 = scalar_lea.sflag [#allocation3], 1
    %5645 = vsyncpa %s5644, 1
    %5646 = vsyncpa [#allocation6], 1
    %5647 = vsyncpa [#allocation4], 1
    %s5648 = scalar_lea.sflag [#allocation4], 1
    %5649 = vsyncpa %s5648, 1
    %5650 = vsyncpa [#allocation10], 1
    %s5651 = scalar_lea.sflag [#allocation10], 1
    %5652 = vsyncpa %s5651, 1

</llo_original>
